<compile_context>
chip_gen: v6e
topology: v6e:2x2x1
jax: 0.10.0
libtpu: 0.0.40
codegen_flags: <defaults>
</compile_context>

<pallas_src>
import numpy as np

import jax
import jax.numpy as jnp
from jax.experimental import pallas as pl
from jax.experimental.pallas import tpu as pltpu

# ----------------------------- configuration --------------------------------
N_CLASSES = 4
IMG_SIZE = 16
CHANNELS = 1
BATCH = 2

LRELU_SLOPE = 0.2
BN_EPS = 0.8

# spatial sizes after each stride-2 conv: 16 -> 8 -> 4 -> 2 -> 1
SPATIAL = (IMG_SIZE, IMG_SIZE // 2, IMG_SIZE // 4, IMG_SIZE // 8, IMG_SIZE // 16)
CH = (CHANNELS, 16, 32, 64, 128)
HEAD_PAD = 8  # fused head width: 1 validity + 4 classes, padded to 8 lanes


# ------------------------------ fused kernel --------------------------------
def discriminator_kernel(
    x_ref,
    t1_ref, b1_ref,
    t2_ref, b2_ref, p2_ref, pt2_ref, g2_ref, be2_ref,
    t3_ref, b3_ref, p3_ref, pt3_ref, g3_ref, be3_ref,
    t4_ref, b4_ref, g4_ref, be4_ref,
    wh_ref, bh_ref,
    val_ref, lab_ref,
):
    f32 = jnp.float32
    bf16 = jnp.bfloat16
    n = x_ref.shape[0]  # static batch size

    def leaky(y):
        return jnp.where(y > 0, y, LRELU_SLOPE * y)

    def conv(x, t_ref, b_ref):
        # Whole 3x3 / stride-2 / pad-1 conv = ONE bf16 MXU matmul against the
        # precomputed fold of (gather x weights); f32 accumulation; bias add.
        return jnp.dot(x.astype(bf16), t_ref[...], preferred_element_type=f32) + b_ref[...]

    def bn_spatial(x, p_ref, pt_ref, g_ref, be_ref, count):
        # PyTorch training-mode BatchNorm2d on a (B, H*W*C) lane slab:
        # per-channel batch stats (biased variance, two-pass) via 0/1 pooling
        # matmuls; per-channel scale/shift broadcast back to lanes via P^T.
        inv = 1.0 / count
        mean_c = jnp.dot(jnp.sum(x, axis=0, keepdims=True), p_ref[...],
                         preferred_element_type=f32) * inv                    # (1, C)
        mean_l = jnp.dot(mean_c, pt_ref[...], preferred_element_type=f32)     # (1, L)
        d = x - mean_l
        var_c = jnp.dot(jnp.sum(d * d, axis=0, keepdims=True), p_ref[...],
                        preferred_element_type=f32) * inv                     # (1, C)
        scale_c = g_ref[...] * jax.lax.rsqrt(var_c + BN_EPS)                  # (1, C)
        scale_l = jnp.dot(scale_c, pt_ref[...], preferred_element_type=f32)   # (1, L)
        beta_l = jnp.dot(be_ref[...], pt_ref[...], preferred_element_type=f32)
        return d * scale_l + beta_l

    def bn_lane(x, g_ref, be_ref):
        # Block 4 is 1x1 spatial: lane index == channel, stats are per-lane.
        mean = jnp.mean(x, axis=0, keepdims=True)
        d = x - mean
        var = jnp.mean(d * d, axis=0, keepdims=True)
        return d * (g_ref[...] * jax.lax.rsqrt(var + BN_EPS)) + be_ref[...]

    x0 = x_ref[...]                                                   # (B, 256)

    # --- block 1: Conv2d(1,16,3,2,1) + LeakyReLU(0.2)  (no BN) --------------
    x1 = leaky(conv(x0, t1_ref, b1_ref))                              # (B, 1024)
    # TODO(synk): Dropout2d(0.25) is identity here (eval semantics); PyTorch
    # training-mode stochastic per-channel masking is not emulated.

    # --- block 2: Conv2d(16,32,3,2,1) + LeakyReLU + BN(32, eps=0.8) ---------
    x2 = bn_spatial(leaky(conv(x1, t2_ref, b2_ref)),
                    p2_ref, pt2_ref, g2_ref, be2_ref, n * SPATIAL[2] ** 2)  # (B, 512)

    # --- block 3: Conv2d(32,64,3,2,1) + LeakyReLU + BN(64, eps=0.8) ---------
    x3 = bn_spatial(leaky(conv(x2, t3_ref, b3_ref)),
                    p3_ref, pt3_ref, g3_ref, be3_ref, n * SPATIAL[3] ** 2)  # (B, 256)

    # --- block 4: Conv2d(64,128,3,2,1) + LeakyReLU + BN(128, eps=0.8) -------
    x4 = bn_lane(leaky(conv(x3, t4_ref, b4_ref)), g4_ref, be4_ref)          # (B, 128)

    # --- fused heads: out.view(B,-1) == x4 because ds_size == 1 -------------
    z = jnp.dot(x4, wh_ref[...], preferred_element_type=f32) + bh_ref[...]  # (B, 8)
    zv = z[:, 0:1]
    val_ref[...] = pl.reciprocal(1.0 + jnp.exp(-zv), approx=True)           # Sigmoid
    zl = z[:, 1:1 + N_CLASSES]
    zl = zl - jnp.max(zl, axis=-1, keepdims=True)                           # Softmax(dim=1)
    ez = jnp.exp(zl)
    lab_ref[...] = ez * pl.reciprocal(jnp.sum(ez, axis=-1, keepdims=True), approx=True)


# -------------------------- host-side precomputation -------------------------
def build_conv_matrix(w, b, h_in, w_in, h_out, w_out):
    """Fold a 3x3 / stride-2 / pad-1 conv (torch weight layout (Cout,Cin,3,3))
    into a dense (H_in*W_in*Cin, H_out*W_out*Cout) matrix acting on
    position-major / channel-minor lane slabs, plus a (1, L_out) bias row.
    Batch-independent; built once outside the jitted path."""
    c_out, c_in = int(w.shape[0]), int(w.shape[1])
    w_np = np.asarray(w, np.float32)
    t = np.zeros((h_in * w_in * c_in, h_out * w_out * c_out), np.float32)
    for oh in range(h_out):
        for ow in range(w_out):
            c0 = (oh * w_out + ow) * c_out
            for dy in range(3):
                ih = 2 * oh + dy - 1
                if ih < 0 or ih >= h_in:
                    continue
                for dx in range(3):
                    iw = 2 * ow + dx - 1
                    if iw < 0 or iw >= w_in:
                        continue
                    r0 = (ih * w_in + iw) * c_in
                    t[r0:r0 + c_in, c0:c0 + c_out] = w_np[:, :, dy, dx].T
    b_lane = np.tile(np.asarray(b, np.float32), h_out * w_out).reshape(1, -1)
    return jnp.asarray(t, jnp.bfloat16), jnp.asarray(b_lane, jnp.float32)


def build_pool(hw, c):
    """0/1 pooling matrix P (hw*c, c) summing each channel's spatial positions
    on a position-major/channel-minor lane slab, plus its transpose."""
    p = np.tile(np.eye(c, dtype=np.float32), (hw, 1))
    return jnp.asarray(p), jnp.asarray(np.ascontiguousarray(p.T))


def init_params(key):
    """Torch-layout parameters (used by the XLA reference and folded for the kernel)."""
    ks = jax.random.split(key, 12)
    p = {}
    p["c1_w"] = 0.1 * jax.random.normal(ks[0], (CH[1], CH[0], 3, 3), jnp.float32)
    p["c1_b"] = 0.05 * jax.random.normal(ks[1], (CH[1],), jnp.float32)
    p["c2_w"] = 0.1 * jax.random.normal(ks[2], (CH[2], CH[1], 3, 3), jnp.float32)
    p["c2_b"] = 0.05 * jax.random.normal(ks[3], (CH[2],), jnp.float32)
    p["c3_w"] = 0.1 * jax.random.normal(ks[4], (CH[3], CH[2], 3, 3), jnp.float32)
    p["c3_b"] = 0.05 * jax.random.normal(ks[5], (CH[3],), jnp.float32)
    p["c4_w"] = 0.1 * jax.random.normal(ks[6], (CH[4], CH[3], 3, 3), jnp.float32)
    p["c4_b"] = 0.05 * jax.random.normal(ks[7], (CH[4],), jnp.float32)
    # BatchNorm affine params (PyTorch default init: gamma=1, beta=0)
    p["bn2_g"], p["bn2_b"] = jnp.ones((CH[2],), jnp.float32), jnp.zeros((CH[2],), jnp.float32)
    p["bn3_g"], p["bn3_b"] = jnp.ones((CH[3],), jnp.float32), jnp.zeros((CH[3],), jnp.float32)
    p["bn4_g"], p["bn4_b"] = jnp.ones((CH[4],), jnp.float32), jnp.zeros((CH[4],), jnp.float32)
    p["adv_w"] = 0.1 * jax.random.normal(ks[8], (CH[4], 1), jnp.float32)
    p["adv_b"] = 0.05 * jax.random.normal(ks[9], (1,), jnp.float32)
    p["aux_w"] = 0.1 * jax.random.normal(ks[10], (CH[4], N_CLASSES), jnp.float32)
    p["aux_b"] = 0.05 * jax.random.normal(ks[11], (N_CLASSES,), jnp.float32)
    return p


def pack_operands(p):
    """Kernel operand tuple: batch-independent fold matrices (bf16), bias rows,
    BN pooling matrices, BN affine rows, fused head weights."""
    t1, b1 = build_conv_matrix(p["c1_w"], p["c1_b"], SPATIAL[0], SPATIAL[0], SPATIAL[1], SPATIAL[1])
    t2, b2 = build_conv_matrix(p["c2_w"], p["c2_b"], SPATIAL[1], SPATIAL[1], SPATIAL[2], SPATIAL[2])
    t3, b3 = build_conv_matrix(p["c3_w"], p["c3_b"], SPATIAL[2], SPATIAL[2], SPATIAL[3], SPATIAL[3])
    t4, b4 = build_conv_matrix(p["c4_w"], p["c4_b"], SPATIAL[3], SPATIAL[3], SPATIAL[4], SPATIAL[4])
    p2, pt2 = build_pool(SPATIAL[2] ** 2, CH[2])
    p3, pt3 = build_pool(SPATIAL[3] ** 2, CH[3])
    row = lambda v: jnp.asarray(v, jnp.float32).reshape(1, -1)
    # fused head weights, lane-padded to width 8 (col 0 = adv, cols 1..4 = aux)
    wh = np.zeros((CH[4], HEAD_PAD), np.float32)
    wh[:, 0:1] = np.asarray(p["adv_w"], np.float32)
    wh[:, 1:1 + N_CLASSES] = np.asarray(p["aux_w"], np.float32)
    bh = np.zeros((1, HEAD_PAD), np.float32)
    bh[0, 0] = float(np.asarray(p["adv_b"], np.float32)[0])
    bh[0, 1:1 + N_CLASSES] = np.asarray(p["aux_b"], np.float32)
    return (
        t1, b1,
        t2, b2, p2, pt2, row(p["bn2_g"]), row(p["bn2_b"]),
        t3, b3, p3, pt3, row(p["bn3_g"]), row(p["bn3_b"]),
        t4, b4, row(p["bn4_g"]), row(p["bn4_b"]),
        jnp.asarray(wh), jnp.asarray(bh),
    )


# --------------------------------- forward -----------------------------------
def discriminator_forward(operands, img):
    b = img.shape[0]
    # NCHW -> lane-dense (B, H*W*C) slab (position-major, channel-minor lanes).
    x = img.transpose(0, 2, 3, 1).reshape(b, IMG_SIZE * IMG_SIZE * CHANNELS)

    vmem = lambda: pl.BlockSpec(memory_space=pltpu.MemorySpace.VMEM)

    validity, label = pl.pallas_call(
        discriminator_kernel,
        out_shape=(
            jax.ShapeDtypeStruct((b, 1), jnp.float32),
            jax.ShapeDtypeStruct((b, N_CLASSES), jnp.float32),
        ),
        in_specs=[vmem() for _ in range(1 + len(operands))],
        out_specs=(vmem(), vmem()),
    )(x, *operands)
    return validity, label


# --------------------------- pure-JAX reference -------------------------------
def reference_forward(p, img):
    def conv(x, w, b):
        y = jax.lax.conv_general_dilated(
            x, w, window_strides=(2, 2), padding=((1, 1), (1, 1)),
            dimension_numbers=("NCHW", "OIHW", "NCHW"))
        return y + b.reshape(1, -1, 1, 1)

    def leaky(x):
        return jnp.where(x > 0, x, LRELU_SLOPE * x)

    def bn(x, g, bta):
        mean = jnp.mean(x, axis=(0, 2, 3), keepdims=True)
        var = jnp.mean((x - mean) ** 2, axis=(0, 2, 3), keepdims=True)
        return (x - mean) * jax.lax.rsqrt(var + BN_EPS) * g.reshape(1, -1, 1, 1) \
            + bta.reshape(1, -1, 1, 1)

    x = leaky(conv(img, p["c1_w"], p["c1_b"]))                       # Dropout2d = identity
    x = bn(leaky(conv(x, p["c2_w"], p["c2_b"])), p["bn2_g"], p["bn2_b"])
    x = bn(leaky(conv(x, p["c3_w"], p["c3_b"])), p["bn3_g"], p["bn3_b"])
    x = bn(leaky(conv(x, p["c4_w"], p["c4_b"])), p["bn4_g"], p["bn4_b"])
    flat = x.reshape(x.shape[0], -1)
    validity = jax.nn.sigmoid(flat @ p["adv_w"] + p["adv_b"])
    label = jax.nn.softmax(flat @ p["aux_w"] + p["aux_b"], axis=-1)
    return validity, label


# ----------------------------------- main -------------------------------------
if __name__ == "__main__":
    key = jax.random.PRNGKey(0)
    kp, ki = jax.random.split(key)

    params = init_params(kp)
    operands = pack_operands(params)
    img = jax.random.normal(ki, (BATCH, CHANNELS, IMG_SIZE, IMG_SIZE), jnp.float32)

    fwd = jax.jit(discriminator_forward)
    validity, label = fwd(operands, img)
    jax.block_until_ready((validity, label))

    assert validity.shape == (BATCH, 1), validity.shape
    assert label.shape == (BATCH, N_CLASSES), label.shape
    assert validity.dtype == jnp.float32 and label.dtype == jnp.float32

    # numerical sanity check against a plain-XLA reference of the same module
    v_ref, l_ref = jax.jit(reference_forward)(params, img)
    jax.block_until_ready((v_ref, l_ref))
    assert float(jnp.max(jnp.abs(validity - v_ref))) < 3e-2
    assert float(jnp.max(jnp.abs(label - l_ref))) < 3e-2

    print("KERNEL_OK")
</pallas_src>

<mosaic_0001>
module attributes {stable_mosaic.version = 11 : i64} {
  func.func @discriminator_kernel(%arg0: memref<2x256xf32, #tpu.memory_space<vmem>>, %arg1: memref<256x1024xbf16, #tpu.memory_space<vmem>>, %arg2: memref<1x1024xf32, #tpu.memory_space<vmem>>, %arg3: memref<1024x512xbf16, #tpu.memory_space<vmem>>, %arg4: memref<1x512xf32, #tpu.memory_space<vmem>>, %arg5: memref<512x32xf32, #tpu.memory_space<vmem>>, %arg6: memref<32x512xf32, #tpu.memory_space<vmem>>, %arg7: memref<1x32xf32, #tpu.memory_space<vmem>>, %arg8: memref<1x32xf32, #tpu.memory_space<vmem>>, %arg9: memref<512x256xbf16, #tpu.memory_space<vmem>>, %arg10: memref<1x256xf32, #tpu.memory_space<vmem>>, %arg11: memref<256x64xf32, #tpu.memory_space<vmem>>, %arg12: memref<64x256xf32, #tpu.memory_space<vmem>>, %arg13: memref<1x64xf32, #tpu.memory_space<vmem>>, %arg14: memref<1x64xf32, #tpu.memory_space<vmem>>, %arg15: memref<256x128xbf16, #tpu.memory_space<vmem>>, %arg16: memref<1x128xf32, #tpu.memory_space<vmem>>, %arg17: memref<1x128xf32, #tpu.memory_space<vmem>>, %arg18: memref<1x128xf32, #tpu.memory_space<vmem>>, %arg19: memref<128x8xf32, #tpu.memory_space<vmem>>, %arg20: memref<1x8xf32, #tpu.memory_space<vmem>>, %arg21: memref<2x1xf32, #tpu.memory_space<vmem>>, %arg22: memref<2x4xf32, #tpu.memory_space<vmem>>) attributes {dimension_semantics = [], scalar_prefetch = 0 : i64, scratch_operands = 0 : i64, tpu.core_type = #tpu.core_type<tc>} {
    %c0 = arith.constant 0 : index
    %c0_0 = arith.constant 0 : index
    %0 = vector.load %arg0[%c0, %c0_0] : memref<2x256xf32, #tpu.memory_space<vmem>>, vector<2x256xf32>
    %1 = arith.truncf %0 : vector<2x256xf32> to vector<2x256xbf16>
    %c0_1 = arith.constant 0 : index
    %c0_2 = arith.constant 0 : index
    %2 = vector.load %arg1[%c0_1, %c0_2] : memref<256x1024xbf16, #tpu.memory_space<vmem>>, vector<256x1024xbf16>
    %cst = arith.constant dense<0.000000e+00> : vector<2x1024xf32>
    %3 = tpu.matmul %1, %2, %cst {dimension_numbers = #tpu.dot_dimension_numbers<[1], [0], [0], [1], [0, 0, 1, 1], [], []>} : vector<2x256xbf16>, vector<256x1024xbf16>, vector<2x1024xf32> -> vector<2x1024xf32>
    %c0_3 = arith.constant 0 : index
    %c0_4 = arith.constant 0 : index
    %4 = vector.load %arg2[%c0_3, %c0_4] : memref<1x1024xf32, #tpu.memory_space<vmem>>, vector<1x1024xf32>
    %5 = vector.broadcast %4 : vector<1x1024xf32> to vector<2x1024xf32>
    %6 = arith.addf %3, %5 : vector<2x1024xf32>
    %cst_5 = arith.constant 0.000000e+00 : f32
    %7 = vector.broadcast %cst_5 : f32 to vector<2x1024xf32>
    %8 = arith.cmpf ogt, %6, %7 : vector<2x1024xf32>
    %cst_6 = arith.constant 2.000000e-01 : f32
    %9 = vector.broadcast %cst_6 : f32 to vector<2x1024xf32>
    %10 = arith.mulf %9, %6 : vector<2x1024xf32>
    %11 = arith.select %8, %6, %10 : vector<2x1024xi1>, vector<2x1024xf32>
    %12 = arith.truncf %11 : vector<2x1024xf32> to vector<2x1024xbf16>
    %c0_7 = arith.constant 0 : index
    %c0_8 = arith.constant 0 : index
    %13 = vector.load %arg3[%c0_7, %c0_8] : memref<1024x512xbf16, #tpu.memory_space<vmem>>, vector<1024x512xbf16>
    %cst_9 = arith.constant dense<0.000000e+00> : vector<2x512xf32>
    %14 = tpu.matmul %12, %13, %cst_9 {dimension_numbers = #tpu.dot_dimension_numbers<[1], [0], [0], [1], [0, 0, 1, 1], [], []>} : vector<2x1024xbf16>, vector<1024x512xbf16>, vector<2x512xf32> -> vector<2x512xf32>
    %c0_10 = arith.constant 0 : index
    %c0_11 = arith.constant 0 : index
    %15 = vector.load %arg4[%c0_10, %c0_11] : memref<1x512xf32, #tpu.memory_space<vmem>>, vector<1x512xf32>
    %16 = vector.broadcast %15 : vector<1x512xf32> to vector<2x512xf32>
    %17 = arith.addf %14, %16 : vector<2x512xf32>
    %cst_12 = arith.constant 0.000000e+00 : f32
    %18 = vector.broadcast %cst_12 : f32 to vector<2x512xf32>
    %19 = arith.cmpf ogt, %17, %18 : vector<2x512xf32>
    %cst_13 = arith.constant 2.000000e-01 : f32
    %20 = vector.broadcast %cst_13 : f32 to vector<2x512xf32>
    %21 = arith.mulf %20, %17 : vector<2x512xf32>
    %22 = arith.select %19, %17, %21 : vector<2x512xi1>, vector<2x512xf32>
    %cst_14 = arith.constant dense<0.000000e+00> : vector<512xf32>
    %23 = vector.multi_reduction <add>, %22, %cst_14 [0] : vector<2x512xf32> to vector<512xf32>
    %24 = vector.shape_cast %23 : vector<512xf32> to vector<1x512xf32>
    %c0_15 = arith.constant 0 : index
    %c0_16 = arith.constant 0 : index
    %25 = vector.load %arg5[%c0_15, %c0_16] : memref<512x32xf32, #tpu.memory_space<vmem>>, vector<512x32xf32>
    %cst_17 = arith.constant dense<0.000000e+00> : vector<1x32xf32>
    %26 = tpu.matmul %24, %25, %cst_17 {dimension_numbers = #tpu.dot_dimension_numbers<[1], [0], [0], [1], [0, 0, 1, 1], [], []>} : vector<1x512xf32>, vector<512x32xf32>, vector<1x32xf32> -> vector<1x32xf32>
    %cst_18 = arith.constant 3.125000e-02 : f32
    %27 = vector.broadcast %cst_18 : f32 to vector<1x32xf32>
    %28 = arith.mulf %26, %27 : vector<1x32xf32>
    %c0_19 = arith.constant 0 : index
    %c0_20 = arith.constant 0 : index
    %29 = vector.load %arg6[%c0_19, %c0_20] : memref<32x512xf32, #tpu.memory_space<vmem>>, vector<32x512xf32>
    %cst_21 = arith.constant dense<0.000000e+00> : vector<1x512xf32>
    %30 = tpu.matmul %28, %29, %cst_21 {dimension_numbers = #tpu.dot_dimension_numbers<[1], [0], [0], [1], [0, 0, 1, 1], [], []>} : vector<1x32xf32>, vector<32x512xf32>, vector<1x512xf32> -> vector<1x512xf32>
    %31 = vector.broadcast %30 : vector<1x512xf32> to vector<2x512xf32>
    %32 = arith.subf %22, %31 : vector<2x512xf32>
    %33 = arith.mulf %32, %32 : vector<2x512xf32>
    %cst_22 = arith.constant dense<0.000000e+00> : vector<512xf32>
    %34 = vector.multi_reduction <add>, %33, %cst_22 [0] : vector<2x512xf32> to vector<512xf32>
    %35 = vector.shape_cast %34 : vector<512xf32> to vector<1x512xf32>
    %c0_23 = arith.constant 0 : index
    %c0_24 = arith.constant 0 : index
    %36 = vector.load %arg5[%c0_23, %c0_24] : memref<512x32xf32, #tpu.memory_space<vmem>>, vector<512x32xf32>
    %cst_25 = arith.constant dense<0.000000e+00> : vector<1x32xf32>
    %37 = tpu.matmul %35, %36, %cst_25 {dimension_numbers = #tpu.dot_dimension_numbers<[1], [0], [0], [1], [0, 0, 1, 1], [], []>} : vector<1x512xf32>, vector<512x32xf32>, vector<1x32xf32> -> vector<1x32xf32>
    %cst_26 = arith.constant 3.125000e-02 : f32
    %38 = vector.broadcast %cst_26 : f32 to vector<1x32xf32>
    %39 = arith.mulf %37, %38 : vector<1x32xf32>
    %c0_27 = arith.constant 0 : index
    %c0_28 = arith.constant 0 : index
    %40 = vector.load %arg7[%c0_27, %c0_28] : memref<1x32xf32, #tpu.memory_space<vmem>>, vector<1x32xf32>
    %cst_29 = arith.constant 8.000000e-01 : f32
    %41 = vector.broadcast %cst_29 : f32 to vector<1x32xf32>
    %42 = arith.addf %39, %41 : vector<1x32xf32>
    %43 = math.rsqrt %42 : vector<1x32xf32>
    %44 = arith.mulf %40, %43 : vector<1x32xf32>
    %c0_30 = arith.constant 0 : index
    %c0_31 = arith.constant 0 : index
    %45 = vector.load %arg6[%c0_30, %c0_31] : memref<32x512xf32, #tpu.memory_space<vmem>>, vector<32x512xf32>
    %cst_32 = arith.constant dense<0.000000e+00> : vector<1x512xf32>
    %46 = tpu.matmul %44, %45, %cst_32 {dimension_numbers = #tpu.dot_dimension_numbers<[1], [0], [0], [1], [0, 0, 1, 1], [], []>} : vector<1x32xf32>, vector<32x512xf32>, vector<1x512xf32> -> vector<1x512xf32>
    %c0_33 = arith.constant 0 : index
    %c0_34 = arith.constant 0 : index
    %47 = vector.load %arg8[%c0_33, %c0_34] : memref<1x32xf32, #tpu.memory_space<vmem>>, vector<1x32xf32>
    %c0_35 = arith.constant 0 : index
    %c0_36 = arith.constant 0 : index
    %48 = vector.load %arg6[%c0_35, %c0_36] : memref<32x512xf32, #tpu.memory_space<vmem>>, vector<32x512xf32>
    %cst_37 = arith.constant dense<0.000000e+00> : vector<1x512xf32>
    %49 = tpu.matmul %47, %48, %cst_37 {dimension_numbers = #tpu.dot_dimension_numbers<[1], [0], [0], [1], [0, 0, 1, 1], [], []>} : vector<1x32xf32>, vector<32x512xf32>, vector<1x512xf32> -> vector<1x512xf32>
    %50 = vector.broadcast %46 : vector<1x512xf32> to vector<2x512xf32>
    %51 = arith.mulf %32, %50 : vector<2x512xf32>
    %52 = vector.broadcast %49 : vector<1x512xf32> to vector<2x512xf32>
    %53 = arith.addf %51, %52 : vector<2x512xf32>
    %54 = arith.truncf %53 : vector<2x512xf32> to vector<2x512xbf16>
    %c0_38 = arith.constant 0 : index
    %c0_39 = arith.constant 0 : index
    %55 = vector.load %arg9[%c0_38, %c0_39] : memref<512x256xbf16, #tpu.memory_space<vmem>>, vector<512x256xbf16>
    %cst_40 = arith.constant dense<0.000000e+00> : vector<2x256xf32>
    %56 = tpu.matmul %54, %55, %cst_40 {dimension_numbers = #tpu.dot_dimension_numbers<[1], [0], [0], [1], [0, 0, 1, 1], [], []>} : vector<2x512xbf16>, vector<512x256xbf16>, vector<2x256xf32> -> vector<2x256xf32>
    %c0_41 = arith.constant 0 : index
    %c0_42 = arith.constant 0 : index
    %57 = vector.load %arg10[%c0_41, %c0_42] : memref<1x256xf32, #tpu.memory_space<vmem>>, vector<1x256xf32>
    %58 = vector.broadcast %57 : vector<1x256xf32> to vector<2x256xf32>
    %59 = arith.addf %56, %58 : vector<2x256xf32>
    %cst_43 = arith.constant 0.000000e+00 : f32
    %60 = vector.broadcast %cst_43 : f32 to vector<2x256xf32>
    %61 = arith.cmpf ogt, %59, %60 : vector<2x256xf32>
    %cst_44 = arith.constant 2.000000e-01 : f32
    %62 = vector.broadcast %cst_44 : f32 to vector<2x256xf32>
    %63 = arith.mulf %62, %59 : vector<2x256xf32>
    %64 = arith.select %61, %59, %63 : vector<2x256xi1>, vector<2x256xf32>
    %cst_45 = arith.constant dense<0.000000e+00> : vector<256xf32>
    %65 = vector.multi_reduction <add>, %64, %cst_45 [0] : vector<2x256xf32> to vector<256xf32>
    %66 = vector.shape_cast %65 : vector<256xf32> to vector<1x256xf32>
    %c0_46 = arith.constant 0 : index
    %c0_47 = arith.constant 0 : index
    %67 = vector.load %arg11[%c0_46, %c0_47] : memref<256x64xf32, #tpu.memory_space<vmem>>, vector<256x64xf32>
    %cst_48 = arith.constant dense<0.000000e+00> : vector<1x64xf32>
    %68 = tpu.matmul %66, %67, %cst_48 {dimension_numbers = #tpu.dot_dimension_numbers<[1], [0], [0], [1], [0, 0, 1, 1], [], []>} : vector<1x256xf32>, vector<256x64xf32>, vector<1x64xf32> -> vector<1x64xf32>
    %cst_49 = arith.constant 1.250000e-01 : f32
    %69 = vector.broadcast %cst_49 : f32 to vector<1x64xf32>
    %70 = arith.mulf %68, %69 : vector<1x64xf32>
    %c0_50 = arith.constant 0 : index
    %c0_51 = arith.constant 0 : index
    %71 = vector.load %arg12[%c0_50, %c0_51] : memref<64x256xf32, #tpu.memory_space<vmem>>, vector<64x256xf32>
    %cst_52 = arith.constant dense<0.000000e+00> : vector<1x256xf32>
    %72 = tpu.matmul %70, %71, %cst_52 {dimension_numbers = #tpu.dot_dimension_numbers<[1], [0], [0], [1], [0, 0, 1, 1], [], []>} : vector<1x64xf32>, vector<64x256xf32>, vector<1x256xf32> -> vector<1x256xf32>
    %73 = vector.broadcast %72 : vector<1x256xf32> to vector<2x256xf32>
    %74 = arith.subf %64, %73 : vector<2x256xf32>
    %75 = arith.mulf %74, %74 : vector<2x256xf32>
    %cst_53 = arith.constant dense<0.000000e+00> : vector<256xf32>
    %76 = vector.multi_reduction <add>, %75, %cst_53 [0] : vector<2x256xf32> to vector<256xf32>
    %77 = vector.shape_cast %76 : vector<256xf32> to vector<1x256xf32>
    %c0_54 = arith.constant 0 : index
    %c0_55 = arith.constant 0 : index
    %78 = vector.load %arg11[%c0_54, %c0_55] : memref<256x64xf32, #tpu.memory_space<vmem>>, vector<256x64xf32>
    %cst_56 = arith.constant dense<0.000000e+00> : vector<1x64xf32>
    %79 = tpu.matmul %77, %78, %cst_56 {dimension_numbers = #tpu.dot_dimension_numbers<[1], [0], [0], [1], [0, 0, 1, 1], [], []>} : vector<1x256xf32>, vector<256x64xf32>, vector<1x64xf32> -> vector<1x64xf32>
    %cst_57 = arith.constant 1.250000e-01 : f32
    %80 = vector.broadcast %cst_57 : f32 to vector<1x64xf32>
    %81 = arith.mulf %79, %80 : vector<1x64xf32>
    %c0_58 = arith.constant 0 : index
    %c0_59 = arith.constant 0 : index
    %82 = vector.load %arg13[%c0_58, %c0_59] : memref<1x64xf32, #tpu.memory_space<vmem>>, vector<1x64xf32>
    %cst_60 = arith.constant 8.000000e-01 : f32
    %83 = vector.broadcast %cst_60 : f32 to vector<1x64xf32>
    %84 = arith.addf %81, %83 : vector<1x64xf32>
    %85 = math.rsqrt %84 : vector<1x64xf32>
    %86 = arith.mulf %82, %85 : vector<1x64xf32>
    %c0_61 = arith.constant 0 : index
    %c0_62 = arith.constant 0 : index
    %87 = vector.load %arg12[%c0_61, %c0_62] : memref<64x256xf32, #tpu.memory_space<vmem>>, vector<64x256xf32>
    %cst_63 = arith.constant dense<0.000000e+00> : vector<1x256xf32>
    %88 = tpu.matmul %86, %87, %cst_63 {dimension_numbers = #tpu.dot_dimension_numbers<[1], [0], [0], [1], [0, 0, 1, 1], [], []>} : vector<1x64xf32>, vector<64x256xf32>, vector<1x256xf32> -> vector<1x256xf32>
    %c0_64 = arith.constant 0 : index
    %c0_65 = arith.constant 0 : index
    %89 = vector.load %arg14[%c0_64, %c0_65] : memref<1x64xf32, #tpu.memory_space<vmem>>, vector<1x64xf32>
    %c0_66 = arith.constant 0 : index
    %c0_67 = arith.constant 0 : index
    %90 = vector.load %arg12[%c0_66, %c0_67] : memref<64x256xf32, #tpu.memory_space<vmem>>, vector<64x256xf32>
    %cst_68 = arith.constant dense<0.000000e+00> : vector<1x256xf32>
    %91 = tpu.matmul %89, %90, %cst_68 {dimension_numbers = #tpu.dot_dimension_numbers<[1], [0], [0], [1], [0, 0, 1, 1], [], []>} : vector<1x64xf32>, vector<64x256xf32>, vector<1x256xf32> -> vector<1x256xf32>
    %92 = vector.broadcast %88 : vector<1x256xf32> to vector<2x256xf32>
    %93 = arith.mulf %74, %92 : vector<2x256xf32>
    %94 = vector.broadcast %91 : vector<1x256xf32> to vector<2x256xf32>
    %95 = arith.addf %93, %94 : vector<2x256xf32>
    %96 = arith.truncf %95 : vector<2x256xf32> to vector<2x256xbf16>
    %c0_69 = arith.constant 0 : index
    %c0_70 = arith.constant 0 : index
    %97 = vector.load %arg15[%c0_69, %c0_70] : memref<256x128xbf16, #tpu.memory_space<vmem>>, vector<256x128xbf16>
    %cst_71 = arith.constant dense<0.000000e+00> : vector<2x128xf32>
    %98 = tpu.matmul %96, %97, %cst_71 {dimension_numbers = #tpu.dot_dimension_numbers<[1], [0], [0], [1], [0, 0, 1, 1], [], []>} : vector<2x256xbf16>, vector<256x128xbf16>, vector<2x128xf32> -> vector<2x128xf32>
    %c0_72 = arith.constant 0 : index
    %c0_73 = arith.constant 0 : index
    %99 = vector.load %arg16[%c0_72, %c0_73] : memref<1x128xf32, #tpu.memory_space<vmem>>, vector<1x128xf32>
    %100 = vector.broadcast %99 : vector<1x128xf32> to vector<2x128xf32>
    %101 = arith.addf %98, %100 : vector<2x128xf32>
    %cst_74 = arith.constant 0.000000e+00 : f32
    %102 = vector.broadcast %cst_74 : f32 to vector<2x128xf32>
    %103 = arith.cmpf ogt, %101, %102 : vector<2x128xf32>
    %cst_75 = arith.constant 2.000000e-01 : f32
    %104 = vector.broadcast %cst_75 : f32 to vector<2x128xf32>
    %105 = arith.mulf %104, %101 : vector<2x128xf32>
    %106 = arith.select %103, %101, %105 : vector<2x128xi1>, vector<2x128xf32>
    %cst_76 = arith.constant dense<0.000000e+00> : vector<128xf32>
    %107 = vector.multi_reduction <add>, %106, %cst_76 [0] : vector<2x128xf32> to vector<128xf32>
    %108 = vector.shape_cast %107 : vector<128xf32> to vector<1x128xf32>
    %cst_77 = arith.constant 2.000000e+00 : f32
    %109 = vector.broadcast %cst_77 : f32 to vector<1x128xf32>
    %110 = arith.divf %108, %109 : vector<1x128xf32>
    %111 = vector.broadcast %110 : vector<1x128xf32> to vector<2x128xf32>
    %112 = arith.subf %106, %111 : vector<2x128xf32>
    %113 = arith.mulf %112, %112 : vector<2x128xf32>
    %cst_78 = arith.constant dense<0.000000e+00> : vector<128xf32>
    %114 = vector.multi_reduction <add>, %113, %cst_78 [0] : vector<2x128xf32> to vector<128xf32>
    %115 = vector.shape_cast %114 : vector<128xf32> to vector<1x128xf32>
    %cst_79 = arith.constant 2.000000e+00 : f32
    %116 = vector.broadcast %cst_79 : f32 to vector<1x128xf32>
    %117 = arith.divf %115, %116 : vector<1x128xf32>
    %c0_80 = arith.constant 0 : index
    %c0_81 = arith.constant 0 : index
    %118 = vector.load %arg17[%c0_80, %c0_81] : memref<1x128xf32, #tpu.memory_space<vmem>>, vector<1x128xf32>
    %cst_82 = arith.constant 8.000000e-01 : f32
    %119 = vector.broadcast %cst_82 : f32 to vector<1x128xf32>
    %120 = arith.addf %117, %119 : vector<1x128xf32>
    %121 = math.rsqrt %120 : vector<1x128xf32>
    %122 = arith.mulf %118, %121 : vector<1x128xf32>
    %123 = vector.broadcast %122 : vector<1x128xf32> to vector<2x128xf32>
    %124 = arith.mulf %112, %123 : vector<2x128xf32>
    %c0_83 = arith.constant 0 : index
    %c0_84 = arith.constant 0 : index
    %125 = vector.load %arg18[%c0_83, %c0_84] : memref<1x128xf32, #tpu.memory_space<vmem>>, vector<1x128xf32>
    %126 = vector.broadcast %125 : vector<1x128xf32> to vector<2x128xf32>
    %127 = arith.addf %124, %126 : vector<2x128xf32>
    %c0_85 = arith.constant 0 : index
    %c0_86 = arith.constant 0 : index
    %128 = vector.load %arg19[%c0_85, %c0_86] : memref<128x8xf32, #tpu.memory_space<vmem>>, vector<128x8xf32>
    %cst_87 = arith.constant dense<0.000000e+00> : vector<2x8xf32>
    %129 = tpu.matmul %127, %128, %cst_87 {dimension_numbers = #tpu.dot_dimension_numbers<[1], [0], [0], [1], [0, 0, 1, 1], [], []>} : vector<2x128xf32>, vector<128x8xf32>, vector<2x8xf32> -> vector<2x8xf32>
    %c0_88 = arith.constant 0 : index
    %c0_89 = arith.constant 0 : index
    %130 = vector.load %arg20[%c0_88, %c0_89] : memref<1x8xf32, #tpu.memory_space<vmem>>, vector<1x8xf32>
    %131 = vector.broadcast %130 : vector<1x8xf32> to vector<2x8xf32>
    %132 = arith.addf %129, %131 : vector<2x8xf32>
    %133 = vector.extract_strided_slice %132 {offsets = [0, 0], sizes = [2, 1], strides = [1, 1]} : vector<2x8xf32> to vector<2x1xf32>
    %cst_90 = arith.constant 0.000000e+00 : f32
    %134 = vector.broadcast %cst_90 : f32 to vector<2x1xf32>
    %135 = arith.subf %134, %133 : vector<2x1xf32>
    %136 = math.exp %135 : vector<2x1xf32>
    %cst_91 = arith.constant 1.000000e+00 : f32
    %137 = vector.broadcast %cst_91 : f32 to vector<2x1xf32>
    %138 = arith.addf %137, %136 : vector<2x1xf32>
    %139 = tpu.reciprocal %138 {approx = true} : vector<2x1xf32> -> vector<2x1xf32>
    %c0_92 = arith.constant 0 : index
    %c0_93 = arith.constant 0 : index
    %140 = vector.load %arg21[%c0_92, %c0_93] : memref<2x1xf32, #tpu.memory_space<vmem>>, vector<2x1xf32>
    tpu.vector_store %arg21[%c0_92, %c0_93], %139 {strides = array<i32>} : memref<2x1xf32, #tpu.memory_space<vmem>>, vector<2x1xf32>,
    %141 = vector.extract_strided_slice %132 {offsets = [0, 1], sizes = [2, 4], strides = [1, 1]} : vector<2x8xf32> to vector<2x4xf32>
    %cst_94 = arith.constant dense<0xFF800000> : vector<2xf32>
    %142 = vector.multi_reduction <maximumf>, %141, %cst_94 [1] : vector<2x4xf32> to vector<2xf32>
    %143 = vector.shape_cast %142 : vector<2xf32> to vector<2x1xf32>
    %144 = vector.broadcast %143 : vector<2x1xf32> to vector<2x4xf32>
    %145 = arith.subf %141, %144 : vector<2x4xf32>
    %146 = math.exp %145 : vector<2x4xf32>
    %cst_95 = arith.constant dense<0.000000e+00> : vector<2xf32>
    %147 = vector.multi_reduction <add>, %146, %cst_95 [1] : vector<2x4xf32> to vector<2xf32>
    %148 = vector.shape_cast %147 : vector<2xf32> to vector<2x1xf32>
    %149 = tpu.reciprocal %148 {approx = true} : vector<2x1xf32> -> vector<2x1xf32>
    %150 = vector.broadcast %149 : vector<2x1xf32> to vector<2x4xf32>
    %151 = arith.mulf %146, %150 : vector<2x4xf32>
    %c0_96 = arith.constant 0 : index
    %c0_97 = arith.constant 0 : index
    %152 = vector.load %arg22[%c0_96, %c0_97] : memref<2x4xf32, #tpu.memory_space<vmem>>, vector<2x4xf32>
    tpu.vector_store %arg22[%c0_96, %c0_97], %151 {strides = array<i32>} : memref<2x4xf32, #tpu.memory_space<vmem>>, vector<2x4xf32>,
    return
  }
}

</mosaic_0001>

<llo_original>
// kernel: discriminator_forward.1
$region0: #{discriminator_forward.1}
  #allocation0 [shape = 'u32[]', space=smem, size = 0x4, offset = 0x4, fixed_abs, tag = 'smem constant byte address 0x4 - core index']
  #allocation1 [shape = 'u32[144,128]{1,0:T(1,128)}', space=vmem, size = 0x12000, scoped, tag = 'internal scratch']
  %s0 = inlined_call_operand.vmem [shape: f32[2,256], index: 0, kind: input, shape index: {}]
  %s1 = inlined_call_operand.vmem [shape: bf16[256,1024], index: 1, kind: input, shape index: {}]
  %s2 = inlined_call_operand.vmem [shape: f32[1,1024], index: 2, kind: input, shape index: {}]
  %s3 = inlined_call_operand.hbm [shape: bf16[1024,512], index: 3, kind: input, shape index: {}]
  %s4 = inlined_call_operand.vmem [shape: f32[1,512], index: 4, kind: input, shape index: {}]
  %s5 = inlined_call_operand.vmem [shape: f32[512,32], index: 5, kind: input, shape index: {}]
  %s6 = inlined_call_operand.hbm [shape: f32[32,512], index: 6, kind: input, shape index: {}]
  %s7 = inlined_call_operand.vmem [shape: f32[1,32], index: 7, kind: input, shape index: {}]
  %s8 = inlined_call_operand.vmem [shape: f32[1,32], index: 8, kind: input, shape index: {}]
  %s9 = inlined_call_operand.hbm [shape: bf16[512,256], index: 9, kind: input, shape index: {}]
  %s10 = inlined_call_operand.vmem [shape: f32[1,256], index: 10, kind: input, shape index: {}]
  %s11 = inlined_call_operand.vmem [shape: f32[256,64], index: 11, kind: input, shape index: {}]
  %s12 = inlined_call_operand.hbm [shape: f32[64,256], index: 12, kind: input, shape index: {}]
  %s13 = inlined_call_operand.vmem [shape: f32[1,64], index: 13, kind: input, shape index: {}]
  %s14 = inlined_call_operand.vmem [shape: f32[1,64], index: 14, kind: input, shape index: {}]
  %s15 = inlined_call_operand.hbm [shape: bf16[256,128], index: 15, kind: input, shape index: {}]
  %s16 = inlined_call_operand.vmem [shape: f32[1,128], index: 16, kind: input, shape index: {}]
  %s17 = inlined_call_operand.vmem [shape: f32[1,128], index: 17, kind: input, shape index: {}]
  %s18 = inlined_call_operand.vmem [shape: f32[1,128], index: 18, kind: input, shape index: {}]
  %s19 = inlined_call_operand.vmem [shape: f32[128,8], index: 19, kind: input, shape index: {}]
  %s20 = inlined_call_operand.vmem [shape: f32[1,8], index: 20, kind: input, shape index: {}]
  %s21 = inlined_call_operand.vmem [shape: f32[2,1], index: 21, kind: output, shape index: {0}]
  %s22 = inlined_call_operand.hbm [shape: f32[2,4], index: 22, kind: output, shape index: {1}]
  %23 = xla_tuple %s21, %s22
  %s24 = sld [smem:[#allocation0]]
  $region122: #{discriminator_forward.1} parent=0
    _
  %s26 = ssub.s32 1, %s24
  %s27 = scalar_select 0, %s26, %s24
  $region1: #{discriminator_forward.1} parent=0
    #allocation2 [shape = 'u8[1048576]{0}', space=vmem, size = 0x100000, scoped, tag = 'input window, operand 3, single buffered']
    #allocation3 [shape = 's32[1]{0}', space=sflag, size = 0x4, scoped, tag = 'scoped memory for discriminator_forward.1']
    #allocation4 [shape = 's32[1]{0}', space=sflag, size = 0x4, scoped, tag = 'scoped memory for discriminator_forward.1']
    #allocation5 [shape = 'u8[65536]{0}', space=vmem, size = 0x10000, scoped, tag = 'input window, operand 6, single buffered']
    #allocation6 [shape = 's32[1]{0}', space=sflag, size = 0x4, scoped, tag = 'scoped memory for discriminator_forward.1']
    #allocation7 [shape = 'u8[262144]{0}', space=vmem, size = 0x40000, scoped, tag = 'input window, operand 9, single buffered']
    #allocation8 [shape = 'u8[65536]{0}', space=vmem, size = 0x10000, scoped, tag = 'input window, operand 12, single buffered']
    #allocation9 [shape = 's32[1]{0}', space=sflag, size = 0x4, scoped, tag = 'scoped memory for discriminator_forward.1']
    #allocation10 [shape = 'u8[65536]{0}', space=vmem, size = 0x10000, scoped, tag = 'input window, operand 15, single buffered']
    #allocation11 [shape = 'u8[1024]{0}', space=vmem, size = 0x400, scoped, tag = 'output window, operand 1, single buffered']
    %28 = vsyncpa [#allocation3], 0
    %29 = vsyncpa [#allocation6], 0
    %30 = vsyncpa [#allocation9], 0
    %31 = vsyncpa [#allocation4], 0
    // Predicated region
    $region2: #{discriminator_forward.1} parent=1 // pred_check
      _
    $region3: #{discriminator_forward.1} parent=1 // pred_check_branch
      %33 = sbr.rel (0) target = $region5
    $region4: #{discriminator_forward.1} parent=1 // pred_region
      _
    $region5: #{discriminator_forward.1} parent=1 // pred_fallthru
      _
    // Predicated region
    $region6: #{discriminator_forward.1} parent=1 // pred_check
      _
    $region7: #{discriminator_forward.1} parent=1 // pred_check_branch
      %35 = sbr.rel (0) target = $region9
    $region8: #{discriminator_forward.1} parent=1 // pred_region
      _
    $region9: #{discriminator_forward.1} parent=1 // pred_fallthru
      _
    // Predicated region
    $region10: #{discriminator_forward.1} parent=1 // pred_check
      _
    $region11: #{discriminator_forward.1} parent=1 // pred_check_branch
      %37 = sbr.rel (0) target = $region13
    $region12: #{discriminator_forward.1} parent=1 // pred_region
      _
    $region13: #{discriminator_forward.1} parent=1 // pred_fallthru
      _
    // Predicated region
    $region14: #{discriminator_forward.1} parent=1 // pred_check
      _
    $region15: #{discriminator_forward.1} parent=1 // pred_check_branch
      %39 = sbr.rel (0) target = $region17
    $region16: #{discriminator_forward.1} parent=1 // pred_region
      %s41 = ssub.s32 32768, 32768
      %42 = vsyncadd [#allocation3], %s41
      %s43 = sshll.u32 [#allocation2], 4
      %s44 = int_to_ptr.vmem [resolvable:$true] %s43
      %49 = dma.hbm_to_vmem [thread:$0]  %s3, 32768, %s44, [#allocation3], 256, 256, 16
    $region17: #{discriminator_forward.1} parent=1 // pred_fallthru
      _
    // Predicated region
    $region18: #{discriminator_forward.1} parent=1 // pred_check
      _
    $region19: #{discriminator_forward.1} parent=1 // pred_check_branch
      %51 = sbr.rel (0) target = $region21
    $region20: #{discriminator_forward.1} parent=1 // pred_region
      _
    $region21: #{discriminator_forward.1} parent=1 // pred_fallthru
      _
    // Predicated region
    $region22: #{discriminator_forward.1} parent=1 // pred_check
      _
    $region23: #{discriminator_forward.1} parent=1 // pred_check_branch
      %53 = sbr.rel (0) target = $region25
    $region24: #{discriminator_forward.1} parent=1 // pred_region
      _
    $region25: #{discriminator_forward.1} parent=1 // pred_fallthru
      _
    // Predicated region
    $region26: #{discriminator_forward.1} parent=1 // pred_check
      _
    $region27: #{discriminator_forward.1} parent=1 // pred_check_branch
      %55 = sbr.rel (0) target = $region29
    $region28: #{discriminator_forward.1} parent=1 // pred_region
      %s57 = ssub.s32 2048, 2048
      %58 = vsyncadd [#allocation6], %s57
      %s59 = sshll.u32 [#allocation5], 4
      %s60 = int_to_ptr.vmem [resolvable:$true] %s59
      %65 = dma.hbm_to_vmem [thread:$0]  %s6, 2048, %s60, [#allocation6], 512, 512, 32
    $region29: #{discriminator_forward.1} parent=1 // pred_fallthru
      _
    // Predicated region
    $region30: #{discriminator_forward.1} parent=1 // pred_check
      _
    $region31: #{discriminator_forward.1} parent=1 // pred_check_branch
      %67 = sbr.rel (0) target = $region33
    $region32: #{discriminator_forward.1} parent=1 // pred_region
      _
    $region33: #{discriminator_forward.1} parent=1 // pred_fallthru
      _
    // Predicated region
    $region34: #{discriminator_forward.1} parent=1 // pred_check
      _
    $region35: #{discriminator_forward.1} parent=1 // pred_check_branch
      %69 = sbr.rel (0) target = $region37
    $region36: #{discriminator_forward.1} parent=1 // pred_region
      _
    $region37: #{discriminator_forward.1} parent=1 // pred_fallthru
      _
    // Predicated region
    $region38: #{discriminator_forward.1} parent=1 // pred_check
      _
    $region39: #{discriminator_forward.1} parent=1 // pred_check_branch
      %71 = sbr.rel (0) target = $region41
    $region40: #{discriminator_forward.1} parent=1 // pred_region
      %s73 = ssub.s32 8192, 8192
      %74 = vsyncadd [#allocation6], %s73
      %s75 = sshll.u32 [#allocation7], 4
      %s76 = int_to_ptr.vmem [resolvable:$true] %s75
      %81 = dma.hbm_to_vmem [thread:$0]  %s9, 8192, %s76, [#allocation6], 128, 128, 8
    $region41: #{discriminator_forward.1} parent=1 // pred_fallthru
      _
    // Predicated region
    $region42: #{discriminator_forward.1} parent=1 // pred_check
      _
    $region43: #{discriminator_forward.1} parent=1 // pred_check_branch
      %83 = sbr.rel (0) target = $region45
    $region44: #{discriminator_forward.1} parent=1 // pred_region
      _
    $region45: #{discriminator_forward.1} parent=1 // pred_fallthru
      _
    // Predicated region
    $region46: #{discriminator_forward.1} parent=1 // pred_check
      _
    $region47: #{discriminator_forward.1} parent=1 // pred_check_branch
      %85 = sbr.rel (0) target = $region49
    $region48: #{discriminator_forward.1} parent=1 // pred_region
      _
    $region49: #{discriminator_forward.1} parent=1 // pred_fallthru
      _
    // Predicated region
    $region50: #{discriminator_forward.1} parent=1 // pred_check
      _
    $region51: #{discriminator_forward.1} parent=1 // pred_check_branch
      %87 = sbr.rel (0) target = $region53
    $region52: #{discriminator_forward.1} parent=1 // pred_region
      %s89 = ssub.s32 2048, 2048
      %90 = vsyncadd [#allocation9], %s89
      %s91 = sshll.u32 [#allocation8], 4
      %s92 = int_to_ptr.vmem [resolvable:$true] %s91
      %97 = dma.hbm_to_vmem [thread:$0]  %s12, 2048, %s92, [#allocation9], 256, 256, 16
    $region53: #{discriminator_forward.1} parent=1 // pred_fallthru
      _
    // Predicated region
    $region54: #{discriminator_forward.1} parent=1 // pred_check
      _
    $region55: #{discriminator_forward.1} parent=1 // pred_check_branch
      %99 = sbr.rel (0) target = $region57
    $region56: #{discriminator_forward.1} parent=1 // pred_region
      _
    $region57: #{discriminator_forward.1} parent=1 // pred_fallthru
      _
    // Predicated region
    $region58: #{discriminator_forward.1} parent=1 // pred_check
      _
    $region59: #{discriminator_forward.1} parent=1 // pred_check_branch
      %101 = sbr.rel (0) target = $region61
    $region60: #{discriminator_forward.1} parent=1 // pred_region
      _
    $region61: #{discriminator_forward.1} parent=1 // pred_fallthru
      _
    // Predicated region
    $region62: #{discriminator_forward.1} parent=1 // pred_check
      _
    $region63: #{discriminator_forward.1} parent=1 // pred_check_branch
      %103 = sbr.rel (0) target = $region65
    $region64: #{discriminator_forward.1} parent=1 // pred_region
      %s105 = ssub.s32 2048, 2048
      %106 = vsyncadd [#allocation9], %s105
      %s107 = sshll.u32 [#allocation10], 4
      %s108 = int_to_ptr.vmem [resolvable:$true] %s107
      %113 = dma.hbm_to_vmem [thread:$0]  %s15, 2048, %s108, [#allocation9], 64, 64, 4
    $region65: #{discriminator_forward.1} parent=1 // pred_fallthru
      _
    // Predicated region
    $region66: #{discriminator_forward.1} parent=1 // pred_check
      _
    $region67: #{discriminator_forward.1} parent=1 // pred_check_branch
      %115 = sbr.rel (0) target = $region69
    $region68: #{discriminator_forward.1} parent=1 // pred_region
      _
    $region69: #{discriminator_forward.1} parent=1 // pred_fallthru
      _
    // Predicated region
    $region70: #{discriminator_forward.1} parent=1 // pred_check
      _
    $region71: #{discriminator_forward.1} parent=1 // pred_check_branch
      %117 = sbr.rel (0) target = $region73
    $region72: #{discriminator_forward.1} parent=1 // pred_region
      _
    $region73: #{discriminator_forward.1} parent=1 // pred_fallthru
      _
    // Predicated region
    $region74: #{discriminator_forward.1} parent=1 // pred_check
      _
    $region75: #{discriminator_forward.1} parent=1 // pred_check_branch
      %119 = sbr.rel (0) target = $region77
    $region76: #{discriminator_forward.1} parent=1 // pred_region
      _
    $region77: #{discriminator_forward.1} parent=1 // pred_fallthru
      _
    // Predicated region
    $region78: #{discriminator_forward.1} parent=1 // pred_check
      _
    $region79: #{discriminator_forward.1} parent=1 // pred_check_branch
      %121 = sbr.rel (0) target = $region81
    $region80: #{discriminator_forward.1} parent=1 // pred_region
      _
    $region81: #{discriminator_forward.1} parent=1 // pred_fallthru
      _
    // Predicated region
    $region82: #{discriminator_forward.1} parent=1 // pred_check
      _
    $region83: #{discriminator_forward.1} parent=1 // pred_check_branch
      %123 = sbr.rel (0) target = $region85
    $region84: #{discriminator_forward.1} parent=1 // pred_region
      _
    $region85: #{discriminator_forward.1} parent=1 // pred_fallthru
      _
    // Predicated region
    $region86: #{discriminator_forward.1} parent=1 // pred_check
      _
    $region87: #{discriminator_forward.1} parent=1 // pred_check_branch
      %125 = sbr.rel (0) target = $region89
    $region88: #{discriminator_forward.1} parent=1 // pred_region
      %126 = dma.done [#allocation3], 32768
    $region89: #{discriminator_forward.1} parent=1 // pred_fallthru
      _
    // Predicated region
    $region90: #{discriminator_forward.1} parent=1 // pred_check
      _
    $region91: #{discriminator_forward.1} parent=1 // pred_check_branch
      %128 = sbr.rel (0) target = $region93
    $region92: #{discriminator_forward.1} parent=1 // pred_region
      %129 = dma.done [#allocation6], 2048
    $region93: #{discriminator_forward.1} parent=1 // pred_fallthru
      _
    // Predicated region
    $region94: #{discriminator_forward.1} parent=1 // pred_check
      _
    $region95: #{discriminator_forward.1} parent=1 // pred_check_branch
      %131 = sbr.rel (0) target = $region97
    $region96: #{discriminator_forward.1} parent=1 // pred_region
      %132 = dma.done [#allocation6], 8192
    $region97: #{discriminator_forward.1} parent=1 // pred_fallthru
      _
    // Predicated region
    $region98: #{discriminator_forward.1} parent=1 // pred_check
      _
    $region99: #{discriminator_forward.1} parent=1 // pred_check_branch
      %134 = sbr.rel (0) target = $region101
    $region100: #{discriminator_forward.1} parent=1 // pred_region
      %135 = dma.done [#allocation9], 2048
    $region101: #{discriminator_forward.1} parent=1 // pred_fallthru
      _
    // Predicated region
    $region102: #{discriminator_forward.1} parent=1 // pred_check
      _
    $region103: #{discriminator_forward.1} parent=1 // pred_check_branch
      %137 = sbr.rel (0) target = $region105
    $region104: #{discriminator_forward.1} parent=1 // pred_region
      %138 = dma.done [#allocation9], 2048
    $region105: #{discriminator_forward.1} parent=1 // pred_fallthru
      _
    %v140 = vld [vmem:[%s0] sm:$0xf]
    %v143 = vunpack.c.l.s4 1983009808
    %v144 = vunpack.c.0.s8 %v143
    %v145 = vlaneseq
    %v146 = vshrl.u32 %v145, 7
    %v147 = vsub.s32 %v144, %v146
    %v148 = vrot.slane %v140, %v147
    %v149 = vcombine.high %v148, %v148
    %v152 = vpack.c.bf16 %v148, %v148
    %v153 = vpack.c.bf16 %v149, %v149
    %v154 = vld [vmem:[%s1] sm:$0xff]
    %v155 = vld [vmem:[%s1 + $0x8] sm:$0xff]
    %v156 = vld [vmem:[%s1 + $0x10] sm:$0xff]
    %v157 = vld [vmem:[%s1 + $0x18] sm:$0xff]
    %v158 = vld [vmem:[%s1 + $0x20] sm:$0xff]
    %v159 = vld [vmem:[%s1 + $0x28] sm:$0xff]
    %v160 = vld [vmem:[%s1 + $0x30] sm:$0xff]
    %v161 = vld [vmem:[%s1 + $0x38] sm:$0xff]
    %v162 = vld [vmem:[%s1 + $0x40] sm:$0xff]
    %v163 = vld [vmem:[%s1 + $0x48] sm:$0xff]
    %v164 = vld [vmem:[%s1 + $0x50] sm:$0xff]
    %v165 = vld [vmem:[%s1 + $0x58] sm:$0xff]
    %v166 = vld [vmem:[%s1 + $0x60] sm:$0xff]
    %v167 = vld [vmem:[%s1 + $0x68] sm:$0xff]
    %v168 = vld [vmem:[%s1 + $0x70] sm:$0xff]
    %v169 = vld [vmem:[%s1 + $0x78] sm:$0xff]
    %v170 = vld [vmem:[%s1 + $0x80] sm:$0xff]
    %v171 = vld [vmem:[%s1 + $0x88] sm:$0xff]
    %v172 = vld [vmem:[%s1 + $0x90] sm:$0xff]
    %v173 = vld [vmem:[%s1 + $0x98] sm:$0xff]
    %v174 = vld [vmem:[%s1 + $0xa0] sm:$0xff]
    %v175 = vld [vmem:[%s1 + $0xa8] sm:$0xff]
    %v176 = vld [vmem:[%s1 + $0xb0] sm:$0xff]
    %v177 = vld [vmem:[%s1 + $0xb8] sm:$0xff]
    %v178 = vld [vmem:[%s1 + $0xc0] sm:$0xff]
    %v179 = vld [vmem:[%s1 + $0xc8] sm:$0xff]
    %v180 = vld [vmem:[%s1 + $0xd0] sm:$0xff]
    %v181 = vld [vmem:[%s1 + $0xd8] sm:$0xff]
    %v182 = vld [vmem:[%s1 + $0xe0] sm:$0xff]
    %v183 = vld [vmem:[%s1 + $0xe8] sm:$0xff]
    %v184 = vld [vmem:[%s1 + $0xf0] sm:$0xff]
    %v185 = vld [vmem:[%s1 + $0xf8] sm:$0xff]
    %v186 = vld [vmem:[%s1 + $0x100] sm:$0xff]
    %v187 = vld [vmem:[%s1 + $0x108] sm:$0xff]
    %v188 = vld [vmem:[%s1 + $0x110] sm:$0xff]
    %v189 = vld [vmem:[%s1 + $0x118] sm:$0xff]
    %v190 = vld [vmem:[%s1 + $0x120] sm:$0xff]
    %v191 = vld [vmem:[%s1 + $0x128] sm:$0xff]
    %v192 = vld [vmem:[%s1 + $0x130] sm:$0xff]
    %v193 = vld [vmem:[%s1 + $0x138] sm:$0xff]
    %v194 = vld [vmem:[%s1 + $0x140] sm:$0xff]
    %v195 = vld [vmem:[%s1 + $0x148] sm:$0xff]
    %v196 = vld [vmem:[%s1 + $0x150] sm:$0xff]
    %v197 = vld [vmem:[%s1 + $0x158] sm:$0xff]
    %v198 = vld [vmem:[%s1 + $0x160] sm:$0xff]
    %v199 = vld [vmem:[%s1 + $0x168] sm:$0xff]
    %v200 = vld [vmem:[%s1 + $0x170] sm:$0xff]
    %v201 = vld [vmem:[%s1 + $0x178] sm:$0xff]
    %v202 = vld [vmem:[%s1 + $0x180] sm:$0xff]
    %v203 = vld [vmem:[%s1 + $0x188] sm:$0xff]
    %v204 = vld [vmem:[%s1 + $0x190] sm:$0xff]
    %v205 = vld [vmem:[%s1 + $0x198] sm:$0xff]
    %v206 = vld [vmem:[%s1 + $0x1a0] sm:$0xff]
    %v207 = vld [vmem:[%s1 + $0x1a8] sm:$0xff]
    %v208 = vld [vmem:[%s1 + $0x1b0] sm:$0xff]
    %v209 = vld [vmem:[%s1 + $0x1b8] sm:$0xff]
    %v210 = vld [vmem:[%s1 + $0x1c0] sm:$0xff]
    %v211 = vld [vmem:[%s1 + $0x1c8] sm:$0xff]
    %v212 = vld [vmem:[%s1 + $0x1d0] sm:$0xff]
    %v213 = vld [vmem:[%s1 + $0x1d8] sm:$0xff]
    %v214 = vld [vmem:[%s1 + $0x1e0] sm:$0xff]
    %v215 = vld [vmem:[%s1 + $0x1e8] sm:$0xff]
    %v216 = vld [vmem:[%s1 + $0x1f0] sm:$0xff]
    %v217 = vld [vmem:[%s1 + $0x1f8] sm:$0xff]
    %v218 = vld [vmem:[%s1 + $0x200] sm:$0xff]
    %v219 = vld [vmem:[%s1 + $0x208] sm:$0xff]
    %v220 = vld [vmem:[%s1 + $0x210] sm:$0xff]
    %v221 = vld [vmem:[%s1 + $0x218] sm:$0xff]
    %v222 = vld [vmem:[%s1 + $0x220] sm:$0xff]
    %v223 = vld [vmem:[%s1 + $0x228] sm:$0xff]
    %v224 = vld [vmem:[%s1 + $0x230] sm:$0xff]
    %v225 = vld [vmem:[%s1 + $0x238] sm:$0xff]
    %v226 = vld [vmem:[%s1 + $0x240] sm:$0xff]
    %v227 = vld [vmem:[%s1 + $0x248] sm:$0xff]
    %v228 = vld [vmem:[%s1 + $0x250] sm:$0xff]
    %v229 = vld [vmem:[%s1 + $0x258] sm:$0xff]
    %v230 = vld [vmem:[%s1 + $0x260] sm:$0xff]
    %v231 = vld [vmem:[%s1 + $0x268] sm:$0xff]
    %v232 = vld [vmem:[%s1 + $0x270] sm:$0xff]
    %v233 = vld [vmem:[%s1 + $0x278] sm:$0xff]
    %v234 = vld [vmem:[%s1 + $0x280] sm:$0xff]
    %v235 = vld [vmem:[%s1 + $0x288] sm:$0xff]
    %v236 = vld [vmem:[%s1 + $0x290] sm:$0xff]
    %v237 = vld [vmem:[%s1 + $0x298] sm:$0xff]
    %v238 = vld [vmem:[%s1 + $0x2a0] sm:$0xff]
    %v239 = vld [vmem:[%s1 + $0x2a8] sm:$0xff]
    %v240 = vld [vmem:[%s1 + $0x2b0] sm:$0xff]
    %v241 = vld [vmem:[%s1 + $0x2b8] sm:$0xff]
    %v242 = vld [vmem:[%s1 + $0x2c0] sm:$0xff]
    %v243 = vld [vmem:[%s1 + $0x2c8] sm:$0xff]
    %v244 = vld [vmem:[%s1 + $0x2d0] sm:$0xff]
    %v245 = vld [vmem:[%s1 + $0x2d8] sm:$0xff]
    %v246 = vld [vmem:[%s1 + $0x2e0] sm:$0xff]
    %v247 = vld [vmem:[%s1 + $0x2e8] sm:$0xff]
    %v248 = vld [vmem:[%s1 + $0x2f0] sm:$0xff]
    %v249 = vld [vmem:[%s1 + $0x2f8] sm:$0xff]
    %v250 = vld [vmem:[%s1 + $0x300] sm:$0xff]
    %v251 = vld [vmem:[%s1 + $0x308] sm:$0xff]
    %v252 = vld [vmem:[%s1 + $0x310] sm:$0xff]
    %v253 = vld [vmem:[%s1 + $0x318] sm:$0xff]
    %v254 = vld [vmem:[%s1 + $0x320] sm:$0xff]
    %v255 = vld [vmem:[%s1 + $0x328] sm:$0xff]
    %v256 = vld [vmem:[%s1 + $0x330] sm:$0xff]
    %v257 = vld [vmem:[%s1 + $0x338] sm:$0xff]
    %v258 = vld [vmem:[%s1 + $0x340] sm:$0xff]
    %v259 = vld [vmem:[%s1 + $0x348] sm:$0xff]
    %v260 = vld [vmem:[%s1 + $0x350] sm:$0xff]
    %v261 = vld [vmem:[%s1 + $0x358] sm:$0xff]
    %v262 = vld [vmem:[%s1 + $0x360] sm:$0xff]
    %v263 = vld [vmem:[%s1 + $0x368] sm:$0xff]
    %v264 = vld [vmem:[%s1 + $0x370] sm:$0xff]
    %v265 = vld [vmem:[%s1 + $0x378] sm:$0xff]
    %v266 = vld [vmem:[%s1 + $0x380] sm:$0xff]
    %v267 = vld [vmem:[%s1 + $0x388] sm:$0xff]
    %v268 = vld [vmem:[%s1 + $0x390] sm:$0xff]
    %v269 = vld [vmem:[%s1 + $0x398] sm:$0xff]
    %v270 = vld [vmem:[%s1 + $0x3a0] sm:$0xff]
    %v271 = vld [vmem:[%s1 + $0x3a8] sm:$0xff]
    %v272 = vld [vmem:[%s1 + $0x3b0] sm:$0xff]
    %v273 = vld [vmem:[%s1 + $0x3b8] sm:$0xff]
    %v274 = vld [vmem:[%s1 + $0x3c0] sm:$0xff]
    %v275 = vld [vmem:[%s1 + $0x3c8] sm:$0xff]
    %v276 = vld [vmem:[%s1 + $0x3d0] sm:$0xff]
    %v277 = vld [vmem:[%s1 + $0x3d8] sm:$0xff]
    %v278 = vld [vmem:[%s1 + $0x3e0] sm:$0xff]
    %v279 = vld [vmem:[%s1 + $0x3e8] sm:$0xff]
    %v280 = vld [vmem:[%s1 + $0x3f0] sm:$0xff]
    %v281 = vld [vmem:[%s1 + $0x3f8] sm:$0xff]
    %v282 = vld [vmem:[%s2] sm:$0xff]
    %v284 = vlaneseq
    %v285 = vshrl.u32 %v284, 7
    %v286 = vsub.s32 0, %v285
    %v287 = vrot.slane %v282, %v286
    %v288 = vlaneseq
    %v289 = vshrl.u32 %v288, 7
    %v290 = vsub.s32 1, %v289
    %v291 = vrot.slane %v282, %v290
    %v292 = vlaneseq
    %v293 = vshrl.u32 %v292, 7
    %v294 = vsub.s32 2, %v293
    %v295 = vrot.slane %v282, %v294
    %v296 = vlaneseq
    %v297 = vshrl.u32 %v296, 7
    %v298 = vsub.s32 3, %v297
    %v299 = vrot.slane %v282, %v298
    %v300 = vlaneseq
    %v301 = vshrl.u32 %v300, 7
    %v302 = vsub.s32 4, %v301
    %v303 = vrot.slane %v282, %v302
    %v304 = vlaneseq
    %v305 = vshrl.u32 %v304, 7
    %v306 = vsub.s32 5, %v305
    %v307 = vrot.slane %v282, %v306
    %v308 = vlaneseq
    %v309 = vshrl.u32 %v308, 7
    %v310 = vsub.s32 6, %v309
    %v311 = vrot.slane %v282, %v310
    %v312 = vlaneseq
    %v313 = vshrl.u32 %v312, 7
    %v314 = vsub.s32 7, %v313
    %v315 = vrot.slane %v282, %v314
    %v452 = vunpack.c.l.b16 %v154
    %v453 = vunpack.c.h.b16 %v154
    %v454 = vunpack.c.l.b16 %v155
    %v455 = vunpack.c.h.b16 %v155
    %v456 = vunpack.c.l.b16 %v156
    %v457 = vunpack.c.h.b16 %v156
    %v458 = vunpack.c.l.b16 %v157
    %v459 = vunpack.c.h.b16 %v157
    %v460 = vunpack.c.l.b16 %v158
    %v461 = vunpack.c.h.b16 %v158
    %v462 = vunpack.c.l.b16 %v159
    %v463 = vunpack.c.h.b16 %v159
    %v464 = vunpack.c.l.b16 %v160
    %v465 = vunpack.c.h.b16 %v160
    %v466 = vunpack.c.l.b16 %v161
    %v467 = vunpack.c.h.b16 %v161
    %v468 = vunpack.c.l.b16 %v162
    %v469 = vunpack.c.h.b16 %v162
    %v470 = vunpack.c.l.b16 %v163
    %v471 = vunpack.c.h.b16 %v163
    %v472 = vunpack.c.l.b16 %v164
    %v473 = vunpack.c.h.b16 %v164
    %v474 = vunpack.c.l.b16 %v165
    %v475 = vunpack.c.h.b16 %v165
    %v476 = vunpack.c.l.b16 %v166
    %v477 = vunpack.c.h.b16 %v166
    %v478 = vunpack.c.l.b16 %v167
    %v479 = vunpack.c.h.b16 %v167
    %v480 = vunpack.c.l.b16 %v168
    %v481 = vunpack.c.h.b16 %v168
    %v482 = vunpack.c.l.b16 %v169
    %v483 = vunpack.c.h.b16 %v169
    %v484 = vunpack.c.l.b16 %v170
    %v485 = vunpack.c.h.b16 %v170
    %v486 = vunpack.c.l.b16 %v171
    %v487 = vunpack.c.h.b16 %v171
    %v488 = vunpack.c.l.b16 %v172
    %v489 = vunpack.c.h.b16 %v172
    %v490 = vunpack.c.l.b16 %v173
    %v491 = vunpack.c.h.b16 %v173
    %v492 = vunpack.c.l.b16 %v174
    %v493 = vunpack.c.h.b16 %v174
    %v494 = vunpack.c.l.b16 %v175
    %v495 = vunpack.c.h.b16 %v175
    %v496 = vunpack.c.l.b16 %v176
    %v497 = vunpack.c.h.b16 %v176
    %v498 = vunpack.c.l.b16 %v177
    %v499 = vunpack.c.h.b16 %v177
    %v500 = vunpack.c.l.b16 %v178
    %v501 = vunpack.c.h.b16 %v178
    %v502 = vunpack.c.l.b16 %v179
    %v503 = vunpack.c.h.b16 %v179
    %v504 = vunpack.c.l.b16 %v180
    %v505 = vunpack.c.h.b16 %v180
    %v506 = vunpack.c.l.b16 %v181
    %v507 = vunpack.c.h.b16 %v181
    %v508 = vunpack.c.l.b16 %v182
    %v509 = vunpack.c.h.b16 %v182
    %v510 = vunpack.c.l.b16 %v183
    %v511 = vunpack.c.h.b16 %v183
    %v512 = vunpack.c.l.b16 %v184
    %v513 = vunpack.c.h.b16 %v184
    %v514 = vunpack.c.l.b16 %v185
    %v515 = vunpack.c.h.b16 %v185
    %v516 = vunpack.c.l.b16 %v186
    %v517 = vunpack.c.h.b16 %v186
    %v518 = vunpack.c.l.b16 %v187
    %v519 = vunpack.c.h.b16 %v187
    %v520 = vunpack.c.l.b16 %v188
    %v521 = vunpack.c.h.b16 %v188
    %v522 = vunpack.c.l.b16 %v189
    %v523 = vunpack.c.h.b16 %v189
    %v524 = vunpack.c.l.b16 %v190
    %v525 = vunpack.c.h.b16 %v190
    %v526 = vunpack.c.l.b16 %v191
    %v527 = vunpack.c.h.b16 %v191
    %v528 = vunpack.c.l.b16 %v192
    %v529 = vunpack.c.h.b16 %v192
    %v530 = vunpack.c.l.b16 %v193
    %v531 = vunpack.c.h.b16 %v193
    %v532 = vunpack.c.l.b16 %v194
    %v533 = vunpack.c.h.b16 %v194
    %v534 = vunpack.c.l.b16 %v195
    %v535 = vunpack.c.h.b16 %v195
    %v536 = vunpack.c.l.b16 %v196
    %v537 = vunpack.c.h.b16 %v196
    %v538 = vunpack.c.l.b16 %v197
    %v539 = vunpack.c.h.b16 %v197
    %v540 = vunpack.c.l.b16 %v198
    %v541 = vunpack.c.h.b16 %v198
    %v542 = vunpack.c.l.b16 %v199
    %v543 = vunpack.c.h.b16 %v199
    %v544 = vunpack.c.l.b16 %v200
    %v545 = vunpack.c.h.b16 %v200
    %v546 = vunpack.c.l.b16 %v201
    %v547 = vunpack.c.h.b16 %v201
    %v548 = vunpack.c.l.b16 %v202
    %v549 = vunpack.c.h.b16 %v202
    %v550 = vunpack.c.l.b16 %v203
    %v551 = vunpack.c.h.b16 %v203
    %v552 = vunpack.c.l.b16 %v204
    %v553 = vunpack.c.h.b16 %v204
    %v554 = vunpack.c.l.b16 %v205
    %v555 = vunpack.c.h.b16 %v205
    %v556 = vunpack.c.l.b16 %v206
    %v557 = vunpack.c.h.b16 %v206
    %v558 = vunpack.c.l.b16 %v207
    %v559 = vunpack.c.h.b16 %v207
    %v560 = vunpack.c.l.b16 %v208
    %v561 = vunpack.c.h.b16 %v208
    %v562 = vunpack.c.l.b16 %v209
    %v563 = vunpack.c.h.b16 %v209
    %v564 = vunpack.c.l.b16 %v210
    %v565 = vunpack.c.h.b16 %v210
    %v566 = vunpack.c.l.b16 %v211
    %v567 = vunpack.c.h.b16 %v211
    %v568 = vunpack.c.l.b16 %v212
    %v569 = vunpack.c.h.b16 %v212
    %v570 = vunpack.c.l.b16 %v213
    %v571 = vunpack.c.h.b16 %v213
    %v572 = vunpack.c.l.b16 %v214
    %v573 = vunpack.c.h.b16 %v214
    %v574 = vunpack.c.l.b16 %v215
    %v575 = vunpack.c.h.b16 %v215
    %v576 = vunpack.c.l.b16 %v216
    %v577 = vunpack.c.h.b16 %v216
    %v578 = vunpack.c.l.b16 %v217
    %v579 = vunpack.c.h.b16 %v217
    %v580 = vunpack.c.l.b16 %v218
    %v581 = vunpack.c.h.b16 %v218
    %v582 = vunpack.c.l.b16 %v219
    %v583 = vunpack.c.h.b16 %v219
    %v584 = vunpack.c.l.b16 %v220
    %v585 = vunpack.c.h.b16 %v220
    %v586 = vunpack.c.l.b16 %v221
    %v587 = vunpack.c.h.b16 %v221
    %v588 = vunpack.c.l.b16 %v222
    %v589 = vunpack.c.h.b16 %v222
    %v590 = vunpack.c.l.b16 %v223
    %v591 = vunpack.c.h.b16 %v223
    %v592 = vunpack.c.l.b16 %v224
    %v593 = vunpack.c.h.b16 %v224
    %v594 = vunpack.c.l.b16 %v225
    %v595 = vunpack.c.h.b16 %v225
    %v596 = vunpack.c.l.b16 %v226
    %v597 = vunpack.c.h.b16 %v226
    %v598 = vunpack.c.l.b16 %v227
    %v599 = vunpack.c.h.b16 %v227
    %v600 = vunpack.c.l.b16 %v228
    %v601 = vunpack.c.h.b16 %v228
    %v602 = vunpack.c.l.b16 %v229
    %v603 = vunpack.c.h.b16 %v229
    %v604 = vunpack.c.l.b16 %v230
    %v605 = vunpack.c.h.b16 %v230
    %v606 = vunpack.c.l.b16 %v231
    %v607 = vunpack.c.h.b16 %v231
    %v608 = vunpack.c.l.b16 %v232
    %v609 = vunpack.c.h.b16 %v232
    %v610 = vunpack.c.l.b16 %v233
    %v611 = vunpack.c.h.b16 %v233
    %v612 = vunpack.c.l.b16 %v234
    %v613 = vunpack.c.h.b16 %v234
    %v614 = vunpack.c.l.b16 %v235
    %v615 = vunpack.c.h.b16 %v235
    %v616 = vunpack.c.l.b16 %v236
    %v617 = vunpack.c.h.b16 %v236
    %v618 = vunpack.c.l.b16 %v237
    %v619 = vunpack.c.h.b16 %v237
    %v620 = vunpack.c.l.b16 %v238
    %v621 = vunpack.c.h.b16 %v238
    %v622 = vunpack.c.l.b16 %v239
    %v623 = vunpack.c.h.b16 %v239
    %v624 = vunpack.c.l.b16 %v240
    %v625 = vunpack.c.h.b16 %v240
    %v626 = vunpack.c.l.b16 %v241
    %v627 = vunpack.c.h.b16 %v241
    %v628 = vunpack.c.l.b16 %v242
    %v629 = vunpack.c.h.b16 %v242
    %v630 = vunpack.c.l.b16 %v243
    %v631 = vunpack.c.h.b16 %v243
    %v632 = vunpack.c.l.b16 %v244
    %v633 = vunpack.c.h.b16 %v244
    %v634 = vunpack.c.l.b16 %v245
    %v635 = vunpack.c.h.b16 %v245
    %v636 = vunpack.c.l.b16 %v246
    %v637 = vunpack.c.h.b16 %v246
    %v638 = vunpack.c.l.b16 %v247
    %v639 = vunpack.c.h.b16 %v247
    %v640 = vunpack.c.l.b16 %v248
    %v641 = vunpack.c.h.b16 %v248
    %v642 = vunpack.c.l.b16 %v249
    %v643 = vunpack.c.h.b16 %v249
    %v644 = vunpack.c.l.b16 %v250
    %v645 = vunpack.c.h.b16 %v250
    %v646 = vunpack.c.l.b16 %v251
    %v647 = vunpack.c.h.b16 %v251
    %v648 = vunpack.c.l.b16 %v252
    %v649 = vunpack.c.h.b16 %v252
    %v650 = vunpack.c.l.b16 %v253
    %v651 = vunpack.c.h.b16 %v253
    %v652 = vunpack.c.l.b16 %v254
    %v653 = vunpack.c.h.b16 %v254
    %v654 = vunpack.c.l.b16 %v255
    %v655 = vunpack.c.h.b16 %v255
    %v656 = vunpack.c.l.b16 %v256
    %v657 = vunpack.c.h.b16 %v256
    %v658 = vunpack.c.l.b16 %v257
    %v659 = vunpack.c.h.b16 %v257
    %v660 = vunpack.c.l.b16 %v258
    %v661 = vunpack.c.h.b16 %v258
    %v662 = vunpack.c.l.b16 %v259
    %v663 = vunpack.c.h.b16 %v259
    %v664 = vunpack.c.l.b16 %v260
    %v665 = vunpack.c.h.b16 %v260
    %v666 = vunpack.c.l.b16 %v261
    %v667 = vunpack.c.h.b16 %v261
    %v668 = vunpack.c.l.b16 %v262
    %v669 = vunpack.c.h.b16 %v262
    %v670 = vunpack.c.l.b16 %v263
    %v671 = vunpack.c.h.b16 %v263
    %v672 = vunpack.c.l.b16 %v264
    %v673 = vunpack.c.h.b16 %v264
    %v674 = vunpack.c.l.b16 %v265
    %v675 = vunpack.c.h.b16 %v265
    %v676 = vunpack.c.l.b16 %v266
    %v677 = vunpack.c.h.b16 %v266
    %v678 = vunpack.c.l.b16 %v267
    %v679 = vunpack.c.h.b16 %v267
    %v680 = vunpack.c.l.b16 %v268
    %v681 = vunpack.c.h.b16 %v268
    %v682 = vunpack.c.l.b16 %v269
    %v683 = vunpack.c.h.b16 %v269
    %v684 = vunpack.c.l.b16 %v270
    %v685 = vunpack.c.h.b16 %v270
    %v686 = vunpack.c.l.b16 %v271
    %v687 = vunpack.c.h.b16 %v271
    %v688 = vunpack.c.l.b16 %v272
    %v689 = vunpack.c.h.b16 %v272
    %v690 = vunpack.c.l.b16 %v273
    %v691 = vunpack.c.h.b16 %v273
    %v692 = vunpack.c.l.b16 %v274
    %v693 = vunpack.c.h.b16 %v274
    %v694 = vunpack.c.l.b16 %v275
    %v695 = vunpack.c.h.b16 %v275
    %v696 = vunpack.c.l.b16 %v276
    %v697 = vunpack.c.h.b16 %v276
    %v698 = vunpack.c.l.b16 %v277
    %v699 = vunpack.c.h.b16 %v277
    %v700 = vunpack.c.l.b16 %v278
    %v701 = vunpack.c.h.b16 %v278
    %v702 = vunpack.c.l.b16 %v279
    %v703 = vunpack.c.h.b16 %v279
    %v704 = vunpack.c.l.b16 %v280
    %v705 = vunpack.c.h.b16 %v280
    %v706 = vunpack.c.l.b16 %v281
    %v707 = vunpack.c.h.b16 %v281
    %v708 = vpack.c.b16 %v460, %v452
    %v709 = vpack.c.b16 %v461, %v453
    %v710 = vpack.c.b16 %v462, %v454
    %v711 = vpack.c.b16 %v463, %v455
    %v712 = vpack.c.b16 %v464, %v456
    %v713 = vpack.c.b16 %v465, %v457
    %v714 = vpack.c.b16 %v466, %v458
    %v715 = vpack.c.b16 %v467, %v459
    %v716 = vpack.c.b16 %v476, %v468
    %v717 = vpack.c.b16 %v477, %v469
    %v718 = vpack.c.b16 %v478, %v470
    %v719 = vpack.c.b16 %v479, %v471
    %v720 = vpack.c.b16 %v480, %v472
    %v721 = vpack.c.b16 %v481, %v473
    %v722 = vpack.c.b16 %v482, %v474
    %v723 = vpack.c.b16 %v483, %v475
    %v724 = vpack.c.b16 %v492, %v484
    %v725 = vpack.c.b16 %v493, %v485
    %v726 = vpack.c.b16 %v494, %v486
    %v727 = vpack.c.b16 %v495, %v487
    %v728 = vpack.c.b16 %v496, %v488
    %v729 = vpack.c.b16 %v497, %v489
    %v730 = vpack.c.b16 %v498, %v490
    %v731 = vpack.c.b16 %v499, %v491
    %v732 = vpack.c.b16 %v508, %v500
    %v733 = vpack.c.b16 %v509, %v501
    %v734 = vpack.c.b16 %v510, %v502
    %v735 = vpack.c.b16 %v511, %v503
    %v736 = vpack.c.b16 %v512, %v504
    %v737 = vpack.c.b16 %v513, %v505
    %v738 = vpack.c.b16 %v514, %v506
    %v739 = vpack.c.b16 %v515, %v507
    %v740 = vpack.c.b16 %v524, %v516
    %v741 = vpack.c.b16 %v525, %v517
    %v742 = vpack.c.b16 %v526, %v518
    %v743 = vpack.c.b16 %v527, %v519
    %v744 = vpack.c.b16 %v528, %v520
    %v745 = vpack.c.b16 %v529, %v521
    %v746 = vpack.c.b16 %v530, %v522
    %v747 = vpack.c.b16 %v531, %v523
    %v748 = vpack.c.b16 %v540, %v532
    %v749 = vpack.c.b16 %v541, %v533
    %v750 = vpack.c.b16 %v542, %v534
    %v751 = vpack.c.b16 %v543, %v535
    %v752 = vpack.c.b16 %v544, %v536
    %v753 = vpack.c.b16 %v545, %v537
    %v754 = vpack.c.b16 %v546, %v538
    %v755 = vpack.c.b16 %v547, %v539
    %v756 = vpack.c.b16 %v556, %v548
    %v757 = vpack.c.b16 %v557, %v549
    %v758 = vpack.c.b16 %v558, %v550
    %v759 = vpack.c.b16 %v559, %v551
    %v760 = vpack.c.b16 %v560, %v552
    %v761 = vpack.c.b16 %v561, %v553
    %v762 = vpack.c.b16 %v562, %v554
    %v763 = vpack.c.b16 %v563, %v555
    %v764 = vpack.c.b16 %v572, %v564
    %v765 = vpack.c.b16 %v573, %v565
    %v766 = vpack.c.b16 %v574, %v566
    %v767 = vpack.c.b16 %v575, %v567
    %v768 = vpack.c.b16 %v576, %v568
    %v769 = vpack.c.b16 %v577, %v569
    %v770 = vpack.c.b16 %v578, %v570
    %v771 = vpack.c.b16 %v579, %v571
    %v772 = vpack.c.b16 %v588, %v580
    %v773 = vpack.c.b16 %v589, %v581
    %v774 = vpack.c.b16 %v590, %v582
    %v775 = vpack.c.b16 %v591, %v583
    %v776 = vpack.c.b16 %v592, %v584
    %v777 = vpack.c.b16 %v593, %v585
    %v778 = vpack.c.b16 %v594, %v586
    %v779 = vpack.c.b16 %v595, %v587
    %v780 = vpack.c.b16 %v604, %v596
    %v781 = vpack.c.b16 %v605, %v597
    %v782 = vpack.c.b16 %v606, %v598
    %v783 = vpack.c.b16 %v607, %v599
    %v784 = vpack.c.b16 %v608, %v600
    %v785 = vpack.c.b16 %v609, %v601
    %v786 = vpack.c.b16 %v610, %v602
    %v787 = vpack.c.b16 %v611, %v603
    %v788 = vpack.c.b16 %v620, %v612
    %v789 = vpack.c.b16 %v621, %v613
    %v790 = vpack.c.b16 %v622, %v614
    %v791 = vpack.c.b16 %v623, %v615
    %v792 = vpack.c.b16 %v624, %v616
    %v793 = vpack.c.b16 %v625, %v617
    %v794 = vpack.c.b16 %v626, %v618
    %v795 = vpack.c.b16 %v627, %v619
    %v796 = vpack.c.b16 %v636, %v628
    %v797 = vpack.c.b16 %v637, %v629
    %v798 = vpack.c.b16 %v638, %v630
    %v799 = vpack.c.b16 %v639, %v631
    %v800 = vpack.c.b16 %v640, %v632
    %v801 = vpack.c.b16 %v641, %v633
    %v802 = vpack.c.b16 %v642, %v634
    %v803 = vpack.c.b16 %v643, %v635
    %v804 = vpack.c.b16 %v652, %v644
    %v805 = vpack.c.b16 %v653, %v645
    %v806 = vpack.c.b16 %v654, %v646
    %v807 = vpack.c.b16 %v655, %v647
    %v808 = vpack.c.b16 %v656, %v648
    %v809 = vpack.c.b16 %v657, %v649
    %v810 = vpack.c.b16 %v658, %v650
    %v811 = vpack.c.b16 %v659, %v651
    %v812 = vpack.c.b16 %v668, %v660
    %v813 = vpack.c.b16 %v669, %v661
    %v814 = vpack.c.b16 %v670, %v662
    %v815 = vpack.c.b16 %v671, %v663
    %v816 = vpack.c.b16 %v672, %v664
    %v817 = vpack.c.b16 %v673, %v665
    %v818 = vpack.c.b16 %v674, %v666
    %v819 = vpack.c.b16 %v675, %v667
    %v820 = vpack.c.b16 %v684, %v676
    %v821 = vpack.c.b16 %v685, %v677
    %v822 = vpack.c.b16 %v686, %v678
    %v823 = vpack.c.b16 %v687, %v679
    %v824 = vpack.c.b16 %v688, %v680
    %v825 = vpack.c.b16 %v689, %v681
    %v826 = vpack.c.b16 %v690, %v682
    %v827 = vpack.c.b16 %v691, %v683
    %v828 = vpack.c.b16 %v700, %v692
    %v829 = vpack.c.b16 %v701, %v693
    %v830 = vpack.c.b16 %v702, %v694
    %v831 = vpack.c.b16 %v703, %v695
    %v832 = vpack.c.b16 %v704, %v696
    %v833 = vpack.c.b16 %v705, %v697
    %v834 = vpack.c.b16 %v706, %v698
    %v835 = vpack.c.b16 %v707, %v699
    %964 = vmatprep.subr.bf16.mxu0 %v765
    %965 = vmatpush1.bf16.msra.mxu0 %v764
    %966 = vmatprep.subr.bf16.mxu0 %v757
    %967 = vmatpush1.bf16.msra.mxu0 %v756
    %968 = vmatprep.subr.bf16.mxu0 %v749
    %969 = vmatpush1.bf16.msra.mxu0 %v748
    %970 = vmatprep.subr.bf16.mxu0 %v741
    %971 = vmatpush1.bf16.msra.mxu0 %v740
    %972 = vmatprep.subr.bf16.mxu0 %v733
    %973 = vmatpush1.bf16.msra.mxu0 %v732
    %974 = vmatprep.subr.bf16.mxu0 %v725
    %975 = vmatpush1.bf16.msra.mxu0 %v724
    %976 = vmatprep.subr.bf16.mxu0 %v717
    %977 = vmatpush1.bf16.msra.mxu0 %v716
    %978 = vmatprep.subr.bf16.mxu0 %v709
    %979 = vmatpush1.bf16.msra.mxu0 %v708
    %980 = vmatprep.subr.bf16.mxu0 %v829
    %981 = vmatpush2.bf16.msra.mxu0 %v828
    %982 = vmatprep.subr.bf16.mxu0 %v821
    %983 = vmatpush2.bf16.msra.mxu0 %v820
    %984 = vmatprep.subr.bf16.mxu0 %v813
    %985 = vmatpush2.bf16.msra.mxu0 %v812
    %986 = vmatprep.subr.bf16.mxu0 %v805
    %987 = vmatpush2.bf16.msra.mxu0 %v804
    %988 = vmatprep.subr.bf16.mxu0 %v797
    %989 = vmatpush2.bf16.msra.mxu0 %v796
    %990 = vmatprep.subr.bf16.mxu0 %v789
    %991 = vmatpush2.bf16.msra.mxu0 %v788
    %992 = vmatprep.subr.bf16.mxu0 %v781
    %993 = vmatpush2.bf16.msra.mxu0 %v780
    %994 = vmatprep.subr.bf16.mxu0 %v773
    %995 = vmatpush2.bf16.msra.mxu0 %v772
    %996 = vmatprep.mubr.bf16.mxu0 %v153
    %997 = vmatmul.mubr.bf16.gmra.mxu0 %v152
    %v998 = vpop.f32.mrf.mxu0
    %v999 = vadd.f32 %v287, %v998
    %v1000 = vpop.f32.mrf.mxu0
    %v1001 = vadd.f32 %v291, %v1000
    %v1002 = vpop.f32.mrf.mxu0
    %v1003 = vpop.f32.mrf.mxu0
    %1004 = vdwg.mxu0
    %1005 = vmatprep.subr.bf16.mxu0 %v767
    %1006 = vmatpush1.bf16.msra.mxu0 %v766
    %1007 = vmatprep.subr.bf16.mxu0 %v759
    %1008 = vmatpush1.bf16.msra.mxu0 %v758
    %1009 = vmatprep.subr.bf16.mxu0 %v751
    %1010 = vmatpush1.bf16.msra.mxu0 %v750
    %1011 = vmatprep.subr.bf16.mxu0 %v743
    %1012 = vmatpush1.bf16.msra.mxu0 %v742
    %1013 = vmatprep.subr.bf16.mxu0 %v735
    %1014 = vmatpush1.bf16.msra.mxu0 %v734
    %1015 = vmatprep.subr.bf16.mxu0 %v727
    %1016 = vmatpush1.bf16.msra.mxu0 %v726
    %1017 = vmatprep.subr.bf16.mxu0 %v719
    %1018 = vmatpush1.bf16.msra.mxu0 %v718
    %1019 = vmatprep.subr.bf16.mxu0 %v711
    %1020 = vmatpush1.bf16.msra.mxu0 %v710
    %1021 = vmatprep.subr.bf16.mxu0 %v831
    %1022 = vmatpush2.bf16.msra.mxu0 %v830
    %1023 = vmatprep.subr.bf16.mxu0 %v823
    %1024 = vmatpush2.bf16.msra.mxu0 %v822
    %1025 = vmatprep.subr.bf16.mxu0 %v815
    %1026 = vmatpush2.bf16.msra.mxu0 %v814
    %1027 = vmatprep.subr.bf16.mxu0 %v807
    %1028 = vmatpush2.bf16.msra.mxu0 %v806
    %1029 = vmatprep.subr.bf16.mxu0 %v799
    %1030 = vmatpush2.bf16.msra.mxu0 %v798
    %1031 = vmatprep.subr.bf16.mxu0 %v791
    %1032 = vmatpush2.bf16.msra.mxu0 %v790
    %1033 = vmatprep.subr.bf16.mxu0 %v783
    %1034 = vmatpush2.bf16.msra.mxu0 %v782
    %1035 = vmatprep.subr.bf16.mxu0 %v775
    %1036 = vmatpush2.bf16.msra.mxu0 %v774
    %1037 = vmatprep.mubr.bf16.mxu0 %v153
    %1038 = vmatmul.mubr.bf16.gmra.mxu0 %v152
    %v1039 = vpop.f32.mrf.mxu0
    %v1040 = vadd.f32 %v295, %v1039
    %v1041 = vpop.f32.mrf.mxu0
    %v1042 = vadd.f32 %v299, %v1041
    %v1043 = vpop.f32.mrf.mxu0
    %v1044 = vpop.f32.mrf.mxu0
    %1045 = vdwg.mxu0
    %1046 = vmatprep.subr.bf16.mxu0 %v769
    %1047 = vmatpush1.bf16.msra.mxu0 %v768
    %1048 = vmatprep.subr.bf16.mxu0 %v761
    %1049 = vmatpush1.bf16.msra.mxu0 %v760
    %1050 = vmatprep.subr.bf16.mxu0 %v753
    %1051 = vmatpush1.bf16.msra.mxu0 %v752
    %1052 = vmatprep.subr.bf16.mxu0 %v745
    %1053 = vmatpush1.bf16.msra.mxu0 %v744
    %1054 = vmatprep.subr.bf16.mxu0 %v737
    %1055 = vmatpush1.bf16.msra.mxu0 %v736
    %1056 = vmatprep.subr.bf16.mxu0 %v729
    %1057 = vmatpush1.bf16.msra.mxu0 %v728
    %1058 = vmatprep.subr.bf16.mxu0 %v721
    %1059 = vmatpush1.bf16.msra.mxu0 %v720
    %1060 = vmatprep.subr.bf16.mxu0 %v713
    %1061 = vmatpush1.bf16.msra.mxu0 %v712
    %1062 = vmatprep.subr.bf16.mxu0 %v833
    %1063 = vmatpush2.bf16.msra.mxu0 %v832
    %1064 = vmatprep.subr.bf16.mxu0 %v825
    %1065 = vmatpush2.bf16.msra.mxu0 %v824
    %1066 = vmatprep.subr.bf16.mxu0 %v817
    %1067 = vmatpush2.bf16.msra.mxu0 %v816
    %1068 = vmatprep.subr.bf16.mxu0 %v809
    %1069 = vmatpush2.bf16.msra.mxu0 %v808
    %1070 = vmatprep.subr.bf16.mxu0 %v801
    %1071 = vmatpush2.bf16.msra.mxu0 %v800
    %1072 = vmatprep.subr.bf16.mxu0 %v793
    %1073 = vmatpush2.bf16.msra.mxu0 %v792
    %1074 = vmatprep.subr.bf16.mxu0 %v785
    %1075 = vmatpush2.bf16.msra.mxu0 %v784
    %1076 = vmatprep.subr.bf16.mxu0 %v777
    %1077 = vmatpush2.bf16.msra.mxu0 %v776
    %1078 = vmatprep.mubr.bf16.mxu0 %v153
    %1079 = vmatmul.mubr.bf16.gmra.mxu0 %v152
    %v1080 = vpop.f32.mrf.mxu0
    %v1081 = vadd.f32 %v303, %v1080
    %v1082 = vpop.f32.mrf.mxu0
    %v1083 = vadd.f32 %v307, %v1082
    %v1084 = vpop.f32.mrf.mxu0
    %v1085 = vpop.f32.mrf.mxu0
    %1086 = vdwg.mxu0
    %1087 = vmatprep.subr.bf16.mxu0 %v771
    %1088 = vmatpush1.bf16.msra.mxu0 %v770
    %1089 = vmatprep.subr.bf16.mxu0 %v763
    %1090 = vmatpush1.bf16.msra.mxu0 %v762
    %1091 = vmatprep.subr.bf16.mxu0 %v755
    %1092 = vmatpush1.bf16.msra.mxu0 %v754
    %1093 = vmatprep.subr.bf16.mxu0 %v747
    %1094 = vmatpush1.bf16.msra.mxu0 %v746
    %1095 = vmatprep.subr.bf16.mxu0 %v739
    %1096 = vmatpush1.bf16.msra.mxu0 %v738
    %1097 = vmatprep.subr.bf16.mxu0 %v731
    %1098 = vmatpush1.bf16.msra.mxu0 %v730
    %1099 = vmatprep.subr.bf16.mxu0 %v723
    %1100 = vmatpush1.bf16.msra.mxu0 %v722
    %1101 = vmatprep.subr.bf16.mxu0 %v715
    %1102 = vmatpush1.bf16.msra.mxu0 %v714
    %1103 = vmatprep.subr.bf16.mxu0 %v835
    %1104 = vmatpush2.bf16.msra.mxu0 %v834
    %1105 = vmatprep.subr.bf16.mxu0 %v827
    %1106 = vmatpush2.bf16.msra.mxu0 %v826
    %1107 = vmatprep.subr.bf16.mxu0 %v819
    %1108 = vmatpush2.bf16.msra.mxu0 %v818
    %1109 = vmatprep.subr.bf16.mxu0 %v811
    %1110 = vmatpush2.bf16.msra.mxu0 %v810
    %1111 = vmatprep.subr.bf16.mxu0 %v803
    %1112 = vmatpush2.bf16.msra.mxu0 %v802
    %1113 = vmatprep.subr.bf16.mxu0 %v795
    %1114 = vmatpush2.bf16.msra.mxu0 %v794
    %1115 = vmatprep.subr.bf16.mxu0 %v787
    %1116 = vmatpush2.bf16.msra.mxu0 %v786
    %1117 = vmatprep.subr.bf16.mxu0 %v779
    %1118 = vmatpush2.bf16.msra.mxu0 %v778
    %1119 = vmatprep.mubr.bf16.mxu0 %v153
    %1120 = vmatmul.mubr.bf16.gmra.mxu0 %v152
    %v1121 = vpop.f32.mrf.mxu0
    %v1122 = vadd.f32 %v311, %v1121
    %v1123 = vpop.f32.mrf.mxu0
    %v1124 = vadd.f32 %v315, %v1123
    %v1125 = vpop.f32.mrf.mxu0
    %v1126 = vpop.f32.mrf.mxu0
    %1127 = vdwg.mxu0
    %vm1128 = vcmp.gt.f32.partialorder %v999, 0.0
    %vm1129 = vcmp.gt.f32.partialorder %v1001, 0.0
    %vm1130 = vcmp.gt.f32.partialorder %v1040, 0.0
    %vm1131 = vcmp.gt.f32.partialorder %v1042, 0.0
    %vm1132 = vcmp.gt.f32.partialorder %v1081, 0.0
    %vm1133 = vcmp.gt.f32.partialorder %v1083, 0.0
    %vm1134 = vcmp.gt.f32.partialorder %v1122, 0.0
    %vm1135 = vcmp.gt.f32.partialorder %v1124, 0.0
    %v1136 = vmul.f32 %v999, 0.2
    %v1137 = vmul.f32 %v1001, 0.2
    %v1138 = vmul.f32 %v1040, 0.2
    %v1139 = vmul.f32 %v1042, 0.2
    %v1140 = vmul.f32 %v1081, 0.2
    %v1141 = vmul.f32 %v1083, 0.2
    %v1142 = vmul.f32 %v1122, 0.2
    %v1143 = vmul.f32 %v1124, 0.2
    %v1144 = vsel %vm1128, %v999, %v1136
    %v1145 = vsel %vm1129, %v1001, %v1137
    %v1146 = vsel %vm1130, %v1040, %v1138
    %v1147 = vsel %vm1131, %v1042, %v1139
    %v1148 = vsel %vm1132, %v1081, %v1140
    %v1149 = vsel %vm1133, %v1083, %v1141
    %v1150 = vsel %vm1134, %v1122, %v1142
    %v1151 = vsel %vm1135, %v1124, %v1143
    %v1152 = vpack.c.bf16 %v1144, %v1144
    %v1153 = vpack.c.bf16 %v1145, %v1145
    %v1154 = vpack.c.bf16 %v1146, %v1146
    %v1155 = vpack.c.bf16 %v1147, %v1147
    %v1156 = vpack.c.bf16 %v1148, %v1148
    %v1157 = vpack.c.bf16 %v1149, %v1149
    %v1158 = vpack.c.bf16 %v1150, %v1150
    %v1159 = vpack.c.bf16 %v1151, %v1151
    %v1160 = vld [vmem:[#allocation2] sm:$0xff]
    %v1161 = vld [vmem:[#allocation2 + $0x8] sm:$0xff]
    %v1162 = vld [vmem:[#allocation2 + $0x10] sm:$0xff]
    %v1163 = vld [vmem:[#allocation2 + $0x18] sm:$0xff]
    %v1164 = vld [vmem:[#allocation2 + $0x20] sm:$0xff]
    %v1165 = vld [vmem:[#allocation2 + $0x28] sm:$0xff]
    %v1166 = vld [vmem:[#allocation2 + $0x30] sm:$0xff]
    %v1167 = vld [vmem:[#allocation2 + $0x38] sm:$0xff]
    %v1168 = vld [vmem:[#allocation2 + $0x40] sm:$0xff]
    %v1169 = vld [vmem:[#allocation2 + $0x48] sm:$0xff]
    %v1170 = vld [vmem:[#allocation2 + $0x50] sm:$0xff]
    %v1171 = vld [vmem:[#allocation2 + $0x58] sm:$0xff]
    %v1172 = vld [vmem:[#allocation2 + $0x60] sm:$0xff]
    %v1173 = vld [vmem:[#allocation2 + $0x68] sm:$0xff]
    %v1174 = vld [vmem:[#allocation2 + $0x70] sm:$0xff]
    %v1175 = vld [vmem:[#allocation2 + $0x78] sm:$0xff]
    %v1176 = vld [vmem:[#allocation2 + $0x80] sm:$0xff]
    %v1177 = vld [vmem:[#allocation2 + $0x88] sm:$0xff]
    %v1178 = vld [vmem:[#allocation2 + $0x90] sm:$0xff]
    %v1179 = vld [vmem:[#allocation2 + $0x98] sm:$0xff]
    %v1180 = vld [vmem:[#allocation2 + $0xa0] sm:$0xff]
    %v1181 = vld [vmem:[#allocation2 + $0xa8] sm:$0xff]
    %v1182 = vld [vmem:[#allocation2 + $0xb0] sm:$0xff]
    %v1183 = vld [vmem:[#allocation2 + $0xb8] sm:$0xff]
    %v1184 = vld [vmem:[#allocation2 + $0xc0] sm:$0xff]
    %v1185 = vld [vmem:[#allocation2 + $0xc8] sm:$0xff]
    %v1186 = vld [vmem:[#allocation2 + $0xd0] sm:$0xff]
    %v1187 = vld [vmem:[#allocation2 + $0xd8] sm:$0xff]
    %v1188 = vld [vmem:[#allocation2 + $0xe0] sm:$0xff]
    %v1189 = vld [vmem:[#allocation2 + $0xe8] sm:$0xff]
    %v1190 = vld [vmem:[#allocation2 + $0xf0] sm:$0xff]
    %v1191 = vld [vmem:[#allocation2 + $0xf8] sm:$0xff]
    %v1192 = vld [vmem:[#allocation2 + $0x100] sm:$0xff]
    %v1193 = vld [vmem:[#allocation2 + $0x108] sm:$0xff]
    %v1194 = vld [vmem:[#allocation2 + $0x110] sm:$0xff]
    %v1195 = vld [vmem:[#allocation2 + $0x118] sm:$0xff]
    %v1196 = vld [vmem:[#allocation2 + $0x120] sm:$0xff]
    %v1197 = vld [vmem:[#allocation2 + $0x128] sm:$0xff]
    %v1198 = vld [vmem:[#allocation2 + $0x130] sm:$0xff]
    %v1199 = vld [vmem:[#allocation2 + $0x138] sm:$0xff]
    %v1200 = vld [vmem:[#allocation2 + $0x140] sm:$0xff]
    %v1201 = vld [vmem:[#allocation2 + $0x148] sm:$0xff]
    %v1202 = vld [vmem:[#allocation2 + $0x150] sm:$0xff]
    %v1203 = vld [vmem:[#allocation2 + $0x158] sm:$0xff]
    %v1204 = vld [vmem:[#allocation2 + $0x160] sm:$0xff]
    %v1205 = vld [vmem:[#allocation2 + $0x168] sm:$0xff]
    %v1206 = vld [vmem:[#allocation2 + $0x170] sm:$0xff]
    %v1207 = vld [vmem:[#allocation2 + $0x178] sm:$0xff]
    %v1208 = vld [vmem:[#allocation2 + $0x180] sm:$0xff]
    %v1209 = vld [vmem:[#allocation2 + $0x188] sm:$0xff]
    %v1210 = vld [vmem:[#allocation2 + $0x190] sm:$0xff]
    %v1211 = vld [vmem:[#allocation2 + $0x198] sm:$0xff]
    %v1212 = vld [vmem:[#allocation2 + $0x1a0] sm:$0xff]
    %v1213 = vld [vmem:[#allocation2 + $0x1a8] sm:$0xff]
    %v1214 = vld [vmem:[#allocation2 + $0x1b0] sm:$0xff]
    %v1215 = vld [vmem:[#allocation2 + $0x1b8] sm:$0xff]
    %v1216 = vld [vmem:[#allocation2 + $0x1c0] sm:$0xff]
    %v1217 = vld [vmem:[#allocation2 + $0x1c8] sm:$0xff]
    %v1218 = vld [vmem:[#allocation2 + $0x1d0] sm:$0xff]
    %v1219 = vld [vmem:[#allocation2 + $0x1d8] sm:$0xff]
    %v1220 = vld [vmem:[#allocation2 + $0x1e0] sm:$0xff]
    %v1221 = vld [vmem:[#allocation2 + $0x1e8] sm:$0xff]
    %v1222 = vld [vmem:[#allocation2 + $0x1f0] sm:$0xff]
    %v1223 = vld [vmem:[#allocation2 + $0x1f8] sm:$0xff]
    %v1224 = vld [vmem:[#allocation2 + $0x200] sm:$0xff]
    %v1225 = vld [vmem:[#allocation2 + $0x208] sm:$0xff]
    %v1226 = vld [vmem:[#allocation2 + $0x210] sm:$0xff]
    %v1227 = vld [vmem:[#allocation2 + $0x218] sm:$0xff]
    %v1228 = vld [vmem:[#allocation2 + $0x220] sm:$0xff]
    %v1229 = vld [vmem:[#allocation2 + $0x228] sm:$0xff]
    %v1230 = vld [vmem:[#allocation2 + $0x230] sm:$0xff]
    %v1231 = vld [vmem:[#allocation2 + $0x238] sm:$0xff]
    %v1232 = vld [vmem:[#allocation2 + $0x240] sm:$0xff]
    %v1233 = vld [vmem:[#allocation2 + $0x248] sm:$0xff]
    %v1234 = vld [vmem:[#allocation2 + $0x250] sm:$0xff]
    %v1235 = vld [vmem:[#allocation2 + $0x258] sm:$0xff]
    %v1236 = vld [vmem:[#allocation2 + $0x260] sm:$0xff]
    %v1237 = vld [vmem:[#allocation2 + $0x268] sm:$0xff]
    %v1238 = vld [vmem:[#allocation2 + $0x270] sm:$0xff]
    %v1239 = vld [vmem:[#allocation2 + $0x278] sm:$0xff]
    %v1240 = vld [vmem:[#allocation2 + $0x280] sm:$0xff]
    %v1241 = vld [vmem:[#allocation2 + $0x288] sm:$0xff]
    %v1242 = vld [vmem:[#allocation2 + $0x290] sm:$0xff]
    %v1243 = vld [vmem:[#allocation2 + $0x298] sm:$0xff]
    %v1244 = vld [vmem:[#allocation2 + $0x2a0] sm:$0xff]
    %v1245 = vld [vmem:[#allocation2 + $0x2a8] sm:$0xff]
    %v1246 = vld [vmem:[#allocation2 + $0x2b0] sm:$0xff]
    %v1247 = vld [vmem:[#allocation2 + $0x2b8] sm:$0xff]
    %v1248 = vld [vmem:[#allocation2 + $0x2c0] sm:$0xff]
    %v1249 = vld [vmem:[#allocation2 + $0x2c8] sm:$0xff]
    %v1250 = vld [vmem:[#allocation2 + $0x2d0] sm:$0xff]
    %v1251 = vld [vmem:[#allocation2 + $0x2d8] sm:$0xff]
    %v1252 = vld [vmem:[#allocation2 + $0x2e0] sm:$0xff]
    %v1253 = vld [vmem:[#allocation2 + $0x2e8] sm:$0xff]
    %v1254 = vld [vmem:[#allocation2 + $0x2f0] sm:$0xff]
    %v1255 = vld [vmem:[#allocation2 + $0x2f8] sm:$0xff]
    %v1256 = vld [vmem:[#allocation2 + $0x300] sm:$0xff]
    %v1257 = vld [vmem:[#allocation2 + $0x308] sm:$0xff]
    %v1258 = vld [vmem:[#allocation2 + $0x310] sm:$0xff]
    %v1259 = vld [vmem:[#allocation2 + $0x318] sm:$0xff]
    %v1260 = vld [vmem:[#allocation2 + $0x320] sm:$0xff]
    %v1261 = vld [vmem:[#allocation2 + $0x328] sm:$0xff]
    %v1262 = vld [vmem:[#allocation2 + $0x330] sm:$0xff]
    %v1263 = vld [vmem:[#allocation2 + $0x338] sm:$0xff]
    %v1264 = vld [vmem:[#allocation2 + $0x340] sm:$0xff]
    %v1265 = vld [vmem:[#allocation2 + $0x348] sm:$0xff]
    %v1266 = vld [vmem:[#allocation2 + $0x350] sm:$0xff]
    %v1267 = vld [vmem:[#allocation2 + $0x358] sm:$0xff]
    %v1268 = vld [vmem:[#allocation2 + $0x360] sm:$0xff]
    %v1269 = vld [vmem:[#allocation2 + $0x368] sm:$0xff]
    %v1270 = vld [vmem:[#allocation2 + $0x370] sm:$0xff]
    %v1271 = vld [vmem:[#allocation2 + $0x378] sm:$0xff]
    %v1272 = vld [vmem:[#allocation2 + $0x380] sm:$0xff]
    %v1273 = vld [vmem:[#allocation2 + $0x388] sm:$0xff]
    %v1274 = vld [vmem:[#allocation2 + $0x390] sm:$0xff]
    %v1275 = vld [vmem:[#allocation2 + $0x398] sm:$0xff]
    %v1276 = vld [vmem:[#allocation2 + $0x3a0] sm:$0xff]
    %v1277 = vld [vmem:[#allocation2 + $0x3a8] sm:$0xff]
    %v1278 = vld [vmem:[#allocation2 + $0x3b0] sm:$0xff]
    %v1279 = vld [vmem:[#allocation2 + $0x3b8] sm:$0xff]
    %v1280 = vld [vmem:[#allocation2 + $0x3c0] sm:$0xff]
    %v1281 = vld [vmem:[#allocation2 + $0x3c8] sm:$0xff]
    %v1282 = vld [vmem:[#allocation2 + $0x3d0] sm:$0xff]
    %v1283 = vld [vmem:[#allocation2 + $0x3d8] sm:$0xff]
    %v1284 = vld [vmem:[#allocation2 + $0x3e0] sm:$0xff]
    %v1285 = vld [vmem:[#allocation2 + $0x3e8] sm:$0xff]
    %v1286 = vld [vmem:[#allocation2 + $0x3f0] sm:$0xff]
    %v1287 = vld [vmem:[#allocation2 + $0x3f8] sm:$0xff]
    %v1288 = vld [vmem:[#allocation2 + $0x400] sm:$0xff]
    %v1289 = vld [vmem:[#allocation2 + $0x408] sm:$0xff]
    %v1290 = vld [vmem:[#allocation2 + $0x410] sm:$0xff]
    %v1291 = vld [vmem:[#allocation2 + $0x418] sm:$0xff]
    %v1292 = vld [vmem:[#allocation2 + $0x420] sm:$0xff]
    %v1293 = vld [vmem:[#allocation2 + $0x428] sm:$0xff]
    %v1294 = vld [vmem:[#allocation2 + $0x430] sm:$0xff]
    %v1295 = vld [vmem:[#allocation2 + $0x438] sm:$0xff]
    %v1296 = vld [vmem:[#allocation2 + $0x440] sm:$0xff]
    %v1297 = vld [vmem:[#allocation2 + $0x448] sm:$0xff]
    %v1298 = vld [vmem:[#allocation2 + $0x450] sm:$0xff]
    %v1299 = vld [vmem:[#allocation2 + $0x458] sm:$0xff]
    %v1300 = vld [vmem:[#allocation2 + $0x460] sm:$0xff]
    %v1301 = vld [vmem:[#allocation2 + $0x468] sm:$0xff]
    %v1302 = vld [vmem:[#allocation2 + $0x470] sm:$0xff]
    %v1303 = vld [vmem:[#allocation2 + $0x478] sm:$0xff]
    %v1304 = vld [vmem:[#allocation2 + $0x480] sm:$0xff]
    %v1305 = vld [vmem:[#allocation2 + $0x488] sm:$0xff]
    %v1306 = vld [vmem:[#allocation2 + $0x490] sm:$0xff]
    %v1307 = vld [vmem:[#allocation2 + $0x498] sm:$0xff]
    %v1308 = vld [vmem:[#allocation2 + $0x4a0] sm:$0xff]
    %v1309 = vld [vmem:[#allocation2 + $0x4a8] sm:$0xff]
    %v1310 = vld [vmem:[#allocation2 + $0x4b0] sm:$0xff]
    %v1311 = vld [vmem:[#allocation2 + $0x4b8] sm:$0xff]
    %v1312 = vld [vmem:[#allocation2 + $0x4c0] sm:$0xff]
    %v1313 = vld [vmem:[#allocation2 + $0x4c8] sm:$0xff]
    %v1314 = vld [vmem:[#allocation2 + $0x4d0] sm:$0xff]
    %v1315 = vld [vmem:[#allocation2 + $0x4d8] sm:$0xff]
    %v1316 = vld [vmem:[#allocation2 + $0x4e0] sm:$0xff]
    %v1317 = vld [vmem:[#allocation2 + $0x4e8] sm:$0xff]
    %v1318 = vld [vmem:[#allocation2 + $0x4f0] sm:$0xff]
    %v1319 = vld [vmem:[#allocation2 + $0x4f8] sm:$0xff]
    %v1320 = vld [vmem:[#allocation2 + $0x500] sm:$0xff]
    %v1321 = vld [vmem:[#allocation2 + $0x508] sm:$0xff]
    %v1322 = vld [vmem:[#allocation2 + $0x510] sm:$0xff]
    %v1323 = vld [vmem:[#allocation2 + $0x518] sm:$0xff]
    %v1324 = vld [vmem:[#allocation2 + $0x520] sm:$0xff]
    %v1325 = vld [vmem:[#allocation2 + $0x528] sm:$0xff]
    %v1326 = vld [vmem:[#allocation2 + $0x530] sm:$0xff]
    %v1327 = vld [vmem:[#allocation2 + $0x538] sm:$0xff]
    %v1328 = vld [vmem:[#allocation2 + $0x540] sm:$0xff]
    %v1329 = vld [vmem:[#allocation2 + $0x548] sm:$0xff]
    %v1330 = vld [vmem:[#allocation2 + $0x550] sm:$0xff]
    %v1331 = vld [vmem:[#allocation2 + $0x558] sm:$0xff]
    %v1332 = vld [vmem:[#allocation2 + $0x560] sm:$0xff]
    %v1333 = vld [vmem:[#allocation2 + $0x568] sm:$0xff]
    %v1334 = vld [vmem:[#allocation2 + $0x570] sm:$0xff]
    %v1335 = vld [vmem:[#allocation2 + $0x578] sm:$0xff]
    %v1336 = vld [vmem:[#allocation2 + $0x580] sm:$0xff]
    %v1337 = vld [vmem:[#allocation2 + $0x588] sm:$0xff]
    %v1338 = vld [vmem:[#allocation2 + $0x590] sm:$0xff]
    %v1339 = vld [vmem:[#allocation2 + $0x598] sm:$0xff]
    %v1340 = vld [vmem:[#allocation2 + $0x5a0] sm:$0xff]
    %v1341 = vld [vmem:[#allocation2 + $0x5a8] sm:$0xff]
    %v1342 = vld [vmem:[#allocation2 + $0x5b0] sm:$0xff]
    %v1343 = vld [vmem:[#allocation2 + $0x5b8] sm:$0xff]
    %v1344 = vld [vmem:[#allocation2 + $0x5c0] sm:$0xff]
    %v1345 = vld [vmem:[#allocation2 + $0x5c8] sm:$0xff]
    %v1346 = vld [vmem:[#allocation2 + $0x5d0] sm:$0xff]
    %v1347 = vld [vmem:[#allocation2 + $0x5d8] sm:$0xff]
    %v1348 = vld [vmem:[#allocation2 + $0x5e0] sm:$0xff]
    %v1349 = vld [vmem:[#allocation2 + $0x5e8] sm:$0xff]
    %v1350 = vld [vmem:[#allocation2 + $0x5f0] sm:$0xff]
    %v1351 = vld [vmem:[#allocation2 + $0x5f8] sm:$0xff]
    %v1352 = vld [vmem:[#allocation2 + $0x600] sm:$0xff]
    %v1353 = vld [vmem:[#allocation2 + $0x608] sm:$0xff]
    %v1354 = vld [vmem:[#allocation2 + $0x610] sm:$0xff]
    %v1355 = vld [vmem:[#allocation2 + $0x618] sm:$0xff]
    %v1356 = vld [vmem:[#allocation2 + $0x620] sm:$0xff]
    %v1357 = vld [vmem:[#allocation2 + $0x628] sm:$0xff]
    %v1358 = vld [vmem:[#allocation2 + $0x630] sm:$0xff]
    %v1359 = vld [vmem:[#allocation2 + $0x638] sm:$0xff]
    %v1360 = vld [vmem:[#allocation2 + $0x640] sm:$0xff]
    %v1361 = vld [vmem:[#allocation2 + $0x648] sm:$0xff]
    %v1362 = vld [vmem:[#allocation2 + $0x650] sm:$0xff]
    %v1363 = vld [vmem:[#allocation2 + $0x658] sm:$0xff]
    %v1364 = vld [vmem:[#allocation2 + $0x660] sm:$0xff]
    %v1365 = vld [vmem:[#allocation2 + $0x668] sm:$0xff]
    %v1366 = vld [vmem:[#allocation2 + $0x670] sm:$0xff]
    %v1367 = vld [vmem:[#allocation2 + $0x678] sm:$0xff]
    %v1368 = vld [vmem:[#allocation2 + $0x680] sm:$0xff]
    %v1369 = vld [vmem:[#allocation2 + $0x688] sm:$0xff]
    %v1370 = vld [vmem:[#allocation2 + $0x690] sm:$0xff]
    %v1371 = vld [vmem:[#allocation2 + $0x698] sm:$0xff]
    %v1372 = vld [vmem:[#allocation2 + $0x6a0] sm:$0xff]
    %v1373 = vld [vmem:[#allocation2 + $0x6a8] sm:$0xff]
    %v1374 = vld [vmem:[#allocation2 + $0x6b0] sm:$0xff]
    %v1375 = vld [vmem:[#allocation2 + $0x6b8] sm:$0xff]
    %v1376 = vld [vmem:[#allocation2 + $0x6c0] sm:$0xff]
    %v1377 = vld [vmem:[#allocation2 + $0x6c8] sm:$0xff]
    %v1378 = vld [vmem:[#allocation2 + $0x6d0] sm:$0xff]
    %v1379 = vld [vmem:[#allocation2 + $0x6d8] sm:$0xff]
    %v1380 = vld [vmem:[#allocation2 + $0x6e0] sm:$0xff]
    %v1381 = vld [vmem:[#allocation2 + $0x6e8] sm:$0xff]
    %v1382 = vld [vmem:[#allocation2 + $0x6f0] sm:$0xff]
    %v1383 = vld [vmem:[#allocation2 + $0x6f8] sm:$0xff]
    %v1384 = vld [vmem:[#allocation2 + $0x700] sm:$0xff]
    %v1385 = vld [vmem:[#allocation2 + $0x708] sm:$0xff]
    %v1386 = vld [vmem:[#allocation2 + $0x710] sm:$0xff]
    %v1387 = vld [vmem:[#allocation2 + $0x718] sm:$0xff]
    %v1388 = vld [vmem:[#allocation2 + $0x720] sm:$0xff]
    %v1389 = vld [vmem:[#allocation2 + $0x728] sm:$0xff]
    %v1390 = vld [vmem:[#allocation2 + $0x730] sm:$0xff]
    %v1391 = vld [vmem:[#allocation2 + $0x738] sm:$0xff]
    %v1392 = vld [vmem:[#allocation2 + $0x740] sm:$0xff]
    %v1393 = vld [vmem:[#allocation2 + $0x748] sm:$0xff]
    %v1394 = vld [vmem:[#allocation2 + $0x750] sm:$0xff]
    %v1395 = vld [vmem:[#allocation2 + $0x758] sm:$0xff]
    %v1396 = vld [vmem:[#allocation2 + $0x760] sm:$0xff]
    %v1397 = vld [vmem:[#allocation2 + $0x768] sm:$0xff]
    %v1398 = vld [vmem:[#allocation2 + $0x770] sm:$0xff]
    %v1399 = vld [vmem:[#allocation2 + $0x778] sm:$0xff]
    %v1400 = vld [vmem:[#allocation2 + $0x780] sm:$0xff]
    %v1401 = vld [vmem:[#allocation2 + $0x788] sm:$0xff]
    %v1402 = vld [vmem:[#allocation2 + $0x790] sm:$0xff]
    %v1403 = vld [vmem:[#allocation2 + $0x798] sm:$0xff]
    %v1404 = vld [vmem:[#allocation2 + $0x7a0] sm:$0xff]
    %v1405 = vld [vmem:[#allocation2 + $0x7a8] sm:$0xff]
    %v1406 = vld [vmem:[#allocation2 + $0x7b0] sm:$0xff]
    %v1407 = vld [vmem:[#allocation2 + $0x7b8] sm:$0xff]
    %v1408 = vld [vmem:[#allocation2 + $0x7c0] sm:$0xff]
    %v1409 = vld [vmem:[#allocation2 + $0x7c8] sm:$0xff]
    %v1410 = vld [vmem:[#allocation2 + $0x7d0] sm:$0xff]
    %v1411 = vld [vmem:[#allocation2 + $0x7d8] sm:$0xff]
    %v1412 = vld [vmem:[#allocation2 + $0x7e0] sm:$0xff]
    %v1413 = vld [vmem:[#allocation2 + $0x7e8] sm:$0xff]
    %v1414 = vld [vmem:[#allocation2 + $0x7f0] sm:$0xff]
    %v1415 = vld [vmem:[#allocation2 + $0x7f8] sm:$0xff]
    %v1416 = vld [vmem:[%s4] sm:$0xf]
    %v1418 = vlaneseq
    %v1419 = vshrl.u32 %v1418, 7
    %v1420 = vsub.s32 0, %v1419
    %v1421 = vrot.slane %v1416, %v1420
    %v1422 = vlaneseq
    %v1423 = vshrl.u32 %v1422, 7
    %v1424 = vsub.s32 1, %v1423
    %v1425 = vrot.slane %v1416, %v1424
    %v1426 = vlaneseq
    %v1427 = vshrl.u32 %v1426, 7
    %v1428 = vsub.s32 2, %v1427
    %v1429 = vrot.slane %v1416, %v1428
    %v1430 = vlaneseq
    %v1431 = vshrl.u32 %v1430, 7
    %v1432 = vsub.s32 3, %v1431
    %v1433 = vrot.slane %v1416, %v1432
    %v1694 = vunpack.c.l.b16 %v1160
    %v1695 = vunpack.c.h.b16 %v1160
    %v1696 = vunpack.c.l.b16 %v1161
    %v1697 = vunpack.c.h.b16 %v1161
    %v1698 = vunpack.c.l.b16 %v1162
    %v1699 = vunpack.c.h.b16 %v1162
    %v1700 = vunpack.c.l.b16 %v1163
    %v1701 = vunpack.c.h.b16 %v1163
    %v1702 = vunpack.c.l.b16 %v1164
    %v1703 = vunpack.c.h.b16 %v1164
    %v1704 = vunpack.c.l.b16 %v1165
    %v1705 = vunpack.c.h.b16 %v1165
    %v1706 = vunpack.c.l.b16 %v1166
    %v1707 = vunpack.c.h.b16 %v1166
    %v1708 = vunpack.c.l.b16 %v1167
    %v1709 = vunpack.c.h.b16 %v1167
    %v1710 = vunpack.c.l.b16 %v1168
    %v1711 = vunpack.c.h.b16 %v1168
    %v1712 = vunpack.c.l.b16 %v1169
    %v1713 = vunpack.c.h.b16 %v1169
    %v1714 = vunpack.c.l.b16 %v1170
    %v1715 = vunpack.c.h.b16 %v1170
    %v1716 = vunpack.c.l.b16 %v1171
    %v1717 = vunpack.c.h.b16 %v1171
    %v1718 = vunpack.c.l.b16 %v1172
    %v1719 = vunpack.c.h.b16 %v1172
    %v1720 = vunpack.c.l.b16 %v1173
    %v1721 = vunpack.c.h.b16 %v1173
    %v1722 = vunpack.c.l.b16 %v1174
    %v1723 = vunpack.c.h.b16 %v1174
    %v1724 = vunpack.c.l.b16 %v1175
    %v1725 = vunpack.c.h.b16 %v1175
    %v1726 = vunpack.c.l.b16 %v1176
    %v1727 = vunpack.c.h.b16 %v1176
    %v1728 = vunpack.c.l.b16 %v1177
    %v1729 = vunpack.c.h.b16 %v1177
    %v1730 = vunpack.c.l.b16 %v1178
    %v1731 = vunpack.c.h.b16 %v1178
    %v1732 = vunpack.c.l.b16 %v1179
    %v1733 = vunpack.c.h.b16 %v1179
    %v1734 = vunpack.c.l.b16 %v1180
    %v1735 = vunpack.c.h.b16 %v1180
    %v1736 = vunpack.c.l.b16 %v1181
    %v1737 = vunpack.c.h.b16 %v1181
    %v1738 = vunpack.c.l.b16 %v1182
    %v1739 = vunpack.c.h.b16 %v1182
    %v1740 = vunpack.c.l.b16 %v1183
    %v1741 = vunpack.c.h.b16 %v1183
    %v1742 = vunpack.c.l.b16 %v1184
    %v1743 = vunpack.c.h.b16 %v1184
    %v1744 = vunpack.c.l.b16 %v1185
    %v1745 = vunpack.c.h.b16 %v1185
    %v1746 = vunpack.c.l.b16 %v1186
    %v1747 = vunpack.c.h.b16 %v1186
    %v1748 = vunpack.c.l.b16 %v1187
    %v1749 = vunpack.c.h.b16 %v1187
    %v1750 = vunpack.c.l.b16 %v1188
    %v1751 = vunpack.c.h.b16 %v1188
    %v1752 = vunpack.c.l.b16 %v1189
    %v1753 = vunpack.c.h.b16 %v1189
    %v1754 = vunpack.c.l.b16 %v1190
    %v1755 = vunpack.c.h.b16 %v1190
    %v1756 = vunpack.c.l.b16 %v1191
    %v1757 = vunpack.c.h.b16 %v1191
    %v1758 = vunpack.c.l.b16 %v1192
    %v1759 = vunpack.c.h.b16 %v1192
    %v1760 = vunpack.c.l.b16 %v1193
    %v1761 = vunpack.c.h.b16 %v1193
    %v1762 = vunpack.c.l.b16 %v1194
    %v1763 = vunpack.c.h.b16 %v1194
    %v1764 = vunpack.c.l.b16 %v1195
    %v1765 = vunpack.c.h.b16 %v1195
    %v1766 = vunpack.c.l.b16 %v1196
    %v1767 = vunpack.c.h.b16 %v1196
    %v1768 = vunpack.c.l.b16 %v1197
    %v1769 = vunpack.c.h.b16 %v1197
    %v1770 = vunpack.c.l.b16 %v1198
    %v1771 = vunpack.c.h.b16 %v1198
    %v1772 = vunpack.c.l.b16 %v1199
    %v1773 = vunpack.c.h.b16 %v1199
    %v1774 = vunpack.c.l.b16 %v1200
    %v1775 = vunpack.c.h.b16 %v1200
    %v1776 = vunpack.c.l.b16 %v1201
    %v1777 = vunpack.c.h.b16 %v1201
    %v1778 = vunpack.c.l.b16 %v1202
    %v1779 = vunpack.c.h.b16 %v1202
    %v1780 = vunpack.c.l.b16 %v1203
    %v1781 = vunpack.c.h.b16 %v1203
    %v1782 = vunpack.c.l.b16 %v1204
    %v1783 = vunpack.c.h.b16 %v1204
    %v1784 = vunpack.c.l.b16 %v1205
    %v1785 = vunpack.c.h.b16 %v1205
    %v1786 = vunpack.c.l.b16 %v1206
    %v1787 = vunpack.c.h.b16 %v1206
    %v1788 = vunpack.c.l.b16 %v1207
    %v1789 = vunpack.c.h.b16 %v1207
    %v1790 = vunpack.c.l.b16 %v1208
    %v1791 = vunpack.c.h.b16 %v1208
    %v1792 = vunpack.c.l.b16 %v1209
    %v1793 = vunpack.c.h.b16 %v1209
    %v1794 = vunpack.c.l.b16 %v1210
    %v1795 = vunpack.c.h.b16 %v1210
    %v1796 = vunpack.c.l.b16 %v1211
    %v1797 = vunpack.c.h.b16 %v1211
    %v1798 = vunpack.c.l.b16 %v1212
    %v1799 = vunpack.c.h.b16 %v1212
    %v1800 = vunpack.c.l.b16 %v1213
    %v1801 = vunpack.c.h.b16 %v1213
    %v1802 = vunpack.c.l.b16 %v1214
    %v1803 = vunpack.c.h.b16 %v1214
    %v1804 = vunpack.c.l.b16 %v1215
    %v1805 = vunpack.c.h.b16 %v1215
    %v1806 = vunpack.c.l.b16 %v1216
    %v1807 = vunpack.c.h.b16 %v1216
    %v1808 = vunpack.c.l.b16 %v1217
    %v1809 = vunpack.c.h.b16 %v1217
    %v1810 = vunpack.c.l.b16 %v1218
    %v1811 = vunpack.c.h.b16 %v1218
    %v1812 = vunpack.c.l.b16 %v1219
    %v1813 = vunpack.c.h.b16 %v1219
    %v1814 = vunpack.c.l.b16 %v1220
    %v1815 = vunpack.c.h.b16 %v1220
    %v1816 = vunpack.c.l.b16 %v1221
    %v1817 = vunpack.c.h.b16 %v1221
    %v1818 = vunpack.c.l.b16 %v1222
    %v1819 = vunpack.c.h.b16 %v1222
    %v1820 = vunpack.c.l.b16 %v1223
    %v1821 = vunpack.c.h.b16 %v1223
    %v1822 = vunpack.c.l.b16 %v1224
    %v1823 = vunpack.c.h.b16 %v1224
    %v1824 = vunpack.c.l.b16 %v1225
    %v1825 = vunpack.c.h.b16 %v1225
    %v1826 = vunpack.c.l.b16 %v1226
    %v1827 = vunpack.c.h.b16 %v1226
    %v1828 = vunpack.c.l.b16 %v1227
    %v1829 = vunpack.c.h.b16 %v1227
    %v1830 = vunpack.c.l.b16 %v1228
    %v1831 = vunpack.c.h.b16 %v1228
    %v1832 = vunpack.c.l.b16 %v1229
    %v1833 = vunpack.c.h.b16 %v1229
    %v1834 = vunpack.c.l.b16 %v1230
    %v1835 = vunpack.c.h.b16 %v1230
    %v1836 = vunpack.c.l.b16 %v1231
    %v1837 = vunpack.c.h.b16 %v1231
    %v1838 = vunpack.c.l.b16 %v1232
    %v1839 = vunpack.c.h.b16 %v1232
    %v1840 = vunpack.c.l.b16 %v1233
    %v1841 = vunpack.c.h.b16 %v1233
    %v1842 = vunpack.c.l.b16 %v1234
    %v1843 = vunpack.c.h.b16 %v1234
    %v1844 = vunpack.c.l.b16 %v1235
    %v1845 = vunpack.c.h.b16 %v1235
    %v1846 = vunpack.c.l.b16 %v1236
    %v1847 = vunpack.c.h.b16 %v1236
    %v1848 = vunpack.c.l.b16 %v1237
    %v1849 = vunpack.c.h.b16 %v1237
    %v1850 = vunpack.c.l.b16 %v1238
    %v1851 = vunpack.c.h.b16 %v1238
    %v1852 = vunpack.c.l.b16 %v1239
    %v1853 = vunpack.c.h.b16 %v1239
    %v1854 = vunpack.c.l.b16 %v1240
    %v1855 = vunpack.c.h.b16 %v1240
    %v1856 = vunpack.c.l.b16 %v1241
    %v1857 = vunpack.c.h.b16 %v1241
    %v1858 = vunpack.c.l.b16 %v1242
    %v1859 = vunpack.c.h.b16 %v1242
    %v1860 = vunpack.c.l.b16 %v1243
    %v1861 = vunpack.c.h.b16 %v1243
    %v1862 = vunpack.c.l.b16 %v1244
    %v1863 = vunpack.c.h.b16 %v1244
    %v1864 = vunpack.c.l.b16 %v1245
    %v1865 = vunpack.c.h.b16 %v1245
    %v1866 = vunpack.c.l.b16 %v1246
    %v1867 = vunpack.c.h.b16 %v1246
    %v1868 = vunpack.c.l.b16 %v1247
    %v1869 = vunpack.c.h.b16 %v1247
    %v1870 = vunpack.c.l.b16 %v1248
    %v1871 = vunpack.c.h.b16 %v1248
    %v1872 = vunpack.c.l.b16 %v1249
    %v1873 = vunpack.c.h.b16 %v1249
    %v1874 = vunpack.c.l.b16 %v1250
    %v1875 = vunpack.c.h.b16 %v1250
    %v1876 = vunpack.c.l.b16 %v1251
    %v1877 = vunpack.c.h.b16 %v1251
    %v1878 = vunpack.c.l.b16 %v1252
    %v1879 = vunpack.c.h.b16 %v1252
    %v1880 = vunpack.c.l.b16 %v1253
    %v1881 = vunpack.c.h.b16 %v1253
    %v1882 = vunpack.c.l.b16 %v1254
    %v1883 = vunpack.c.h.b16 %v1254
    %v1884 = vunpack.c.l.b16 %v1255
    %v1885 = vunpack.c.h.b16 %v1255
    %v1886 = vunpack.c.l.b16 %v1256
    %v1887 = vunpack.c.h.b16 %v1256
    %v1888 = vunpack.c.l.b16 %v1257
    %v1889 = vunpack.c.h.b16 %v1257
    %v1890 = vunpack.c.l.b16 %v1258
    %v1891 = vunpack.c.h.b16 %v1258
    %v1892 = vunpack.c.l.b16 %v1259
    %v1893 = vunpack.c.h.b16 %v1259
    %v1894 = vunpack.c.l.b16 %v1260
    %v1895 = vunpack.c.h.b16 %v1260
    %v1896 = vunpack.c.l.b16 %v1261
    %v1897 = vunpack.c.h.b16 %v1261
    %v1898 = vunpack.c.l.b16 %v1262
    %v1899 = vunpack.c.h.b16 %v1262
    %v1900 = vunpack.c.l.b16 %v1263
    %v1901 = vunpack.c.h.b16 %v1263
    %v1902 = vunpack.c.l.b16 %v1264
    %v1903 = vunpack.c.h.b16 %v1264
    %v1904 = vunpack.c.l.b16 %v1265
    %v1905 = vunpack.c.h.b16 %v1265
    %v1906 = vunpack.c.l.b16 %v1266
    %v1907 = vunpack.c.h.b16 %v1266
    %v1908 = vunpack.c.l.b16 %v1267
    %v1909 = vunpack.c.h.b16 %v1267
    %v1910 = vunpack.c.l.b16 %v1268
    %v1911 = vunpack.c.h.b16 %v1268
    %v1912 = vunpack.c.l.b16 %v1269
    %v1913 = vunpack.c.h.b16 %v1269
    %v1914 = vunpack.c.l.b16 %v1270
    %v1915 = vunpack.c.h.b16 %v1270
    %v1916 = vunpack.c.l.b16 %v1271
    %v1917 = vunpack.c.h.b16 %v1271
    %v1918 = vunpack.c.l.b16 %v1272
    %v1919 = vunpack.c.h.b16 %v1272
    %v1920 = vunpack.c.l.b16 %v1273
    %v1921 = vunpack.c.h.b16 %v1273
    %v1922 = vunpack.c.l.b16 %v1274
    %v1923 = vunpack.c.h.b16 %v1274
    %v1924 = vunpack.c.l.b16 %v1275
    %v1925 = vunpack.c.h.b16 %v1275
    %v1926 = vunpack.c.l.b16 %v1276
    %v1927 = vunpack.c.h.b16 %v1276
    %v1928 = vunpack.c.l.b16 %v1277
    %v1929 = vunpack.c.h.b16 %v1277
    %v1930 = vunpack.c.l.b16 %v1278
    %v1931 = vunpack.c.h.b16 %v1278
    %v1932 = vunpack.c.l.b16 %v1279
    %v1933 = vunpack.c.h.b16 %v1279
    %v1934 = vunpack.c.l.b16 %v1280
    %v1935 = vunpack.c.h.b16 %v1280
    %v1936 = vunpack.c.l.b16 %v1281
    %v1937 = vunpack.c.h.b16 %v1281
    %v1938 = vunpack.c.l.b16 %v1282
    %v1939 = vunpack.c.h.b16 %v1282
    %v1940 = vunpack.c.l.b16 %v1283
    %v1941 = vunpack.c.h.b16 %v1283
    %v1942 = vunpack.c.l.b16 %v1284
    %v1943 = vunpack.c.h.b16 %v1284
    %v1944 = vunpack.c.l.b16 %v1285
    %v1945 = vunpack.c.h.b16 %v1285
    %v1946 = vunpack.c.l.b16 %v1286
    %v1947 = vunpack.c.h.b16 %v1286
    %v1948 = vunpack.c.l.b16 %v1287
    %v1949 = vunpack.c.h.b16 %v1287
    %v1950 = vunpack.c.l.b16 %v1288
    %v1951 = vunpack.c.h.b16 %v1288
    %v1952 = vunpack.c.l.b16 %v1289
    %v1953 = vunpack.c.h.b16 %v1289
    %v1954 = vunpack.c.l.b16 %v1290
    %v1955 = vunpack.c.h.b16 %v1290
    %v1956 = vunpack.c.l.b16 %v1291
    %v1957 = vunpack.c.h.b16 %v1291
    %v1958 = vunpack.c.l.b16 %v1292
    %v1959 = vunpack.c.h.b16 %v1292
    %v1960 = vunpack.c.l.b16 %v1293
    %v1961 = vunpack.c.h.b16 %v1293
    %v1962 = vunpack.c.l.b16 %v1294
    %v1963 = vunpack.c.h.b16 %v1294
    %v1964 = vunpack.c.l.b16 %v1295
    %v1965 = vunpack.c.h.b16 %v1295
    %v1966 = vunpack.c.l.b16 %v1296
    %v1967 = vunpack.c.h.b16 %v1296
    %v1968 = vunpack.c.l.b16 %v1297
    %v1969 = vunpack.c.h.b16 %v1297
    %v1970 = vunpack.c.l.b16 %v1298
    %v1971 = vunpack.c.h.b16 %v1298
    %v1972 = vunpack.c.l.b16 %v1299
    %v1973 = vunpack.c.h.b16 %v1299
    %v1974 = vunpack.c.l.b16 %v1300
    %v1975 = vunpack.c.h.b16 %v1300
    %v1976 = vunpack.c.l.b16 %v1301
    %v1977 = vunpack.c.h.b16 %v1301
    %v1978 = vunpack.c.l.b16 %v1302
    %v1979 = vunpack.c.h.b16 %v1302
    %v1980 = vunpack.c.l.b16 %v1303
    %v1981 = vunpack.c.h.b16 %v1303
    %v1982 = vunpack.c.l.b16 %v1304
    %v1983 = vunpack.c.h.b16 %v1304
    %v1984 = vunpack.c.l.b16 %v1305
    %v1985 = vunpack.c.h.b16 %v1305
    %v1986 = vunpack.c.l.b16 %v1306
    %v1987 = vunpack.c.h.b16 %v1306
    %v1988 = vunpack.c.l.b16 %v1307
    %v1989 = vunpack.c.h.b16 %v1307
    %v1990 = vunpack.c.l.b16 %v1308
    %v1991 = vunpack.c.h.b16 %v1308
    %v1992 = vunpack.c.l.b16 %v1309
    %v1993 = vunpack.c.h.b16 %v1309
    %v1994 = vunpack.c.l.b16 %v1310
    %v1995 = vunpack.c.h.b16 %v1310
    %v1996 = vunpack.c.l.b16 %v1311
    %v1997 = vunpack.c.h.b16 %v1311
    %v1998 = vunpack.c.l.b16 %v1312
    %v1999 = vunpack.c.h.b16 %v1312
    %v2000 = vunpack.c.l.b16 %v1313
    %v2001 = vunpack.c.h.b16 %v1313
    %v2002 = vunpack.c.l.b16 %v1314
    %v2003 = vunpack.c.h.b16 %v1314
    %v2004 = vunpack.c.l.b16 %v1315
    %v2005 = vunpack.c.h.b16 %v1315
    %v2006 = vunpack.c.l.b16 %v1316
    %v2007 = vunpack.c.h.b16 %v1316
    %v2008 = vunpack.c.l.b16 %v1317
    %v2009 = vunpack.c.h.b16 %v1317
    %v2010 = vunpack.c.l.b16 %v1318
    %v2011 = vunpack.c.h.b16 %v1318
    %v2012 = vunpack.c.l.b16 %v1319
    %v2013 = vunpack.c.h.b16 %v1319
    %v2014 = vunpack.c.l.b16 %v1320
    %v2015 = vunpack.c.h.b16 %v1320
    %v2016 = vunpack.c.l.b16 %v1321
    %v2017 = vunpack.c.h.b16 %v1321
    %v2018 = vunpack.c.l.b16 %v1322
    %v2019 = vunpack.c.h.b16 %v1322
    %v2020 = vunpack.c.l.b16 %v1323
    %v2021 = vunpack.c.h.b16 %v1323
    %v2022 = vunpack.c.l.b16 %v1324
    %v2023 = vunpack.c.h.b16 %v1324
    %v2024 = vunpack.c.l.b16 %v1325
    %v2025 = vunpack.c.h.b16 %v1325
    %v2026 = vunpack.c.l.b16 %v1326
    %v2027 = vunpack.c.h.b16 %v1326
    %v2028 = vunpack.c.l.b16 %v1327
    %v2029 = vunpack.c.h.b16 %v1327
    %v2030 = vunpack.c.l.b16 %v1328
    %v2031 = vunpack.c.h.b16 %v1328
    %v2032 = vunpack.c.l.b16 %v1329
    %v2033 = vunpack.c.h.b16 %v1329
    %v2034 = vunpack.c.l.b16 %v1330
    %v2035 = vunpack.c.h.b16 %v1330
    %v2036 = vunpack.c.l.b16 %v1331
    %v2037 = vunpack.c.h.b16 %v1331
    %v2038 = vunpack.c.l.b16 %v1332
    %v2039 = vunpack.c.h.b16 %v1332
    %v2040 = vunpack.c.l.b16 %v1333
    %v2041 = vunpack.c.h.b16 %v1333
    %v2042 = vunpack.c.l.b16 %v1334
    %v2043 = vunpack.c.h.b16 %v1334
    %v2044 = vunpack.c.l.b16 %v1335
    %v2045 = vunpack.c.h.b16 %v1335
    %v2046 = vunpack.c.l.b16 %v1336
    %v2047 = vunpack.c.h.b16 %v1336
    %v2048 = vunpack.c.l.b16 %v1337
    %v2049 = vunpack.c.h.b16 %v1337
    %v2050 = vunpack.c.l.b16 %v1338
    %v2051 = vunpack.c.h.b16 %v1338
    %v2052 = vunpack.c.l.b16 %v1339
    %v2053 = vunpack.c.h.b16 %v1339
    %v2054 = vunpack.c.l.b16 %v1340
    %v2055 = vunpack.c.h.b16 %v1340
    %v2056 = vunpack.c.l.b16 %v1341
    %v2057 = vunpack.c.h.b16 %v1341
    %v2058 = vunpack.c.l.b16 %v1342
    %v2059 = vunpack.c.h.b16 %v1342
    %v2060 = vunpack.c.l.b16 %v1343
    %v2061 = vunpack.c.h.b16 %v1343
    %v2062 = vunpack.c.l.b16 %v1344
    %v2063 = vunpack.c.h.b16 %v1344
    %v2064 = vunpack.c.l.b16 %v1345
    %v2065 = vunpack.c.h.b16 %v1345
    %v2066 = vunpack.c.l.b16 %v1346
    %v2067 = vunpack.c.h.b16 %v1346
    %v2068 = vunpack.c.l.b16 %v1347
    %v2069 = vunpack.c.h.b16 %v1347
    %v2070 = vunpack.c.l.b16 %v1348
    %v2071 = vunpack.c.h.b16 %v1348
    %v2072 = vunpack.c.l.b16 %v1349
    %v2073 = vunpack.c.h.b16 %v1349
    %v2074 = vunpack.c.l.b16 %v1350
    %v2075 = vunpack.c.h.b16 %v1350
    %v2076 = vunpack.c.l.b16 %v1351
    %v2077 = vunpack.c.h.b16 %v1351
    %v2078 = vunpack.c.l.b16 %v1352
    %v2079 = vunpack.c.h.b16 %v1352
    %v2080 = vunpack.c.l.b16 %v1353
    %v2081 = vunpack.c.h.b16 %v1353
    %v2082 = vunpack.c.l.b16 %v1354
    %v2083 = vunpack.c.h.b16 %v1354
    %v2084 = vunpack.c.l.b16 %v1355
    %v2085 = vunpack.c.h.b16 %v1355
    %v2086 = vunpack.c.l.b16 %v1356
    %v2087 = vunpack.c.h.b16 %v1356
    %v2088 = vunpack.c.l.b16 %v1357
    %v2089 = vunpack.c.h.b16 %v1357
    %v2090 = vunpack.c.l.b16 %v1358
    %v2091 = vunpack.c.h.b16 %v1358
    %v2092 = vunpack.c.l.b16 %v1359
    %v2093 = vunpack.c.h.b16 %v1359
    %v2094 = vunpack.c.l.b16 %v1360
    %v2095 = vunpack.c.h.b16 %v1360
    %v2096 = vunpack.c.l.b16 %v1361
    %v2097 = vunpack.c.h.b16 %v1361
    %v2098 = vunpack.c.l.b16 %v1362
    %v2099 = vunpack.c.h.b16 %v1362
    %v2100 = vunpack.c.l.b16 %v1363
    %v2101 = vunpack.c.h.b16 %v1363
    %v2102 = vunpack.c.l.b16 %v1364
    %v2103 = vunpack.c.h.b16 %v1364
    %v2104 = vunpack.c.l.b16 %v1365
    %v2105 = vunpack.c.h.b16 %v1365
    %v2106 = vunpack.c.l.b16 %v1366
    %v2107 = vunpack.c.h.b16 %v1366
    %v2108 = vunpack.c.l.b16 %v1367
    %v2109 = vunpack.c.h.b16 %v1367
    %v2110 = vunpack.c.l.b16 %v1368
    %v2111 = vunpack.c.h.b16 %v1368
    %v2112 = vunpack.c.l.b16 %v1369
    %v2113 = vunpack.c.h.b16 %v1369
    %v2114 = vunpack.c.l.b16 %v1370
    %v2115 = vunpack.c.h.b16 %v1370
    %v2116 = vunpack.c.l.b16 %v1371
    %v2117 = vunpack.c.h.b16 %v1371
    %v2118 = vunpack.c.l.b16 %v1372
    %v2119 = vunpack.c.h.b16 %v1372
    %v2120 = vunpack.c.l.b16 %v1373
    %v2121 = vunpack.c.h.b16 %v1373
    %v2122 = vunpack.c.l.b16 %v1374
    %v2123 = vunpack.c.h.b16 %v1374
    %v2124 = vunpack.c.l.b16 %v1375
    %v2125 = vunpack.c.h.b16 %v1375
    %v2126 = vunpack.c.l.b16 %v1376
    %v2127 = vunpack.c.h.b16 %v1376
    %v2128 = vunpack.c.l.b16 %v1377
    %v2129 = vunpack.c.h.b16 %v1377
    %v2130 = vunpack.c.l.b16 %v1378
    %v2131 = vunpack.c.h.b16 %v1378
    %v2132 = vunpack.c.l.b16 %v1379
    %v2133 = vunpack.c.h.b16 %v1379
    %v2134 = vunpack.c.l.b16 %v1380
    %v2135 = vunpack.c.h.b16 %v1380
    %v2136 = vunpack.c.l.b16 %v1381
    %v2137 = vunpack.c.h.b16 %v1381
    %v2138 = vunpack.c.l.b16 %v1382
    %v2139 = vunpack.c.h.b16 %v1382
    %v2140 = vunpack.c.l.b16 %v1383
    %v2141 = vunpack.c.h.b16 %v1383
    %v2142 = vunpack.c.l.b16 %v1384
    %v2143 = vunpack.c.h.b16 %v1384
    %v2144 = vunpack.c.l.b16 %v1385
    %v2145 = vunpack.c.h.b16 %v1385
    %v2146 = vunpack.c.l.b16 %v1386
    %v2147 = vunpack.c.h.b16 %v1386
    %v2148 = vunpack.c.l.b16 %v1387
    %v2149 = vunpack.c.h.b16 %v1387
    %v2150 = vunpack.c.l.b16 %v1388
    %v2151 = vunpack.c.h.b16 %v1388
    %v2152 = vunpack.c.l.b16 %v1389
    %v2153 = vunpack.c.h.b16 %v1389
    %v2154 = vunpack.c.l.b16 %v1390
    %v2155 = vunpack.c.h.b16 %v1390
    %v2156 = vunpack.c.l.b16 %v1391
    %v2157 = vunpack.c.h.b16 %v1391
    %v2158 = vunpack.c.l.b16 %v1392
    %v2159 = vunpack.c.h.b16 %v1392
    %v2160 = vunpack.c.l.b16 %v1393
    %v2161 = vunpack.c.h.b16 %v1393
    %v2162 = vunpack.c.l.b16 %v1394
    %v2163 = vunpack.c.h.b16 %v1394
    %v2164 = vunpack.c.l.b16 %v1395
    %v2165 = vunpack.c.h.b16 %v1395
    %v2166 = vunpack.c.l.b16 %v1396
    %v2167 = vunpack.c.h.b16 %v1396
    %v2168 = vunpack.c.l.b16 %v1397
    %v2169 = vunpack.c.h.b16 %v1397
    %v2170 = vunpack.c.l.b16 %v1398
    %v2171 = vunpack.c.h.b16 %v1398
    %v2172 = vunpack.c.l.b16 %v1399
    %v2173 = vunpack.c.h.b16 %v1399
    %v2174 = vunpack.c.l.b16 %v1400
    %v2175 = vunpack.c.h.b16 %v1400
    %v2176 = vunpack.c.l.b16 %v1401
    %v2177 = vunpack.c.h.b16 %v1401
    %v2178 = vunpack.c.l.b16 %v1402
    %v2179 = vunpack.c.h.b16 %v1402
    %v2180 = vunpack.c.l.b16 %v1403
    %v2181 = vunpack.c.h.b16 %v1403
    %v2182 = vunpack.c.l.b16 %v1404
    %v2183 = vunpack.c.h.b16 %v1404
    %v2184 = vunpack.c.l.b16 %v1405
    %v2185 = vunpack.c.h.b16 %v1405
    %v2186 = vunpack.c.l.b16 %v1406
    %v2187 = vunpack.c.h.b16 %v1406
    %v2188 = vunpack.c.l.b16 %v1407
    %v2189 = vunpack.c.h.b16 %v1407
    %v2190 = vunpack.c.l.b16 %v1408
    %v2191 = vunpack.c.h.b16 %v1408
    %v2192 = vunpack.c.l.b16 %v1409
    %v2193 = vunpack.c.h.b16 %v1409
    %v2194 = vunpack.c.l.b16 %v1410
    %v2195 = vunpack.c.h.b16 %v1410
    %v2196 = vunpack.c.l.b16 %v1411
    %v2197 = vunpack.c.h.b16 %v1411
    %v2198 = vunpack.c.l.b16 %v1412
    %v2199 = vunpack.c.h.b16 %v1412
    %v2200 = vunpack.c.l.b16 %v1413
    %v2201 = vunpack.c.h.b16 %v1413
    %v2202 = vunpack.c.l.b16 %v1414
    %v2203 = vunpack.c.h.b16 %v1414
    %v2204 = vunpack.c.l.b16 %v1415
    %v2205 = vunpack.c.h.b16 %v1415
    %v2206 = vpack.c.b16 %v1698, %v1694
    %v2207 = vpack.c.b16 %v1699, %v1695
    %v2208 = vpack.c.b16 %v1700, %v1696
    %v2209 = vpack.c.b16 %v1701, %v1697
    %v2210 = vpack.c.b16 %v1706, %v1702
    %v2211 = vpack.c.b16 %v1707, %v1703
    %v2212 = vpack.c.b16 %v1708, %v1704
    %v2213 = vpack.c.b16 %v1709, %v1705
    %v2214 = vpack.c.b16 %v1714, %v1710
    %v2215 = vpack.c.b16 %v1715, %v1711
    %v2216 = vpack.c.b16 %v1716, %v1712
    %v2217 = vpack.c.b16 %v1717, %v1713
    %v2218 = vpack.c.b16 %v1722, %v1718
    %v2219 = vpack.c.b16 %v1723, %v1719
    %v2220 = vpack.c.b16 %v1724, %v1720
    %v2221 = vpack.c.b16 %v1725, %v1721
    %v2222 = vpack.c.b16 %v1730, %v1726
    %v2223 = vpack.c.b16 %v1731, %v1727
    %v2224 = vpack.c.b16 %v1732, %v1728
    %v2225 = vpack.c.b16 %v1733, %v1729
    %v2226 = vpack.c.b16 %v1738, %v1734
    %v2227 = vpack.c.b16 %v1739, %v1735
    %v2228 = vpack.c.b16 %v1740, %v1736
    %v2229 = vpack.c.b16 %v1741, %v1737
    %v2230 = vpack.c.b16 %v1746, %v1742
    %v2231 = vpack.c.b16 %v1747, %v1743
    %v2232 = vpack.c.b16 %v1748, %v1744
    %v2233 = vpack.c.b16 %v1749, %v1745
    %v2234 = vpack.c.b16 %v1754, %v1750
    %v2235 = vpack.c.b16 %v1755, %v1751
    %v2236 = vpack.c.b16 %v1756, %v1752
    %v2237 = vpack.c.b16 %v1757, %v1753
    %v2238 = vpack.c.b16 %v1762, %v1758
    %v2239 = vpack.c.b16 %v1763, %v1759
    %v2240 = vpack.c.b16 %v1764, %v1760
    %v2241 = vpack.c.b16 %v1765, %v1761
    %v2242 = vpack.c.b16 %v1770, %v1766
    %v2243 = vpack.c.b16 %v1771, %v1767
    %v2244 = vpack.c.b16 %v1772, %v1768
    %v2245 = vpack.c.b16 %v1773, %v1769
    %v2246 = vpack.c.b16 %v1778, %v1774
    %v2247 = vpack.c.b16 %v1779, %v1775
    %v2248 = vpack.c.b16 %v1780, %v1776
    %v2249 = vpack.c.b16 %v1781, %v1777
    %v2250 = vpack.c.b16 %v1786, %v1782
    %v2251 = vpack.c.b16 %v1787, %v1783
    %v2252 = vpack.c.b16 %v1788, %v1784
    %v2253 = vpack.c.b16 %v1789, %v1785
    %v2254 = vpack.c.b16 %v1794, %v1790
    %v2255 = vpack.c.b16 %v1795, %v1791
    %v2256 = vpack.c.b16 %v1796, %v1792
    %v2257 = vpack.c.b16 %v1797, %v1793
    %v2258 = vpack.c.b16 %v1802, %v1798
    %v2259 = vpack.c.b16 %v1803, %v1799
    %v2260 = vpack.c.b16 %v1804, %v1800
    %v2261 = vpack.c.b16 %v1805, %v1801
    %v2262 = vpack.c.b16 %v1810, %v1806
    %v2263 = vpack.c.b16 %v1811, %v1807
    %v2264 = vpack.c.b16 %v1812, %v1808
    %v2265 = vpack.c.b16 %v1813, %v1809
    %v2266 = vpack.c.b16 %v1818, %v1814
    %v2267 = vpack.c.b16 %v1819, %v1815
    %v2268 = vpack.c.b16 %v1820, %v1816
    %v2269 = vpack.c.b16 %v1821, %v1817
    %v2270 = vpack.c.b16 %v1826, %v1822
    %v2271 = vpack.c.b16 %v1827, %v1823
    %v2272 = vpack.c.b16 %v1828, %v1824
    %v2273 = vpack.c.b16 %v1829, %v1825
    %v2274 = vpack.c.b16 %v1834, %v1830
    %v2275 = vpack.c.b16 %v1835, %v1831
    %v2276 = vpack.c.b16 %v1836, %v1832
    %v2277 = vpack.c.b16 %v1837, %v1833
    %v2278 = vpack.c.b16 %v1842, %v1838
    %v2279 = vpack.c.b16 %v1843, %v1839
    %v2280 = vpack.c.b16 %v1844, %v1840
    %v2281 = vpack.c.b16 %v1845, %v1841
    %v2282 = vpack.c.b16 %v1850, %v1846
    %v2283 = vpack.c.b16 %v1851, %v1847
    %v2284 = vpack.c.b16 %v1852, %v1848
    %v2285 = vpack.c.b16 %v1853, %v1849
    %v2286 = vpack.c.b16 %v1858, %v1854
    %v2287 = vpack.c.b16 %v1859, %v1855
    %v2288 = vpack.c.b16 %v1860, %v1856
    %v2289 = vpack.c.b16 %v1861, %v1857
    %v2290 = vpack.c.b16 %v1866, %v1862
    %v2291 = vpack.c.b16 %v1867, %v1863
    %v2292 = vpack.c.b16 %v1868, %v1864
    %v2293 = vpack.c.b16 %v1869, %v1865
    %v2294 = vpack.c.b16 %v1874, %v1870
    %v2295 = vpack.c.b16 %v1875, %v1871
    %v2296 = vpack.c.b16 %v1876, %v1872
    %v2297 = vpack.c.b16 %v1877, %v1873
    %v2298 = vpack.c.b16 %v1882, %v1878
    %v2299 = vpack.c.b16 %v1883, %v1879
    %v2300 = vpack.c.b16 %v1884, %v1880
    %v2301 = vpack.c.b16 %v1885, %v1881
    %v2302 = vpack.c.b16 %v1890, %v1886
    %v2303 = vpack.c.b16 %v1891, %v1887
    %v2304 = vpack.c.b16 %v1892, %v1888
    %v2305 = vpack.c.b16 %v1893, %v1889
    %v2306 = vpack.c.b16 %v1898, %v1894
    %v2307 = vpack.c.b16 %v1899, %v1895
    %v2308 = vpack.c.b16 %v1900, %v1896
    %v2309 = vpack.c.b16 %v1901, %v1897
    %v2310 = vpack.c.b16 %v1906, %v1902
    %v2311 = vpack.c.b16 %v1907, %v1903
    %v2312 = vpack.c.b16 %v1908, %v1904
    %v2313 = vpack.c.b16 %v1909, %v1905
    %v2314 = vpack.c.b16 %v1914, %v1910
    %v2315 = vpack.c.b16 %v1915, %v1911
    %v2316 = vpack.c.b16 %v1916, %v1912
    %v2317 = vpack.c.b16 %v1917, %v1913
    %v2318 = vpack.c.b16 %v1922, %v1918
    %v2319 = vpack.c.b16 %v1923, %v1919
    %v2320 = vpack.c.b16 %v1924, %v1920
    %v2321 = vpack.c.b16 %v1925, %v1921
    %v2322 = vpack.c.b16 %v1930, %v1926
    %v2323 = vpack.c.b16 %v1931, %v1927
    %v2324 = vpack.c.b16 %v1932, %v1928
    %v2325 = vpack.c.b16 %v1933, %v1929
    %v2326 = vpack.c.b16 %v1938, %v1934
    %v2327 = vpack.c.b16 %v1939, %v1935
    %v2328 = vpack.c.b16 %v1940, %v1936
    %v2329 = vpack.c.b16 %v1941, %v1937
    %v2330 = vpack.c.b16 %v1946, %v1942
    %v2331 = vpack.c.b16 %v1947, %v1943
    %v2332 = vpack.c.b16 %v1948, %v1944
    %v2333 = vpack.c.b16 %v1949, %v1945
    %v2334 = vpack.c.b16 %v1954, %v1950
    %v2335 = vpack.c.b16 %v1955, %v1951
    %v2336 = vpack.c.b16 %v1956, %v1952
    %v2337 = vpack.c.b16 %v1957, %v1953
    %v2338 = vpack.c.b16 %v1962, %v1958
    %v2339 = vpack.c.b16 %v1963, %v1959
    %v2340 = vpack.c.b16 %v1964, %v1960
    %v2341 = vpack.c.b16 %v1965, %v1961
    %v2342 = vpack.c.b16 %v1970, %v1966
    %v2343 = vpack.c.b16 %v1971, %v1967
    %v2344 = vpack.c.b16 %v1972, %v1968
    %v2345 = vpack.c.b16 %v1973, %v1969
    %v2346 = vpack.c.b16 %v1978, %v1974
    %v2347 = vpack.c.b16 %v1979, %v1975
    %v2348 = vpack.c.b16 %v1980, %v1976
    %v2349 = vpack.c.b16 %v1981, %v1977
    %v2350 = vpack.c.b16 %v1986, %v1982
    %v2351 = vpack.c.b16 %v1987, %v1983
    %v2352 = vpack.c.b16 %v1988, %v1984
    %v2353 = vpack.c.b16 %v1989, %v1985
    %v2354 = vpack.c.b16 %v1994, %v1990
    %v2355 = vpack.c.b16 %v1995, %v1991
    %v2356 = vpack.c.b16 %v1996, %v1992
    %v2357 = vpack.c.b16 %v1997, %v1993
    %v2358 = vpack.c.b16 %v2002, %v1998
    %v2359 = vpack.c.b16 %v2003, %v1999
    %v2360 = vpack.c.b16 %v2004, %v2000
    %v2361 = vpack.c.b16 %v2005, %v2001
    %v2362 = vpack.c.b16 %v2010, %v2006
    %v2363 = vpack.c.b16 %v2011, %v2007
    %v2364 = vpack.c.b16 %v2012, %v2008
    %v2365 = vpack.c.b16 %v2013, %v2009
    %v2366 = vpack.c.b16 %v2018, %v2014
    %v2367 = vpack.c.b16 %v2019, %v2015
    %v2368 = vpack.c.b16 %v2020, %v2016
    %v2369 = vpack.c.b16 %v2021, %v2017
    %v2370 = vpack.c.b16 %v2026, %v2022
    %v2371 = vpack.c.b16 %v2027, %v2023
    %v2372 = vpack.c.b16 %v2028, %v2024
    %v2373 = vpack.c.b16 %v2029, %v2025
    %v2374 = vpack.c.b16 %v2034, %v2030
    %v2375 = vpack.c.b16 %v2035, %v2031
    %v2376 = vpack.c.b16 %v2036, %v2032
    %v2377 = vpack.c.b16 %v2037, %v2033
    %v2378 = vpack.c.b16 %v2042, %v2038
    %v2379 = vpack.c.b16 %v2043, %v2039
    %v2380 = vpack.c.b16 %v2044, %v2040
    %v2381 = vpack.c.b16 %v2045, %v2041
    %v2382 = vpack.c.b16 %v2050, %v2046
    %v2383 = vpack.c.b16 %v2051, %v2047
    %v2384 = vpack.c.b16 %v2052, %v2048
    %v2385 = vpack.c.b16 %v2053, %v2049
    %v2386 = vpack.c.b16 %v2058, %v2054
    %v2387 = vpack.c.b16 %v2059, %v2055
    %v2388 = vpack.c.b16 %v2060, %v2056
    %v2389 = vpack.c.b16 %v2061, %v2057
    %v2390 = vpack.c.b16 %v2066, %v2062
    %v2391 = vpack.c.b16 %v2067, %v2063
    %v2392 = vpack.c.b16 %v2068, %v2064
    %v2393 = vpack.c.b16 %v2069, %v2065
    %v2394 = vpack.c.b16 %v2074, %v2070
    %v2395 = vpack.c.b16 %v2075, %v2071
    %v2396 = vpack.c.b16 %v2076, %v2072
    %v2397 = vpack.c.b16 %v2077, %v2073
    %v2398 = vpack.c.b16 %v2082, %v2078
    %v2399 = vpack.c.b16 %v2083, %v2079
    %v2400 = vpack.c.b16 %v2084, %v2080
    %v2401 = vpack.c.b16 %v2085, %v2081
    %v2402 = vpack.c.b16 %v2090, %v2086
    %v2403 = vpack.c.b16 %v2091, %v2087
    %v2404 = vpack.c.b16 %v2092, %v2088
    %v2405 = vpack.c.b16 %v2093, %v2089
    %v2406 = vpack.c.b16 %v2098, %v2094
    %v2407 = vpack.c.b16 %v2099, %v2095
    %v2408 = vpack.c.b16 %v2100, %v2096
    %v2409 = vpack.c.b16 %v2101, %v2097
    %v2410 = vpack.c.b16 %v2106, %v2102
    %v2411 = vpack.c.b16 %v2107, %v2103
    %v2412 = vpack.c.b16 %v2108, %v2104
    %v2413 = vpack.c.b16 %v2109, %v2105
    %v2414 = vpack.c.b16 %v2114, %v2110
    %v2415 = vpack.c.b16 %v2115, %v2111
    %v2416 = vpack.c.b16 %v2116, %v2112
    %v2417 = vpack.c.b16 %v2117, %v2113
    %v2418 = vpack.c.b16 %v2122, %v2118
    %v2419 = vpack.c.b16 %v2123, %v2119
    %v2420 = vpack.c.b16 %v2124, %v2120
    %v2421 = vpack.c.b16 %v2125, %v2121
    %v2422 = vpack.c.b16 %v2130, %v2126
    %v2423 = vpack.c.b16 %v2131, %v2127
    %v2424 = vpack.c.b16 %v2132, %v2128
    %v2425 = vpack.c.b16 %v2133, %v2129
    %v2426 = vpack.c.b16 %v2138, %v2134
    %v2427 = vpack.c.b16 %v2139, %v2135
    %v2428 = vpack.c.b16 %v2140, %v2136
    %v2429 = vpack.c.b16 %v2141, %v2137
    %v2430 = vpack.c.b16 %v2146, %v2142
    %v2431 = vpack.c.b16 %v2147, %v2143
    %v2432 = vpack.c.b16 %v2148, %v2144
    %v2433 = vpack.c.b16 %v2149, %v2145
    %v2434 = vpack.c.b16 %v2154, %v2150
    %v2435 = vpack.c.b16 %v2155, %v2151
    %v2436 = vpack.c.b16 %v2156, %v2152
    %v2437 = vpack.c.b16 %v2157, %v2153
    %v2438 = vpack.c.b16 %v2162, %v2158
    %v2439 = vpack.c.b16 %v2163, %v2159
    %v2440 = vpack.c.b16 %v2164, %v2160
    %v2441 = vpack.c.b16 %v2165, %v2161
    %v2442 = vpack.c.b16 %v2170, %v2166
    %v2443 = vpack.c.b16 %v2171, %v2167
    %v2444 = vpack.c.b16 %v2172, %v2168
    %v2445 = vpack.c.b16 %v2173, %v2169
    %v2446 = vpack.c.b16 %v2178, %v2174
    %v2447 = vpack.c.b16 %v2179, %v2175
    %v2448 = vpack.c.b16 %v2180, %v2176
    %v2449 = vpack.c.b16 %v2181, %v2177
    %v2450 = vpack.c.b16 %v2186, %v2182
    %v2451 = vpack.c.b16 %v2187, %v2183
    %v2452 = vpack.c.b16 %v2188, %v2184
    %v2453 = vpack.c.b16 %v2189, %v2185
    %v2454 = vpack.c.b16 %v2194, %v2190
    %v2455 = vpack.c.b16 %v2195, %v2191
    %v2456 = vpack.c.b16 %v2196, %v2192
    %v2457 = vpack.c.b16 %v2197, %v2193
    %v2458 = vpack.c.b16 %v2202, %v2198
    %v2459 = vpack.c.b16 %v2203, %v2199
    %v2460 = vpack.c.b16 %v2204, %v2200
    %v2461 = vpack.c.b16 %v2205, %v2201
    %2718 = vmatprep.subr.bf16.mxu0 %v2235
    %2719 = vmatpush1.bf16.msra.mxu0 %v2234
    %2720 = vmatprep.subr.bf16.mxu0 %v2231
    %2721 = vmatpush1.bf16.msra.mxu0 %v2230
    %2722 = vmatprep.subr.bf16.mxu0 %v2227
    %2723 = vmatpush1.bf16.msra.mxu0 %v2226
    %2724 = vmatprep.subr.bf16.mxu0 %v2223
    %2725 = vmatpush1.bf16.msra.mxu0 %v2222
    %2726 = vmatprep.subr.bf16.mxu0 %v2219
    %2727 = vmatpush1.bf16.msra.mxu0 %v2218
    %2728 = vmatprep.subr.bf16.mxu0 %v2215
    %2729 = vmatpush1.bf16.msra.mxu0 %v2214
    %2730 = vmatprep.subr.bf16.mxu0 %v2211
    %2731 = vmatpush1.bf16.msra.mxu0 %v2210
    %2732 = vmatprep.subr.bf16.mxu0 %v2207
    %2733 = vmatpush1.bf16.msra.mxu0 %v2206
    %2734 = vmatprep.subr.bf16.mxu0 %v2267
    %2735 = vmatpush2.bf16.msra.mxu0 %v2266
    %2736 = vmatprep.subr.bf16.mxu0 %v2263
    %2737 = vmatpush2.bf16.msra.mxu0 %v2262
    %2738 = vmatprep.subr.bf16.mxu0 %v2259
    %2739 = vmatpush2.bf16.msra.mxu0 %v2258
    %2740 = vmatprep.subr.bf16.mxu0 %v2255
    %2741 = vmatpush2.bf16.msra.mxu0 %v2254
    %2742 = vmatprep.subr.bf16.mxu0 %v2251
    %2743 = vmatpush2.bf16.msra.mxu0 %v2250
    %2744 = vmatprep.subr.bf16.mxu0 %v2247
    %2745 = vmatpush2.bf16.msra.mxu0 %v2246
    %2746 = vmatprep.subr.bf16.mxu0 %v2243
    %2747 = vmatpush2.bf16.msra.mxu0 %v2242
    %2748 = vmatprep.subr.bf16.mxu0 %v2239
    %2749 = vmatpush2.bf16.msra.mxu0 %v2238
    %2750 = vmatprep.mubr.bf16.mxu0 %v1153
    %2751 = vmatmul.mubr.bf16.gmra.mxu0 %v1152
    %v2752 = vpop.f32.mrf.mxu0
    %v2753 = vadd.f32 %v1421, %v2752
    %v2754 = vpop.f32.mrf.mxu0
    %v2755 = vadd.f32 %v1425, %v2754
    %v2756 = vpop.f32.mrf.mxu0
    %v2757 = vpop.f32.mrf.mxu0
    %2758 = vdwg.mxu0
    %2759 = vmatprep.subr.bf16.mxu0 %v2299
    %2760 = vmatpush1.bf16.msra.mxu0 %v2298
    %2761 = vmatprep.subr.bf16.mxu0 %v2295
    %2762 = vmatpush1.bf16.msra.mxu0 %v2294
    %2763 = vmatprep.subr.bf16.mxu0 %v2291
    %2764 = vmatpush1.bf16.msra.mxu0 %v2290
    %2765 = vmatprep.subr.bf16.mxu0 %v2287
    %2766 = vmatpush1.bf16.msra.mxu0 %v2286
    %2767 = vmatprep.subr.bf16.mxu0 %v2283
    %2768 = vmatpush1.bf16.msra.mxu0 %v2282
    %2769 = vmatprep.subr.bf16.mxu0 %v2279
    %2770 = vmatpush1.bf16.msra.mxu0 %v2278
    %2771 = vmatprep.subr.bf16.mxu0 %v2275
    %2772 = vmatpush1.bf16.msra.mxu0 %v2274
    %2773 = vmatprep.subr.bf16.mxu0 %v2271
    %2774 = vmatpush1.bf16.msra.mxu0 %v2270
    %2775 = vmatprep.subr.bf16.mxu0 %v2331
    %2776 = vmatpush2.bf16.msra.mxu0 %v2330
    %2777 = vmatprep.subr.bf16.mxu0 %v2327
    %2778 = vmatpush2.bf16.msra.mxu0 %v2326
    %2779 = vmatprep.subr.bf16.mxu0 %v2323
    %2780 = vmatpush2.bf16.msra.mxu0 %v2322
    %2781 = vmatprep.subr.bf16.mxu0 %v2319
    %2782 = vmatpush2.bf16.msra.mxu0 %v2318
    %2783 = vmatprep.subr.bf16.mxu0 %v2315
    %2784 = vmatpush2.bf16.msra.mxu0 %v2314
    %2785 = vmatprep.subr.bf16.mxu0 %v2311
    %2786 = vmatpush2.bf16.msra.mxu0 %v2310
    %2787 = vmatprep.subr.bf16.mxu0 %v2307
    %2788 = vmatpush2.bf16.msra.mxu0 %v2306
    %2789 = vmatprep.subr.bf16.mxu0 %v2303
    %2790 = vmatpush2.bf16.msra.mxu0 %v2302
    %2791 = vmatprep.mubr.bf16.mxu0 %v1155
    %2792 = vmatmul.mubr.bf16.gmra.mxu0 %v1154
    %v2793 = vpop.f32.mrf.mxu0
    %v2794 = vadd.f32 %v2753, %v2793
    %v2795 = vpop.f32.mrf.mxu0
    %v2796 = vadd.f32 %v2755, %v2795
    %v2797 = vpop.f32.mrf.mxu0
    %v2798 = vpop.f32.mrf.mxu0
    %2799 = vdwg.mxu0
    %2800 = vmatprep.subr.bf16.mxu0 %v2363
    %2801 = vmatpush1.bf16.msra.mxu0 %v2362
    %2802 = vmatprep.subr.bf16.mxu0 %v2359
    %2803 = vmatpush1.bf16.msra.mxu0 %v2358
    %2804 = vmatprep.subr.bf16.mxu0 %v2355
    %2805 = vmatpush1.bf16.msra.mxu0 %v2354
    %2806 = vmatprep.subr.bf16.mxu0 %v2351
    %2807 = vmatpush1.bf16.msra.mxu0 %v2350
    %2808 = vmatprep.subr.bf16.mxu0 %v2347
    %2809 = vmatpush1.bf16.msra.mxu0 %v2346
    %2810 = vmatprep.subr.bf16.mxu0 %v2343
    %2811 = vmatpush1.bf16.msra.mxu0 %v2342
    %2812 = vmatprep.subr.bf16.mxu0 %v2339
    %2813 = vmatpush1.bf16.msra.mxu0 %v2338
    %2814 = vmatprep.subr.bf16.mxu0 %v2335
    %2815 = vmatpush1.bf16.msra.mxu0 %v2334
    %2816 = vmatprep.subr.bf16.mxu0 %v2395
    %2817 = vmatpush2.bf16.msra.mxu0 %v2394
    %2818 = vmatprep.subr.bf16.mxu0 %v2391
    %2819 = vmatpush2.bf16.msra.mxu0 %v2390
    %2820 = vmatprep.subr.bf16.mxu0 %v2387
    %2821 = vmatpush2.bf16.msra.mxu0 %v2386
    %2822 = vmatprep.subr.bf16.mxu0 %v2383
    %2823 = vmatpush2.bf16.msra.mxu0 %v2382
    %2824 = vmatprep.subr.bf16.mxu0 %v2379
    %2825 = vmatpush2.bf16.msra.mxu0 %v2378
    %2826 = vmatprep.subr.bf16.mxu0 %v2375
    %2827 = vmatpush2.bf16.msra.mxu0 %v2374
    %2828 = vmatprep.subr.bf16.mxu0 %v2371
    %2829 = vmatpush2.bf16.msra.mxu0 %v2370
    %2830 = vmatprep.subr.bf16.mxu0 %v2367
    %2831 = vmatpush2.bf16.msra.mxu0 %v2366
    %2832 = vmatprep.mubr.bf16.mxu0 %v1157
    %2833 = vmatmul.mubr.bf16.gmra.mxu0 %v1156
    %v2834 = vpop.f32.mrf.mxu0
    %v2835 = vadd.f32 %v2794, %v2834
    %v2836 = vpop.f32.mrf.mxu0
    %v2837 = vadd.f32 %v2796, %v2836
    %v2838 = vpop.f32.mrf.mxu0
    %v2839 = vpop.f32.mrf.mxu0
    %2840 = vdwg.mxu0
    %2841 = vmatprep.subr.bf16.mxu0 %v2427
    %2842 = vmatpush1.bf16.msra.mxu0 %v2426
    %2843 = vmatprep.subr.bf16.mxu0 %v2423
    %2844 = vmatpush1.bf16.msra.mxu0 %v2422
    %2845 = vmatprep.subr.bf16.mxu0 %v2419
    %2846 = vmatpush1.bf16.msra.mxu0 %v2418
    %2847 = vmatprep.subr.bf16.mxu0 %v2415
    %2848 = vmatpush1.bf16.msra.mxu0 %v2414
    %2849 = vmatprep.subr.bf16.mxu0 %v2411
    %2850 = vmatpush1.bf16.msra.mxu0 %v2410
    %2851 = vmatprep.subr.bf16.mxu0 %v2407
    %2852 = vmatpush1.bf16.msra.mxu0 %v2406
    %2853 = vmatprep.subr.bf16.mxu0 %v2403
    %2854 = vmatpush1.bf16.msra.mxu0 %v2402
    %2855 = vmatprep.subr.bf16.mxu0 %v2399
    %2856 = vmatpush1.bf16.msra.mxu0 %v2398
    %2857 = vmatprep.subr.bf16.mxu0 %v2459
    %2858 = vmatpush2.bf16.msra.mxu0 %v2458
    %2859 = vmatprep.subr.bf16.mxu0 %v2455
    %2860 = vmatpush2.bf16.msra.mxu0 %v2454
    %2861 = vmatprep.subr.bf16.mxu0 %v2451
    %2862 = vmatpush2.bf16.msra.mxu0 %v2450
    %2863 = vmatprep.subr.bf16.mxu0 %v2447
    %2864 = vmatpush2.bf16.msra.mxu0 %v2446
    %2865 = vmatprep.subr.bf16.mxu0 %v2443
    %2866 = vmatpush2.bf16.msra.mxu0 %v2442
    %2867 = vmatprep.subr.bf16.mxu0 %v2439
    %2868 = vmatpush2.bf16.msra.mxu0 %v2438
    %2869 = vmatprep.subr.bf16.mxu0 %v2435
    %2870 = vmatpush2.bf16.msra.mxu0 %v2434
    %2871 = vmatprep.subr.bf16.mxu0 %v2431
    %2872 = vmatpush2.bf16.msra.mxu0 %v2430
    %2873 = vmatprep.mubr.bf16.mxu0 %v1159
    %2874 = vmatmul.mubr.bf16.gmra.mxu0 %v1158
    %v2875 = vpop.f32.mrf.mxu0
    %v2876 = vadd.f32 %v2835, %v2875
    %v2877 = vpop.f32.mrf.mxu0
    %v2878 = vadd.f32 %v2837, %v2877
    %v2879 = vpop.f32.mrf.mxu0
    %v2880 = vpop.f32.mrf.mxu0
    %2881 = vdwg.mxu0
    %2882 = vmatprep.subr.bf16.mxu0 %v2237
    %2883 = vmatpush1.bf16.msra.mxu0 %v2236
    %2884 = vmatprep.subr.bf16.mxu0 %v2233
    %2885 = vmatpush1.bf16.msra.mxu0 %v2232
    %2886 = vmatprep.subr.bf16.mxu0 %v2229
    %2887 = vmatpush1.bf16.msra.mxu0 %v2228
    %2888 = vmatprep.subr.bf16.mxu0 %v2225
    %2889 = vmatpush1.bf16.msra.mxu0 %v2224
    %2890 = vmatprep.subr.bf16.mxu0 %v2221
    %2891 = vmatpush1.bf16.msra.mxu0 %v2220
    %2892 = vmatprep.subr.bf16.mxu0 %v2217
    %2893 = vmatpush1.bf16.msra.mxu0 %v2216
    %2894 = vmatprep.subr.bf16.mxu0 %v2213
    %2895 = vmatpush1.bf16.msra.mxu0 %v2212
    %2896 = vmatprep.subr.bf16.mxu0 %v2209
    %2897 = vmatpush1.bf16.msra.mxu0 %v2208
    %2898 = vmatprep.subr.bf16.mxu0 %v2269
    %2899 = vmatpush2.bf16.msra.mxu0 %v2268
    %2900 = vmatprep.subr.bf16.mxu0 %v2265
    %2901 = vmatpush2.bf16.msra.mxu0 %v2264
    %2902 = vmatprep.subr.bf16.mxu0 %v2261
    %2903 = vmatpush2.bf16.msra.mxu0 %v2260
    %2904 = vmatprep.subr.bf16.mxu0 %v2257
    %2905 = vmatpush2.bf16.msra.mxu0 %v2256
    %2906 = vmatprep.subr.bf16.mxu0 %v2253
    %2907 = vmatpush2.bf16.msra.mxu0 %v2252
    %2908 = vmatprep.subr.bf16.mxu0 %v2249
    %2909 = vmatpush2.bf16.msra.mxu0 %v2248
    %2910 = vmatprep.subr.bf16.mxu0 %v2245
    %2911 = vmatpush2.bf16.msra.mxu0 %v2244
    %2912 = vmatprep.subr.bf16.mxu0 %v2241
    %2913 = vmatpush2.bf16.msra.mxu0 %v2240
    %2914 = vmatprep.mubr.bf16.mxu0 %v1153
    %2915 = vmatmul.mubr.bf16.gmra.mxu0 %v1152
    %v2916 = vpop.f32.mrf.mxu0
    %v2917 = vadd.f32 %v1429, %v2916
    %v2918 = vpop.f32.mrf.mxu0
    %v2919 = vadd.f32 %v1433, %v2918
    %v2920 = vpop.f32.mrf.mxu0
    %v2921 = vpop.f32.mrf.mxu0
    %2922 = vdwg.mxu0
    %2923 = vmatprep.subr.bf16.mxu0 %v2301
    %2924 = vmatpush1.bf16.msra.mxu0 %v2300
    %2925 = vmatprep.subr.bf16.mxu0 %v2297
    %2926 = vmatpush1.bf16.msra.mxu0 %v2296
    %2927 = vmatprep.subr.bf16.mxu0 %v2293
    %2928 = vmatpush1.bf16.msra.mxu0 %v2292
    %2929 = vmatprep.subr.bf16.mxu0 %v2289
    %2930 = vmatpush1.bf16.msra.mxu0 %v2288
    %2931 = vmatprep.subr.bf16.mxu0 %v2285
    %2932 = vmatpush1.bf16.msra.mxu0 %v2284
    %2933 = vmatprep.subr.bf16.mxu0 %v2281
    %2934 = vmatpush1.bf16.msra.mxu0 %v2280
    %2935 = vmatprep.subr.bf16.mxu0 %v2277
    %2936 = vmatpush1.bf16.msra.mxu0 %v2276
    %2937 = vmatprep.subr.bf16.mxu0 %v2273
    %2938 = vmatpush1.bf16.msra.mxu0 %v2272
    %2939 = vmatprep.subr.bf16.mxu0 %v2333
    %2940 = vmatpush2.bf16.msra.mxu0 %v2332
    %2941 = vmatprep.subr.bf16.mxu0 %v2329
    %2942 = vmatpush2.bf16.msra.mxu0 %v2328
    %2943 = vmatprep.subr.bf16.mxu0 %v2325
    %2944 = vmatpush2.bf16.msra.mxu0 %v2324
    %2945 = vmatprep.subr.bf16.mxu0 %v2321
    %2946 = vmatpush2.bf16.msra.mxu0 %v2320
    %2947 = vmatprep.subr.bf16.mxu0 %v2317
    %2948 = vmatpush2.bf16.msra.mxu0 %v2316
    %2949 = vmatprep.subr.bf16.mxu0 %v2313
    %2950 = vmatpush2.bf16.msra.mxu0 %v2312
    %2951 = vmatprep.subr.bf16.mxu0 %v2309
    %2952 = vmatpush2.bf16.msra.mxu0 %v2308
    %2953 = vmatprep.subr.bf16.mxu0 %v2305
    %2954 = vmatpush2.bf16.msra.mxu0 %v2304
    %2955 = vmatprep.mubr.bf16.mxu0 %v1155
    %2956 = vmatmul.mubr.bf16.gmra.mxu0 %v1154
    %v2957 = vpop.f32.mrf.mxu0
    %v2958 = vadd.f32 %v2917, %v2957
    %v2959 = vpop.f32.mrf.mxu0
    %v2960 = vadd.f32 %v2919, %v2959
    %v2961 = vpop.f32.mrf.mxu0
    %v2962 = vpop.f32.mrf.mxu0
    %2963 = vdwg.mxu0
    %2964 = vmatprep.subr.bf16.mxu0 %v2365
    %2965 = vmatpush1.bf16.msra.mxu0 %v2364
    %2966 = vmatprep.subr.bf16.mxu0 %v2361
    %2967 = vmatpush1.bf16.msra.mxu0 %v2360
    %2968 = vmatprep.subr.bf16.mxu0 %v2357
    %2969 = vmatpush1.bf16.msra.mxu0 %v2356
    %2970 = vmatprep.subr.bf16.mxu0 %v2353
    %2971 = vmatpush1.bf16.msra.mxu0 %v2352
    %2972 = vmatprep.subr.bf16.mxu0 %v2349
    %2973 = vmatpush1.bf16.msra.mxu0 %v2348
    %2974 = vmatprep.subr.bf16.mxu0 %v2345
    %2975 = vmatpush1.bf16.msra.mxu0 %v2344
    %2976 = vmatprep.subr.bf16.mxu0 %v2341
    %2977 = vmatpush1.bf16.msra.mxu0 %v2340
    %2978 = vmatprep.subr.bf16.mxu0 %v2337
    %2979 = vmatpush1.bf16.msra.mxu0 %v2336
    %2980 = vmatprep.subr.bf16.mxu0 %v2397
    %2981 = vmatpush2.bf16.msra.mxu0 %v2396
    %2982 = vmatprep.subr.bf16.mxu0 %v2393
    %2983 = vmatpush2.bf16.msra.mxu0 %v2392
    %2984 = vmatprep.subr.bf16.mxu0 %v2389
    %2985 = vmatpush2.bf16.msra.mxu0 %v2388
    %2986 = vmatprep.subr.bf16.mxu0 %v2385
    %2987 = vmatpush2.bf16.msra.mxu0 %v2384
    %2988 = vmatprep.subr.bf16.mxu0 %v2381
    %2989 = vmatpush2.bf16.msra.mxu0 %v2380
    %2990 = vmatprep.subr.bf16.mxu0 %v2377
    %2991 = vmatpush2.bf16.msra.mxu0 %v2376
    %2992 = vmatprep.subr.bf16.mxu0 %v2373
    %2993 = vmatpush2.bf16.msra.mxu0 %v2372
    %2994 = vmatprep.subr.bf16.mxu0 %v2369
    %2995 = vmatpush2.bf16.msra.mxu0 %v2368
    %2996 = vmatprep.mubr.bf16.mxu0 %v1157
    %2997 = vmatmul.mubr.bf16.gmra.mxu0 %v1156
    %v2998 = vpop.f32.mrf.mxu0
    %v2999 = vadd.f32 %v2958, %v2998
    %v3000 = vpop.f32.mrf.mxu0
    %v3001 = vadd.f32 %v2960, %v3000
    %v3002 = vpop.f32.mrf.mxu0
    %v3003 = vpop.f32.mrf.mxu0
    %3004 = vdwg.mxu0
    %3005 = vmatprep.subr.bf16.mxu0 %v2429
    %3006 = vmatpush1.bf16.msra.mxu0 %v2428
    %3007 = vmatprep.subr.bf16.mxu0 %v2425
    %3008 = vmatpush1.bf16.msra.mxu0 %v2424
    %3009 = vmatprep.subr.bf16.mxu0 %v2421
    %3010 = vmatpush1.bf16.msra.mxu0 %v2420
    %3011 = vmatprep.subr.bf16.mxu0 %v2417
    %3012 = vmatpush1.bf16.msra.mxu0 %v2416
    %3013 = vmatprep.subr.bf16.mxu0 %v2413
    %3014 = vmatpush1.bf16.msra.mxu0 %v2412
    %3015 = vmatprep.subr.bf16.mxu0 %v2409
    %3016 = vmatpush1.bf16.msra.mxu0 %v2408
    %3017 = vmatprep.subr.bf16.mxu0 %v2405
    %3018 = vmatpush1.bf16.msra.mxu0 %v2404
    %3019 = vmatprep.subr.bf16.mxu0 %v2401
    %3020 = vmatpush1.bf16.msra.mxu0 %v2400
    %3021 = vmatprep.subr.bf16.mxu0 %v2461
    %3022 = vmatpush2.bf16.msra.mxu0 %v2460
    %3023 = vmatprep.subr.bf16.mxu0 %v2457
    %3024 = vmatpush2.bf16.msra.mxu0 %v2456
    %3025 = vmatprep.subr.bf16.mxu0 %v2453
    %3026 = vmatpush2.bf16.msra.mxu0 %v2452
    %3027 = vmatprep.subr.bf16.mxu0 %v2449
    %3028 = vmatpush2.bf16.msra.mxu0 %v2448
    %3029 = vmatprep.subr.bf16.mxu0 %v2445
    %3030 = vmatpush2.bf16.msra.mxu0 %v2444
    %3031 = vmatprep.subr.bf16.mxu0 %v2441
    %3032 = vmatpush2.bf16.msra.mxu0 %v2440
    %3033 = vmatprep.subr.bf16.mxu0 %v2437
    %3034 = vmatpush2.bf16.msra.mxu0 %v2436
    %3035 = vmatprep.subr.bf16.mxu0 %v2433
    %3036 = vmatpush2.bf16.msra.mxu0 %v2432
    %3037 = vmatprep.mubr.bf16.mxu0 %v1159
    %3038 = vmatmul.mubr.bf16.gmra.mxu0 %v1158
    %v3039 = vpop.f32.mrf.mxu0
    %v3040 = vadd.f32 %v2999, %v3039
    %v3041 = vpop.f32.mrf.mxu0
    %v3042 = vadd.f32 %v3001, %v3041
    %v3043 = vpop.f32.mrf.mxu0
    %v3044 = vpop.f32.mrf.mxu0
    %3045 = vdwg.mxu0
    %vm3046 = vcmp.gt.f32.partialorder %v2876, 0.0
    %vm3047 = vcmp.gt.f32.partialorder %v2878, 0.0
    %vm3048 = vcmp.gt.f32.partialorder %v3040, 0.0
    %vm3049 = vcmp.gt.f32.partialorder %v3042, 0.0
    %v3050 = vmul.f32 %v2876, 0.2
    %v3051 = vmul.f32 %v2878, 0.2
    %v3052 = vmul.f32 %v3040, 0.2
    %v3053 = vmul.f32 %v3042, 0.2
    %v3054 = vsel %vm3046, %v2876, %v3050
    %v3055 = vsel %vm3047, %v2878, %v3051
    %v3056 = vsel %vm3048, %v3040, %v3052
    %v3057 = vsel %vm3049, %v3042, %v3053
    %vm3058 = vcmask 1041408
    %v3059 = vsel %vm3058, %v3054, 0.0
    %v3060 = vrot.slane %v3059, 4
    %v3061 = vadd.f32 %v3059, %v3060
    %v3062 = vrot.slane %v3061, 2
    %v3063 = vadd.f32 %v3061, %v3062
    %v3064 = vrot.slane %v3063, 1
    %v3065 = vadd.f32 %v3063, %v3064
    %v3066 = vsel %vm3058, %v3055, 0.0
    %v3067 = vrot.slane %v3066, 4
    %v3068 = vadd.f32 %v3066, %v3067
    %v3069 = vrot.slane %v3068, 2
    %v3070 = vadd.f32 %v3068, %v3069
    %v3071 = vrot.slane %v3070, 1
    %v3072 = vadd.f32 %v3070, %v3071
    %v3073 = vsel %vm3058, %v3056, 0.0
    %v3074 = vrot.slane %v3073, 4
    %v3075 = vadd.f32 %v3073, %v3074
    %v3076 = vrot.slane %v3075, 2
    %v3077 = vadd.f32 %v3075, %v3076
    %v3078 = vrot.slane %v3077, 1
    %v3079 = vadd.f32 %v3077, %v3078
    %v3080 = vsel %vm3058, %v3057, 0.0
    %v3081 = vrot.slane %v3080, 4
    %v3082 = vadd.f32 %v3080, %v3081
    %v3083 = vrot.slane %v3082, 2
    %v3084 = vadd.f32 %v3082, %v3083
    %v3085 = vrot.slane %v3084, 1
    %v3086 = vadd.f32 %v3084, %v3085
    %v3087 = vld [vmem:[%s5] sm:$0xff]
    %v3088 = vld [vmem:[%s5 + $0x8] sm:$0xff]
    %v3089 = vld [vmem:[%s5 + $0x10] sm:$0xff]
    %v3090 = vld [vmem:[%s5 + $0x18] sm:$0xff]
    %v3091 = vld [vmem:[%s5 + $0x20] sm:$0xff]
    %v3092 = vld [vmem:[%s5 + $0x28] sm:$0xff]
    %v3093 = vld [vmem:[%s5 + $0x30] sm:$0xff]
    %v3094 = vld [vmem:[%s5 + $0x38] sm:$0xff]
    %v3095 = vld [vmem:[%s5 + $0x40] sm:$0xff]
    %v3096 = vld [vmem:[%s5 + $0x48] sm:$0xff]
    %v3097 = vld [vmem:[%s5 + $0x50] sm:$0xff]
    %v3098 = vld [vmem:[%s5 + $0x58] sm:$0xff]
    %v3099 = vld [vmem:[%s5 + $0x60] sm:$0xff]
    %v3100 = vld [vmem:[%s5 + $0x68] sm:$0xff]
    %v3101 = vld [vmem:[%s5 + $0x70] sm:$0xff]
    %v3102 = vld [vmem:[%s5 + $0x78] sm:$0xff]
    %v3103 = vld [vmem:[%s5 + $0x80] sm:$0xff]
    %v3104 = vld [vmem:[%s5 + $0x88] sm:$0xff]
    %v3105 = vld [vmem:[%s5 + $0x90] sm:$0xff]
    %v3106 = vld [vmem:[%s5 + $0x98] sm:$0xff]
    %v3107 = vld [vmem:[%s5 + $0xa0] sm:$0xff]
    %v3108 = vld [vmem:[%s5 + $0xa8] sm:$0xff]
    %v3109 = vld [vmem:[%s5 + $0xb0] sm:$0xff]
    %v3110 = vld [vmem:[%s5 + $0xb8] sm:$0xff]
    %v3111 = vld [vmem:[%s5 + $0xc0] sm:$0xff]
    %v3112 = vld [vmem:[%s5 + $0xc8] sm:$0xff]
    %v3113 = vld [vmem:[%s5 + $0xd0] sm:$0xff]
    %v3114 = vld [vmem:[%s5 + $0xd8] sm:$0xff]
    %v3115 = vld [vmem:[%s5 + $0xe0] sm:$0xff]
    %v3116 = vld [vmem:[%s5 + $0xe8] sm:$0xff]
    %v3117 = vld [vmem:[%s5 + $0xf0] sm:$0xff]
    %v3118 = vld [vmem:[%s5 + $0xf8] sm:$0xff]
    %v3119 = vld [vmem:[%s5 + $0x100] sm:$0xff]
    %v3120 = vld [vmem:[%s5 + $0x108] sm:$0xff]
    %v3121 = vld [vmem:[%s5 + $0x110] sm:$0xff]
    %v3122 = vld [vmem:[%s5 + $0x118] sm:$0xff]
    %v3123 = vld [vmem:[%s5 + $0x120] sm:$0xff]
    %v3124 = vld [vmem:[%s5 + $0x128] sm:$0xff]
    %v3125 = vld [vmem:[%s5 + $0x130] sm:$0xff]
    %v3126 = vld [vmem:[%s5 + $0x138] sm:$0xff]
    %v3127 = vld [vmem:[%s5 + $0x140] sm:$0xff]
    %v3128 = vld [vmem:[%s5 + $0x148] sm:$0xff]
    %v3129 = vld [vmem:[%s5 + $0x150] sm:$0xff]
    %v3130 = vld [vmem:[%s5 + $0x158] sm:$0xff]
    %v3131 = vld [vmem:[%s5 + $0x160] sm:$0xff]
    %v3132 = vld [vmem:[%s5 + $0x168] sm:$0xff]
    %v3133 = vld [vmem:[%s5 + $0x170] sm:$0xff]
    %v3134 = vld [vmem:[%s5 + $0x178] sm:$0xff]
    %v3135 = vld [vmem:[%s5 + $0x180] sm:$0xff]
    %v3136 = vld [vmem:[%s5 + $0x188] sm:$0xff]
    %v3137 = vld [vmem:[%s5 + $0x190] sm:$0xff]
    %v3138 = vld [vmem:[%s5 + $0x198] sm:$0xff]
    %v3139 = vld [vmem:[%s5 + $0x1a0] sm:$0xff]
    %v3140 = vld [vmem:[%s5 + $0x1a8] sm:$0xff]
    %v3141 = vld [vmem:[%s5 + $0x1b0] sm:$0xff]
    %v3142 = vld [vmem:[%s5 + $0x1b8] sm:$0xff]
    %v3143 = vld [vmem:[%s5 + $0x1c0] sm:$0xff]
    %v3144 = vld [vmem:[%s5 + $0x1c8] sm:$0xff]
    %v3145 = vld [vmem:[%s5 + $0x1d0] sm:$0xff]
    %v3146 = vld [vmem:[%s5 + $0x1d8] sm:$0xff]
    %v3147 = vld [vmem:[%s5 + $0x1e0] sm:$0xff]
    %v3148 = vld [vmem:[%s5 + $0x1e8] sm:$0xff]
    %v3149 = vld [vmem:[%s5 + $0x1f0] sm:$0xff]
    %v3150 = vld [vmem:[%s5 + $0x1f8] sm:$0xff]
    %3151 = vmatprep.subr.mxu0 0.0
    %3152 = vmatpush1.msra.mxu0 %v3102
    %3153 = vmatprep.subr.mxu0 0.0
    %3154 = vmatpush1.msra.mxu0 %v3101
    %3155 = vmatprep.subr.mxu0 0.0
    %3156 = vmatpush1.msra.mxu0 %v3100
    %3157 = vmatprep.subr.mxu0 0.0
    %3158 = vmatpush1.msra.mxu0 %v3099
    %3159 = vmatprep.subr.mxu0 0.0
    %3160 = vmatpush1.msra.mxu0 %v3098
    %3161 = vmatprep.subr.mxu0 0.0
    %3162 = vmatpush1.msra.mxu0 %v3097
    %3163 = vmatprep.subr.mxu0 0.0
    %3164 = vmatpush1.msra.mxu0 %v3096
    %3165 = vmatprep.subr.mxu0 0.0
    %3166 = vmatpush1.msra.mxu0 %v3095
    %3167 = vmatprep.subr.mxu0 0.0
    %3168 = vmatpush1.msra.mxu0 %v3094
    %3169 = vmatprep.subr.mxu0 0.0
    %3170 = vmatpush1.msra.mxu0 %v3093
    %3171 = vmatprep.subr.mxu0 0.0
    %3172 = vmatpush1.msra.mxu0 %v3092
    %3173 = vmatprep.subr.mxu0 0.0
    %3174 = vmatpush1.msra.mxu0 %v3091
    %3175 = vmatprep.subr.mxu0 0.0
    %3176 = vmatpush1.msra.mxu0 %v3090
    %3177 = vmatprep.subr.mxu0 0.0
    %3178 = vmatpush1.msra.mxu0 %v3089
    %3179 = vmatprep.subr.mxu0 0.0
    %3180 = vmatpush1.msra.mxu0 %v3088
    %3181 = vmatprep.subr.mxu0 0.0
    %3182 = vmatpush1.msra.mxu0 %v3087
    %3183 = vmatprep.subr.mxu0 0.0
    %3184 = vmatpush2.msra.mxu0 %v3118
    %3185 = vmatprep.subr.mxu0 0.0
    %3186 = vmatpush2.msra.mxu0 %v3117
    %3187 = vmatprep.subr.mxu0 0.0
    %3188 = vmatpush2.msra.mxu0 %v3116
    %3189 = vmatprep.subr.mxu0 0.0
    %3190 = vmatpush2.msra.mxu0 %v3115
    %3191 = vmatprep.subr.mxu0 0.0
    %3192 = vmatpush2.msra.mxu0 %v3114
    %3193 = vmatprep.subr.mxu0 0.0
    %3194 = vmatpush2.msra.mxu0 %v3113
    %3195 = vmatprep.subr.mxu0 0.0
    %3196 = vmatpush2.msra.mxu0 %v3112
    %3197 = vmatprep.subr.mxu0 0.0
    %3198 = vmatpush2.msra.mxu0 %v3111
    %3199 = vmatprep.subr.mxu0 0.0
    %3200 = vmatpush2.msra.mxu0 %v3110
    %3201 = vmatprep.subr.mxu0 0.0
    %3202 = vmatpush2.msra.mxu0 %v3109
    %3203 = vmatprep.subr.mxu0 0.0
    %3204 = vmatpush2.msra.mxu0 %v3108
    %3205 = vmatprep.subr.mxu0 0.0
    %3206 = vmatpush2.msra.mxu0 %v3107
    %3207 = vmatprep.subr.mxu0 0.0
    %3208 = vmatpush2.msra.mxu0 %v3106
    %3209 = vmatprep.subr.mxu0 0.0
    %3210 = vmatpush2.msra.mxu0 %v3105
    %3211 = vmatprep.subr.mxu0 0.0
    %3212 = vmatpush2.msra.mxu0 %v3104
    %3213 = vmatprep.subr.mxu0 0.0
    %3214 = vmatpush2.msra.mxu0 %v3103
    %3215 = vmatprep.mubr.f32.mxu0 %v3072
    %3216 = vmatmul.mubr.f32.gmra.mxu0 %v3065
    %v3217 = vpop.f32.mrf.mxu0
    %v3218 = vadd.f32 0.0, %v3217
    %v3219 = vpop.f32.mrf.mxu0
    %3220 = vdwg.mxu0
    %3221 = vmatprep.subr.mxu0 0.0
    %3222 = vmatpush1.msra.mxu0 %v3134
    %3223 = vmatprep.subr.mxu0 0.0
    %3224 = vmatpush1.msra.mxu0 %v3133
    %3225 = vmatprep.subr.mxu0 0.0
    %3226 = vmatpush1.msra.mxu0 %v3132
    %3227 = vmatprep.subr.mxu0 0.0
    %3228 = vmatpush1.msra.mxu0 %v3131
    %3229 = vmatprep.subr.mxu0 0.0
    %3230 = vmatpush1.msra.mxu0 %v3130
    %3231 = vmatprep.subr.mxu0 0.0
    %3232 = vmatpush1.msra.mxu0 %v3129
    %3233 = vmatprep.subr.mxu0 0.0
    %3234 = vmatpush1.msra.mxu0 %v3128
    %3235 = vmatprep.subr.mxu0 0.0
    %3236 = vmatpush1.msra.mxu0 %v3127
    %3237 = vmatprep.subr.mxu0 0.0
    %3238 = vmatpush1.msra.mxu0 %v3126
    %3239 = vmatprep.subr.mxu0 0.0
    %3240 = vmatpush1.msra.mxu0 %v3125
    %3241 = vmatprep.subr.mxu0 0.0
    %3242 = vmatpush1.msra.mxu0 %v3124
    %3243 = vmatprep.subr.mxu0 0.0
    %3244 = vmatpush1.msra.mxu0 %v3123
    %3245 = vmatprep.subr.mxu0 0.0
    %3246 = vmatpush1.msra.mxu0 %v3122
    %3247 = vmatprep.subr.mxu0 0.0
    %3248 = vmatpush1.msra.mxu0 %v3121
    %3249 = vmatprep.subr.mxu0 0.0
    %3250 = vmatpush1.msra.mxu0 %v3120
    %3251 = vmatprep.subr.mxu0 0.0
    %3252 = vmatpush1.msra.mxu0 %v3119
    %3253 = vmatprep.subr.mxu0 0.0
    %3254 = vmatpush2.msra.mxu0 %v3150
    %3255 = vmatprep.subr.mxu0 0.0
    %3256 = vmatpush2.msra.mxu0 %v3149
    %3257 = vmatprep.subr.mxu0 0.0
    %3258 = vmatpush2.msra.mxu0 %v3148
    %3259 = vmatprep.subr.mxu0 0.0
    %3260 = vmatpush2.msra.mxu0 %v3147
    %3261 = vmatprep.subr.mxu0 0.0
    %3262 = vmatpush2.msra.mxu0 %v3146
    %3263 = vmatprep.subr.mxu0 0.0
    %3264 = vmatpush2.msra.mxu0 %v3145
    %3265 = vmatprep.subr.mxu0 0.0
    %3266 = vmatpush2.msra.mxu0 %v3144
    %3267 = vmatprep.subr.mxu0 0.0
    %3268 = vmatpush2.msra.mxu0 %v3143
    %3269 = vmatprep.subr.mxu0 0.0
    %3270 = vmatpush2.msra.mxu0 %v3142
    %3271 = vmatprep.subr.mxu0 0.0
    %3272 = vmatpush2.msra.mxu0 %v3141
    %3273 = vmatprep.subr.mxu0 0.0
    %3274 = vmatpush2.msra.mxu0 %v3140
    %3275 = vmatprep.subr.mxu0 0.0
    %3276 = vmatpush2.msra.mxu0 %v3139
    %3277 = vmatprep.subr.mxu0 0.0
    %3278 = vmatpush2.msra.mxu0 %v3138
    %3279 = vmatprep.subr.mxu0 0.0
    %3280 = vmatpush2.msra.mxu0 %v3137
    %3281 = vmatprep.subr.mxu0 0.0
    %3282 = vmatpush2.msra.mxu0 %v3136
    %3283 = vmatprep.subr.mxu0 0.0
    %3284 = vmatpush2.msra.mxu0 %v3135
    %3285 = vmatprep.mubr.f32.mxu0 %v3086
    %3286 = vmatmul.mubr.f32.gmra.mxu0 %v3079
    %v3287 = vpop.f32.mrf.mxu0
    %v3288 = vadd.f32 %v3218, %v3287
    %v3289 = vpop.f32.mrf.mxu0
    %3290 = vdwg.mxu0
    %v3291 = vmul.f32 %v3288, 0.03125
    %v3292 = vld [vmem:[#allocation5] sm:$0xff]
    %v3293 = vld [vmem:[#allocation5 + $0x8] sm:$0xff]
    %v3294 = vld [vmem:[#allocation5 + $0x10] sm:$0xff]
    %v3295 = vld [vmem:[#allocation5 + $0x18] sm:$0xff]
    %v3296 = vld [vmem:[#allocation5 + $0x20] sm:$0xff]
    %v3297 = vld [vmem:[#allocation5 + $0x28] sm:$0xff]
    %v3298 = vld [vmem:[#allocation5 + $0x30] sm:$0xff]
    %v3299 = vld [vmem:[#allocation5 + $0x38] sm:$0xff]
    %v3300 = vld [vmem:[#allocation5 + $0x40] sm:$0xff]
    %v3301 = vld [vmem:[#allocation5 + $0x48] sm:$0xff]
    %v3302 = vld [vmem:[#allocation5 + $0x50] sm:$0xff]
    %v3303 = vld [vmem:[#allocation5 + $0x58] sm:$0xff]
    %v3304 = vld [vmem:[#allocation5 + $0x60] sm:$0xff]
    %v3305 = vld [vmem:[#allocation5 + $0x68] sm:$0xff]
    %v3306 = vld [vmem:[#allocation5 + $0x70] sm:$0xff]
    %v3307 = vld [vmem:[#allocation5 + $0x78] sm:$0xff]
    %vm3308 = vcmask 261120
    %v3310 = vsel %vm3308, %v3291, 0
    %3312 = vmatprep.subr.mxu0 0.0
    %3313 = vmatpush1.msra.mxu0 0.0
    %3314 = vmatprep.subr.mxu0 0.0
    %3315 = vmatpush1.msra.mxu0 0.0
    %3316 = vmatprep.subr.mxu0 0.0
    %3317 = vmatpush1.msra.mxu0 0.0
    %3318 = vmatprep.subr.mxu0 0.0
    %3319 = vmatpush1.msra.mxu0 0.0
    %3320 = vmatprep.subr.mxu0 0.0
    %3321 = vmatpush1.msra.mxu0 0.0
    %3322 = vmatprep.subr.mxu0 0.0
    %3323 = vmatpush1.msra.mxu0 0.0
    %3324 = vmatprep.subr.mxu0 0.0
    %3325 = vmatpush1.msra.mxu0 0.0
    %3326 = vmatprep.subr.mxu0 0.0
    %3327 = vmatpush1.msra.mxu0 0.0
    %3328 = vmatprep.subr.mxu0 0.0
    %3329 = vmatpush1.msra.mxu0 0.0
    %3330 = vmatprep.subr.mxu0 0.0
    %3331 = vmatpush1.msra.mxu0 0.0
    %3332 = vmatprep.subr.mxu0 0.0
    %3333 = vmatpush1.msra.mxu0 0.0
    %3334 = vmatprep.subr.mxu0 0.0
    %3335 = vmatpush1.msra.mxu0 0.0
    %3336 = vmatprep.subr.mxu0 %v3305
    %3337 = vmatpush1.msra.mxu0 %v3304
    %3338 = vmatprep.subr.mxu0 %v3301
    %3339 = vmatpush1.msra.mxu0 %v3300
    %3340 = vmatprep.subr.mxu0 %v3297
    %3341 = vmatpush1.msra.mxu0 %v3296
    %3342 = vmatprep.subr.mxu0 %v3293
    %3343 = vmatpush1.msra.mxu0 %v3292
    %3344 = vmatprep.subr.mxu0 0.0
    %3345 = vmatpush2.msra.mxu0 0.0
    %3346 = vmatprep.subr.mxu0 0.0
    %3347 = vmatpush2.msra.mxu0 0.0
    %3348 = vmatprep.subr.mxu0 0.0
    %3349 = vmatpush2.msra.mxu0 0.0
    %3350 = vmatprep.subr.mxu0 0.0
    %3351 = vmatpush2.msra.mxu0 0.0
    %3352 = vmatprep.subr.mxu0 0.0
    %3353 = vmatpush2.msra.mxu0 0.0
    %3354 = vmatprep.subr.mxu0 0.0
    %3355 = vmatpush2.msra.mxu0 0.0
    %3356 = vmatprep.subr.mxu0 0.0
    %3357 = vmatpush2.msra.mxu0 0.0
    %3358 = vmatprep.subr.mxu0 0.0
    %3359 = vmatpush2.msra.mxu0 0.0
    %3360 = vmatprep.subr.mxu0 0.0
    %3361 = vmatpush2.msra.mxu0 0.0
    %3362 = vmatprep.subr.mxu0 0.0
    %3363 = vmatpush2.msra.mxu0 0.0
    %3364 = vmatprep.subr.mxu0 0.0
    %3365 = vmatpush2.msra.mxu0 0.0
    %3366 = vmatprep.subr.mxu0 0.0
    %3367 = vmatpush2.msra.mxu0 0.0
    %3368 = vmatprep.subr.mxu0 0.0
    %3369 = vmatpush2.msra.mxu0 0.0
    %3370 = vmatprep.subr.mxu0 0.0
    %3371 = vmatpush2.msra.mxu0 0.0
    %3372 = vmatprep.subr.mxu0 0.0
    %3373 = vmatpush2.msra.mxu0 0.0
    %3374 = vmatprep.subr.mxu0 0.0
    %3375 = vmatpush2.msra.mxu0 0.0
    %3376 = vmatprep.mubr.f32.mxu0 0.0
    %3377 = vmatmul.mubr.f32.gmra.mxu0 %v3310
    %v3378 = vpop.f32.mrf.mxu0
    %v3379 = vadd.f32 0.0, %v3378
    %v3380 = vpop.f32.mrf.mxu0
    %v3381 = vadd.f32 0.0, %v3380
    %3382 = vdwg.mxu0
    %3383 = vmatprep.subr.mxu0 0.0
    %3384 = vmatpush1.msra.mxu0 0.0
    %3385 = vmatprep.subr.mxu0 0.0
    %3386 = vmatpush1.msra.mxu0 0.0
    %3387 = vmatprep.subr.mxu0 0.0
    %3388 = vmatpush1.msra.mxu0 0.0
    %3389 = vmatprep.subr.mxu0 0.0
    %3390 = vmatpush1.msra.mxu0 0.0
    %3391 = vmatprep.subr.mxu0 0.0
    %3392 = vmatpush1.msra.mxu0 0.0
    %3393 = vmatprep.subr.mxu0 0.0
    %3394 = vmatpush1.msra.mxu0 0.0
    %3395 = vmatprep.subr.mxu0 0.0
    %3396 = vmatpush1.msra.mxu0 0.0
    %3397 = vmatprep.subr.mxu0 0.0
    %3398 = vmatpush1.msra.mxu0 0.0
    %3399 = vmatprep.subr.mxu0 0.0
    %3400 = vmatpush1.msra.mxu0 0.0
    %3401 = vmatprep.subr.mxu0 0.0
    %3402 = vmatpush1.msra.mxu0 0.0
    %3403 = vmatprep.subr.mxu0 0.0
    %3404 = vmatpush1.msra.mxu0 0.0
    %3405 = vmatprep.subr.mxu0 0.0
    %3406 = vmatpush1.msra.mxu0 0.0
    %3407 = vmatprep.subr.mxu0 %v3307
    %3408 = vmatpush1.msra.mxu0 %v3306
    %3409 = vmatprep.subr.mxu0 %v3303
    %3410 = vmatpush1.msra.mxu0 %v3302
    %3411 = vmatprep.subr.mxu0 %v3299
    %3412 = vmatpush1.msra.mxu0 %v3298
    %3413 = vmatprep.subr.mxu0 %v3295
    %3414 = vmatpush1.msra.mxu0 %v3294
    %3415 = vmatprep.subr.mxu0 0.0
    %3416 = vmatpush2.msra.mxu0 0.0
    %3417 = vmatprep.subr.mxu0 0.0
    %3418 = vmatpush2.msra.mxu0 0.0
    %3419 = vmatprep.subr.mxu0 0.0
    %3420 = vmatpush2.msra.mxu0 0.0
    %3421 = vmatprep.subr.mxu0 0.0
    %3422 = vmatpush2.msra.mxu0 0.0
    %3423 = vmatprep.subr.mxu0 0.0
    %3424 = vmatpush2.msra.mxu0 0.0
    %3425 = vmatprep.subr.mxu0 0.0
    %3426 = vmatpush2.msra.mxu0 0.0
    %3427 = vmatprep.subr.mxu0 0.0
    %3428 = vmatpush2.msra.mxu0 0.0
    %3429 = vmatprep.subr.mxu0 0.0
    %3430 = vmatpush2.msra.mxu0 0.0
    %3431 = vmatprep.subr.mxu0 0.0
    %3432 = vmatpush2.msra.mxu0 0.0
    %3433 = vmatprep.subr.mxu0 0.0
    %3434 = vmatpush2.msra.mxu0 0.0
    %3435 = vmatprep.subr.mxu0 0.0
    %3436 = vmatpush2.msra.mxu0 0.0
    %3437 = vmatprep.subr.mxu0 0.0
    %3438 = vmatpush2.msra.mxu0 0.0
    %3439 = vmatprep.subr.mxu0 0.0
    %3440 = vmatpush2.msra.mxu0 0.0
    %3441 = vmatprep.subr.mxu0 0.0
    %3442 = vmatpush2.msra.mxu0 0.0
    %3443 = vmatprep.subr.mxu0 0.0
    %3444 = vmatpush2.msra.mxu0 0.0
    %3445 = vmatprep.subr.mxu0 0.0
    %3446 = vmatpush2.msra.mxu0 0.0
    %3447 = vmatprep.mubr.f32.mxu0 0.0
    %3448 = vmatmul.mubr.f32.gmra.mxu0 %v3310
    %v3449 = vpop.f32.mrf.mxu0
    %v3450 = vadd.f32 0.0, %v3449
    %v3451 = vpop.f32.mrf.mxu0
    %v3452 = vadd.f32 0.0, %v3451
    %3453 = vdwg.mxu0
    %v3454 = vlaneseq
    %v3455 = vshrl.u32 %v3454, 7
    %v3456 = vsub.s32 0, %v3455
    %v3457 = vrot.slane %v3379, %v3456
    %v3458 = vlaneseq
    %v3459 = vshrl.u32 %v3458, 7
    %v3460 = vsub.s32 0, %v3459
    %v3461 = vrot.slane %v3381, %v3460
    %v3462 = vlaneseq
    %v3463 = vshrl.u32 %v3462, 7
    %v3464 = vsub.s32 0, %v3463
    %v3465 = vrot.slane %v3450, %v3464
    %v3466 = vlaneseq
    %v3467 = vshrl.u32 %v3466, 7
    %v3468 = vsub.s32 0, %v3467
    %v3469 = vrot.slane %v3452, %v3468
    %v3470 = vsub.f32 %v3054, %v3457
    %v3471 = vsub.f32 %v3055, %v3461
    %v3472 = vsub.f32 %v3056, %v3465
    %v3473 = vsub.f32 %v3057, %v3469
    %v3474 = vmul.f32 %v3470, %v3470
    %v3475 = vmul.f32 %v3471, %v3471
    %v3476 = vmul.f32 %v3472, %v3472
    %v3477 = vmul.f32 %v3473, %v3473
    %v3478 = vsel %vm3058, %v3474, 0.0
    %v3479 = vrot.slane %v3478, 4
    %v3480 = vadd.f32 %v3478, %v3479
    %v3481 = vrot.slane %v3480, 2
    %v3482 = vadd.f32 %v3480, %v3481
    %v3483 = vrot.slane %v3482, 1
    %v3484 = vadd.f32 %v3482, %v3483
    %v3485 = vsel %vm3058, %v3475, 0.0
    %v3486 = vrot.slane %v3485, 4
    %v3487 = vadd.f32 %v3485, %v3486
    %v3488 = vrot.slane %v3487, 2
    %v3489 = vadd.f32 %v3487, %v3488
    %v3490 = vrot.slane %v3489, 1
    %v3491 = vadd.f32 %v3489, %v3490
    %v3492 = vsel %vm3058, %v3476, 0.0
    %v3493 = vrot.slane %v3492, 4
    %v3494 = vadd.f32 %v3492, %v3493
    %v3495 = vrot.slane %v3494, 2
    %v3496 = vadd.f32 %v3494, %v3495
    %v3497 = vrot.slane %v3496, 1
    %v3498 = vadd.f32 %v3496, %v3497
    %v3499 = vsel %vm3058, %v3477, 0.0
    %v3500 = vrot.slane %v3499, 4
    %v3501 = vadd.f32 %v3499, %v3500
    %v3502 = vrot.slane %v3501, 2
    %v3503 = vadd.f32 %v3501, %v3502
    %v3504 = vrot.slane %v3503, 1
    %v3505 = vadd.f32 %v3503, %v3504
    %3506 = vmatprep.subr.mxu0 0.0
    %3507 = vmatpush1.msra.mxu0 %v3102
    %3508 = vmatprep.subr.mxu0 0.0
    %3509 = vmatpush1.msra.mxu0 %v3101
    %3510 = vmatprep.subr.mxu0 0.0
    %3511 = vmatpush1.msra.mxu0 %v3100
    %3512 = vmatprep.subr.mxu0 0.0
    %3513 = vmatpush1.msra.mxu0 %v3099
    %3514 = vmatprep.subr.mxu0 0.0
    %3515 = vmatpush1.msra.mxu0 %v3098
    %3516 = vmatprep.subr.mxu0 0.0
    %3517 = vmatpush1.msra.mxu0 %v3097
    %3518 = vmatprep.subr.mxu0 0.0
    %3519 = vmatpush1.msra.mxu0 %v3096
    %3520 = vmatprep.subr.mxu0 0.0
    %3521 = vmatpush1.msra.mxu0 %v3095
    %3522 = vmatprep.subr.mxu0 0.0
    %3523 = vmatpush1.msra.mxu0 %v3094
    %3524 = vmatprep.subr.mxu0 0.0
    %3525 = vmatpush1.msra.mxu0 %v3093
    %3526 = vmatprep.subr.mxu0 0.0
    %3527 = vmatpush1.msra.mxu0 %v3092
    %3528 = vmatprep.subr.mxu0 0.0
    %3529 = vmatpush1.msra.mxu0 %v3091
    %3530 = vmatprep.subr.mxu0 0.0
    %3531 = vmatpush1.msra.mxu0 %v3090
    %3532 = vmatprep.subr.mxu0 0.0
    %3533 = vmatpush1.msra.mxu0 %v3089
    %3534 = vmatprep.subr.mxu0 0.0
    %3535 = vmatpush1.msra.mxu0 %v3088
    %3536 = vmatprep.subr.mxu0 0.0
    %3537 = vmatpush1.msra.mxu0 %v3087
    %3538 = vmatprep.subr.mxu0 0.0
    %3539 = vmatpush2.msra.mxu0 %v3118
    %3540 = vmatprep.subr.mxu0 0.0
    %3541 = vmatpush2.msra.mxu0 %v3117
    %3542 = vmatprep.subr.mxu0 0.0
    %3543 = vmatpush2.msra.mxu0 %v3116
    %3544 = vmatprep.subr.mxu0 0.0
    %3545 = vmatpush2.msra.mxu0 %v3115
    %3546 = vmatprep.subr.mxu0 0.0
    %3547 = vmatpush2.msra.mxu0 %v3114
    %3548 = vmatprep.subr.mxu0 0.0
    %3549 = vmatpush2.msra.mxu0 %v3113
    %3550 = vmatprep.subr.mxu0 0.0
    %3551 = vmatpush2.msra.mxu0 %v3112
    %3552 = vmatprep.subr.mxu0 0.0
    %3553 = vmatpush2.msra.mxu0 %v3111
    %3554 = vmatprep.subr.mxu0 0.0
    %3555 = vmatpush2.msra.mxu0 %v3110
    %3556 = vmatprep.subr.mxu0 0.0
    %3557 = vmatpush2.msra.mxu0 %v3109
    %3558 = vmatprep.subr.mxu0 0.0
    %3559 = vmatpush2.msra.mxu0 %v3108
    %3560 = vmatprep.subr.mxu0 0.0
    %3561 = vmatpush2.msra.mxu0 %v3107
    %3562 = vmatprep.subr.mxu0 0.0
    %3563 = vmatpush2.msra.mxu0 %v3106
    %3564 = vmatprep.subr.mxu0 0.0
    %3565 = vmatpush2.msra.mxu0 %v3105
    %3566 = vmatprep.subr.mxu0 0.0
    %3567 = vmatpush2.msra.mxu0 %v3104
    %3568 = vmatprep.subr.mxu0 0.0
    %3569 = vmatpush2.msra.mxu0 %v3103
    %3570 = vmatprep.mubr.f32.mxu0 %v3491
    %3571 = vmatmul.mubr.f32.gmra.mxu0 %v3484
    %v3572 = vpop.f32.mrf.mxu0
    %v3573 = vadd.f32 0.0, %v3572
    %v3574 = vpop.f32.mrf.mxu0
    %3575 = vdwg.mxu0
    %3576 = vmatprep.subr.mxu0 0.0
    %3577 = vmatpush1.msra.mxu0 %v3134
    %3578 = vmatprep.subr.mxu0 0.0
    %3579 = vmatpush1.msra.mxu0 %v3133
    %3580 = vmatprep.subr.mxu0 0.0
    %3581 = vmatpush1.msra.mxu0 %v3132
    %3582 = vmatprep.subr.mxu0 0.0
    %3583 = vmatpush1.msra.mxu0 %v3131
    %3584 = vmatprep.subr.mxu0 0.0
    %3585 = vmatpush1.msra.mxu0 %v3130
    %3586 = vmatprep.subr.mxu0 0.0
    %3587 = vmatpush1.msra.mxu0 %v3129
    %3588 = vmatprep.subr.mxu0 0.0
    %3589 = vmatpush1.msra.mxu0 %v3128
    %3590 = vmatprep.subr.mxu0 0.0
    %3591 = vmatpush1.msra.mxu0 %v3127
    %3592 = vmatprep.subr.mxu0 0.0
    %3593 = vmatpush1.msra.mxu0 %v3126
    %3594 = vmatprep.subr.mxu0 0.0
    %3595 = vmatpush1.msra.mxu0 %v3125
    %3596 = vmatprep.subr.mxu0 0.0
    %3597 = vmatpush1.msra.mxu0 %v3124
    %3598 = vmatprep.subr.mxu0 0.0
    %3599 = vmatpush1.msra.mxu0 %v3123
    %3600 = vmatprep.subr.mxu0 0.0
    %3601 = vmatpush1.msra.mxu0 %v3122
    %3602 = vmatprep.subr.mxu0 0.0
    %3603 = vmatpush1.msra.mxu0 %v3121
    %3604 = vmatprep.subr.mxu0 0.0
    %3605 = vmatpush1.msra.mxu0 %v3120
    %3606 = vmatprep.subr.mxu0 0.0
    %3607 = vmatpush1.msra.mxu0 %v3119
    %3608 = vmatprep.subr.mxu0 0.0
    %3609 = vmatpush2.msra.mxu0 %v3150
    %3610 = vmatprep.subr.mxu0 0.0
    %3611 = vmatpush2.msra.mxu0 %v3149
    %3612 = vmatprep.subr.mxu0 0.0
    %3613 = vmatpush2.msra.mxu0 %v3148
    %3614 = vmatprep.subr.mxu0 0.0
    %3615 = vmatpush2.msra.mxu0 %v3147
    %3616 = vmatprep.subr.mxu0 0.0
    %3617 = vmatpush2.msra.mxu0 %v3146
    %3618 = vmatprep.subr.mxu0 0.0
    %3619 = vmatpush2.msra.mxu0 %v3145
    %3620 = vmatprep.subr.mxu0 0.0
    %3621 = vmatpush2.msra.mxu0 %v3144
    %3622 = vmatprep.subr.mxu0 0.0
    %3623 = vmatpush2.msra.mxu0 %v3143
    %3624 = vmatprep.subr.mxu0 0.0
    %3625 = vmatpush2.msra.mxu0 %v3142
    %3626 = vmatprep.subr.mxu0 0.0
    %3627 = vmatpush2.msra.mxu0 %v3141
    %3628 = vmatprep.subr.mxu0 0.0
    %3629 = vmatpush2.msra.mxu0 %v3140
    %3630 = vmatprep.subr.mxu0 0.0
    %3631 = vmatpush2.msra.mxu0 %v3139
    %3632 = vmatprep.subr.mxu0 0.0
    %3633 = vmatpush2.msra.mxu0 %v3138
    %3634 = vmatprep.subr.mxu0 0.0
    %3635 = vmatpush2.msra.mxu0 %v3137
    %3636 = vmatprep.subr.mxu0 0.0
    %3637 = vmatpush2.msra.mxu0 %v3136
    %3638 = vmatprep.subr.mxu0 0.0
    %3639 = vmatpush2.msra.mxu0 %v3135
    %3640 = vmatprep.mubr.f32.mxu0 %v3505
    %3641 = vmatmul.mubr.f32.gmra.mxu0 %v3498
    %v3642 = vpop.f32.mrf.mxu0
    %v3643 = vadd.f32 %v3573, %v3642
    %v3644 = vpop.f32.mrf.mxu0
    %3645 = vdwg.mxu0
    %v3646 = vmul.f32 %v3643, 0.03125
    %v3647 = vld [vmem:[%s7] sm:$0x1]
    %v3648 = vadd.f32 %v3646, 0.8
    %v3649 = vrsqrt.pop %v3648
    %v3650 = vmul.f32 %v3647, %v3649
    %v3652 = vsel %vm3308, %v3650, 0
    %3654 = vmatprep.subr.mxu0 0.0
    %3655 = vmatpush1.msra.mxu0 0.0
    %3656 = vmatprep.subr.mxu0 0.0
    %3657 = vmatpush1.msra.mxu0 0.0
    %3658 = vmatprep.subr.mxu0 0.0
    %3659 = vmatpush1.msra.mxu0 0.0
    %3660 = vmatprep.subr.mxu0 0.0
    %3661 = vmatpush1.msra.mxu0 0.0
    %3662 = vmatprep.subr.mxu0 0.0
    %3663 = vmatpush1.msra.mxu0 0.0
    %3664 = vmatprep.subr.mxu0 0.0
    %3665 = vmatpush1.msra.mxu0 0.0
    %3666 = vmatprep.subr.mxu0 0.0
    %3667 = vmatpush1.msra.mxu0 0.0
    %3668 = vmatprep.subr.mxu0 0.0
    %3669 = vmatpush1.msra.mxu0 0.0
    %3670 = vmatprep.subr.mxu0 0.0
    %3671 = vmatpush1.msra.mxu0 0.0
    %3672 = vmatprep.subr.mxu0 0.0
    %3673 = vmatpush1.msra.mxu0 0.0
    %3674 = vmatprep.subr.mxu0 0.0
    %3675 = vmatpush1.msra.mxu0 0.0
    %3676 = vmatprep.subr.mxu0 0.0
    %3677 = vmatpush1.msra.mxu0 0.0
    %3678 = vmatprep.subr.mxu0 %v3305
    %3679 = vmatpush1.msra.mxu0 %v3304
    %3680 = vmatprep.subr.mxu0 %v3301
    %3681 = vmatpush1.msra.mxu0 %v3300
    %3682 = vmatprep.subr.mxu0 %v3297
    %3683 = vmatpush1.msra.mxu0 %v3296
    %3684 = vmatprep.subr.mxu0 %v3293
    %3685 = vmatpush1.msra.mxu0 %v3292
    %3686 = vmatprep.subr.mxu0 0.0
    %3687 = vmatpush2.msra.mxu0 0.0
    %3688 = vmatprep.subr.mxu0 0.0
    %3689 = vmatpush2.msra.mxu0 0.0
    %3690 = vmatprep.subr.mxu0 0.0
    %3691 = vmatpush2.msra.mxu0 0.0
    %3692 = vmatprep.subr.mxu0 0.0
    %3693 = vmatpush2.msra.mxu0 0.0
    %3694 = vmatprep.subr.mxu0 0.0
    %3695 = vmatpush2.msra.mxu0 0.0
    %3696 = vmatprep.subr.mxu0 0.0
    %3697 = vmatpush2.msra.mxu0 0.0
    %3698 = vmatprep.subr.mxu0 0.0
    %3699 = vmatpush2.msra.mxu0 0.0
    %3700 = vmatprep.subr.mxu0 0.0
    %3701 = vmatpush2.msra.mxu0 0.0
    %3702 = vmatprep.subr.mxu0 0.0
    %3703 = vmatpush2.msra.mxu0 0.0
    %3704 = vmatprep.subr.mxu0 0.0
    %3705 = vmatpush2.msra.mxu0 0.0
    %3706 = vmatprep.subr.mxu0 0.0
    %3707 = vmatpush2.msra.mxu0 0.0
    %3708 = vmatprep.subr.mxu0 0.0
    %3709 = vmatpush2.msra.mxu0 0.0
    %3710 = vmatprep.subr.mxu0 0.0
    %3711 = vmatpush2.msra.mxu0 0.0
    %3712 = vmatprep.subr.mxu0 0.0
    %3713 = vmatpush2.msra.mxu0 0.0
    %3714 = vmatprep.subr.mxu0 0.0
    %3715 = vmatpush2.msra.mxu0 0.0
    %3716 = vmatprep.subr.mxu0 0.0
    %3717 = vmatpush2.msra.mxu0 0.0
    %3718 = vmatprep.mubr.f32.mxu0 0.0
    %3719 = vmatmul.mubr.f32.gmra.mxu0 %v3652
    %v3720 = vpop.f32.mrf.mxu0
    %v3721 = vadd.f32 0.0, %v3720
    %v3722 = vpop.f32.mrf.mxu0
    %v3723 = vadd.f32 0.0, %v3722
    %3724 = vdwg.mxu0
    %3725 = vmatprep.subr.mxu0 0.0
    %3726 = vmatpush1.msra.mxu0 0.0
    %3727 = vmatprep.subr.mxu0 0.0
    %3728 = vmatpush1.msra.mxu0 0.0
    %3729 = vmatprep.subr.mxu0 0.0
    %3730 = vmatpush1.msra.mxu0 0.0
    %3731 = vmatprep.subr.mxu0 0.0
    %3732 = vmatpush1.msra.mxu0 0.0
    %3733 = vmatprep.subr.mxu0 0.0
    %3734 = vmatpush1.msra.mxu0 0.0
    %3735 = vmatprep.subr.mxu0 0.0
    %3736 = vmatpush1.msra.mxu0 0.0
    %3737 = vmatprep.subr.mxu0 0.0
    %3738 = vmatpush1.msra.mxu0 0.0
    %3739 = vmatprep.subr.mxu0 0.0
    %3740 = vmatpush1.msra.mxu0 0.0
    %3741 = vmatprep.subr.mxu0 0.0
    %3742 = vmatpush1.msra.mxu0 0.0
    %3743 = vmatprep.subr.mxu0 0.0
    %3744 = vmatpush1.msra.mxu0 0.0
    %3745 = vmatprep.subr.mxu0 0.0
    %3746 = vmatpush1.msra.mxu0 0.0
    %3747 = vmatprep.subr.mxu0 0.0
    %3748 = vmatpush1.msra.mxu0 0.0
    %3749 = vmatprep.subr.mxu0 %v3307
    %3750 = vmatpush1.msra.mxu0 %v3306
    %3751 = vmatprep.subr.mxu0 %v3303
    %3752 = vmatpush1.msra.mxu0 %v3302
    %3753 = vmatprep.subr.mxu0 %v3299
    %3754 = vmatpush1.msra.mxu0 %v3298
    %3755 = vmatprep.subr.mxu0 %v3295
    %3756 = vmatpush1.msra.mxu0 %v3294
    %3757 = vmatprep.subr.mxu0 0.0
    %3758 = vmatpush2.msra.mxu0 0.0
    %3759 = vmatprep.subr.mxu0 0.0
    %3760 = vmatpush2.msra.mxu0 0.0
    %3761 = vmatprep.subr.mxu0 0.0
    %3762 = vmatpush2.msra.mxu0 0.0
    %3763 = vmatprep.subr.mxu0 0.0
    %3764 = vmatpush2.msra.mxu0 0.0
    %3765 = vmatprep.subr.mxu0 0.0
    %3766 = vmatpush2.msra.mxu0 0.0
    %3767 = vmatprep.subr.mxu0 0.0
    %3768 = vmatpush2.msra.mxu0 0.0
    %3769 = vmatprep.subr.mxu0 0.0
    %3770 = vmatpush2.msra.mxu0 0.0
    %3771 = vmatprep.subr.mxu0 0.0
    %3772 = vmatpush2.msra.mxu0 0.0
    %3773 = vmatprep.subr.mxu0 0.0
    %3774 = vmatpush2.msra.mxu0 0.0
    %3775 = vmatprep.subr.mxu0 0.0
    %3776 = vmatpush2.msra.mxu0 0.0
    %3777 = vmatprep.subr.mxu0 0.0
    %3778 = vmatpush2.msra.mxu0 0.0
    %3779 = vmatprep.subr.mxu0 0.0
    %3780 = vmatpush2.msra.mxu0 0.0
    %3781 = vmatprep.subr.mxu0 0.0
    %3782 = vmatpush2.msra.mxu0 0.0
    %3783 = vmatprep.subr.mxu0 0.0
    %3784 = vmatpush2.msra.mxu0 0.0
    %3785 = vmatprep.subr.mxu0 0.0
    %3786 = vmatpush2.msra.mxu0 0.0
    %3787 = vmatprep.subr.mxu0 0.0
    %3788 = vmatpush2.msra.mxu0 0.0
    %3789 = vmatprep.mubr.f32.mxu0 0.0
    %3790 = vmatmul.mubr.f32.gmra.mxu0 %v3652
    %v3791 = vpop.f32.mrf.mxu0
    %v3792 = vadd.f32 0.0, %v3791
    %v3793 = vpop.f32.mrf.mxu0
    %v3794 = vadd.f32 0.0, %v3793
    %3795 = vdwg.mxu0
    %v3796 = vld [vmem:[%s8] sm:$0x1]
    %v3798 = vsel %vm3308, %v3796, 0
    %3800 = vmatprep.subr.mxu0 0.0
    %3801 = vmatpush1.msra.mxu0 0.0
    %3802 = vmatprep.subr.mxu0 0.0
    %3803 = vmatpush1.msra.mxu0 0.0
    %3804 = vmatprep.subr.mxu0 0.0
    %3805 = vmatpush1.msra.mxu0 0.0
    %3806 = vmatprep.subr.mxu0 0.0
    %3807 = vmatpush1.msra.mxu0 0.0
    %3808 = vmatprep.subr.mxu0 0.0
    %3809 = vmatpush1.msra.mxu0 0.0
    %3810 = vmatprep.subr.mxu0 0.0
    %3811 = vmatpush1.msra.mxu0 0.0
    %3812 = vmatprep.subr.mxu0 0.0
    %3813 = vmatpush1.msra.mxu0 0.0
    %3814 = vmatprep.subr.mxu0 0.0
    %3815 = vmatpush1.msra.mxu0 0.0
    %3816 = vmatprep.subr.mxu0 0.0
    %3817 = vmatpush1.msra.mxu0 0.0
    %3818 = vmatprep.subr.mxu0 0.0
    %3819 = vmatpush1.msra.mxu0 0.0
    %3820 = vmatprep.subr.mxu0 0.0
    %3821 = vmatpush1.msra.mxu0 0.0
    %3822 = vmatprep.subr.mxu0 0.0
    %3823 = vmatpush1.msra.mxu0 0.0
    %3824 = vmatprep.subr.mxu0 %v3305
    %3825 = vmatpush1.msra.mxu0 %v3304
    %3826 = vmatprep.subr.mxu0 %v3301
    %3827 = vmatpush1.msra.mxu0 %v3300
    %3828 = vmatprep.subr.mxu0 %v3297
    %3829 = vmatpush1.msra.mxu0 %v3296
    %3830 = vmatprep.subr.mxu0 %v3293
    %3831 = vmatpush1.msra.mxu0 %v3292
    %3832 = vmatprep.subr.mxu0 0.0
    %3833 = vmatpush2.msra.mxu0 0.0
    %3834 = vmatprep.subr.mxu0 0.0
    %3835 = vmatpush2.msra.mxu0 0.0
    %3836 = vmatprep.subr.mxu0 0.0
    %3837 = vmatpush2.msra.mxu0 0.0
    %3838 = vmatprep.subr.mxu0 0.0
    %3839 = vmatpush2.msra.mxu0 0.0
    %3840 = vmatprep.subr.mxu0 0.0
    %3841 = vmatpush2.msra.mxu0 0.0
    %3842 = vmatprep.subr.mxu0 0.0
    %3843 = vmatpush2.msra.mxu0 0.0
    %3844 = vmatprep.subr.mxu0 0.0
    %3845 = vmatpush2.msra.mxu0 0.0
    %3846 = vmatprep.subr.mxu0 0.0
    %3847 = vmatpush2.msra.mxu0 0.0
    %3848 = vmatprep.subr.mxu0 0.0
    %3849 = vmatpush2.msra.mxu0 0.0
    %3850 = vmatprep.subr.mxu0 0.0
    %3851 = vmatpush2.msra.mxu0 0.0
    %3852 = vmatprep.subr.mxu0 0.0
    %3853 = vmatpush2.msra.mxu0 0.0
    %3854 = vmatprep.subr.mxu0 0.0
    %3855 = vmatpush2.msra.mxu0 0.0
    %3856 = vmatprep.subr.mxu0 0.0
    %3857 = vmatpush2.msra.mxu0 0.0
    %3858 = vmatprep.subr.mxu0 0.0
    %3859 = vmatpush2.msra.mxu0 0.0
    %3860 = vmatprep.subr.mxu0 0.0
    %3861 = vmatpush2.msra.mxu0 0.0
    %3862 = vmatprep.subr.mxu0 0.0
    %3863 = vmatpush2.msra.mxu0 0.0
    %3864 = vmatprep.mubr.f32.mxu0 0.0
    %3865 = vmatmul.mubr.f32.gmra.mxu0 %v3798
    %v3866 = vpop.f32.mrf.mxu0
    %v3867 = vadd.f32 0.0, %v3866
    %v3868 = vpop.f32.mrf.mxu0
    %v3869 = vadd.f32 0.0, %v3868
    %3870 = vdwg.mxu0
    %3871 = vmatprep.subr.mxu0 0.0
    %3872 = vmatpush1.msra.mxu0 0.0
    %3873 = vmatprep.subr.mxu0 0.0
    %3874 = vmatpush1.msra.mxu0 0.0
    %3875 = vmatprep.subr.mxu0 0.0
    %3876 = vmatpush1.msra.mxu0 0.0
    %3877 = vmatprep.subr.mxu0 0.0
    %3878 = vmatpush1.msra.mxu0 0.0
    %3879 = vmatprep.subr.mxu0 0.0
    %3880 = vmatpush1.msra.mxu0 0.0
    %3881 = vmatprep.subr.mxu0 0.0
    %3882 = vmatpush1.msra.mxu0 0.0
    %3883 = vmatprep.subr.mxu0 0.0
    %3884 = vmatpush1.msra.mxu0 0.0
    %3885 = vmatprep.subr.mxu0 0.0
    %3886 = vmatpush1.msra.mxu0 0.0
    %3887 = vmatprep.subr.mxu0 0.0
    %3888 = vmatpush1.msra.mxu0 0.0
    %3889 = vmatprep.subr.mxu0 0.0
    %3890 = vmatpush1.msra.mxu0 0.0
    %3891 = vmatprep.subr.mxu0 0.0
    %3892 = vmatpush1.msra.mxu0 0.0
    %3893 = vmatprep.subr.mxu0 0.0
    %3894 = vmatpush1.msra.mxu0 0.0
    %3895 = vmatprep.subr.mxu0 %v3307
    %3896 = vmatpush1.msra.mxu0 %v3306
    %3897 = vmatprep.subr.mxu0 %v3303
    %3898 = vmatpush1.msra.mxu0 %v3302
    %3899 = vmatprep.subr.mxu0 %v3299
    %3900 = vmatpush1.msra.mxu0 %v3298
    %3901 = vmatprep.subr.mxu0 %v3295
    %3902 = vmatpush1.msra.mxu0 %v3294
    %3903 = vmatprep.subr.mxu0 0.0
    %3904 = vmatpush2.msra.mxu0 0.0
    %3905 = vmatprep.subr.mxu0 0.0
    %3906 = vmatpush2.msra.mxu0 0.0
    %3907 = vmatprep.subr.mxu0 0.0
    %3908 = vmatpush2.msra.mxu0 0.0
    %3909 = vmatprep.subr.mxu0 0.0
    %3910 = vmatpush2.msra.mxu0 0.0
    %3911 = vmatprep.subr.mxu0 0.0
    %3912 = vmatpush2.msra.mxu0 0.0
    %3913 = vmatprep.subr.mxu0 0.0
    %3914 = vmatpush2.msra.mxu0 0.0
    %3915 = vmatprep.subr.mxu0 0.0
    %3916 = vmatpush2.msra.mxu0 0.0
    %3917 = vmatprep.subr.mxu0 0.0
    %3918 = vmatpush2.msra.mxu0 0.0
    %3919 = vmatprep.subr.mxu0 0.0
    %3920 = vmatpush2.msra.mxu0 0.0
    %3921 = vmatprep.subr.mxu0 0.0
    %3922 = vmatpush2.msra.mxu0 0.0
    %3923 = vmatprep.subr.mxu0 0.0
    %3924 = vmatpush2.msra.mxu0 0.0
    %3925 = vmatprep.subr.mxu0 0.0
    %3926 = vmatpush2.msra.mxu0 0.0
    %3927 = vmatprep.subr.mxu0 0.0
    %3928 = vmatpush2.msra.mxu0 0.0
    %3929 = vmatprep.subr.mxu0 0.0
    %3930 = vmatpush2.msra.mxu0 0.0
    %3931 = vmatprep.subr.mxu0 0.0
    %3932 = vmatpush2.msra.mxu0 0.0
    %3933 = vmatprep.subr.mxu0 0.0
    %3934 = vmatpush2.msra.mxu0 0.0
    %3935 = vmatprep.mubr.f32.mxu0 0.0
    %3936 = vmatmul.mubr.f32.gmra.mxu0 %v3798
    %v3937 = vpop.f32.mrf.mxu0
    %v3938 = vadd.f32 0.0, %v3937
    %v3939 = vpop.f32.mrf.mxu0
    %v3940 = vadd.f32 0.0, %v3939
    %3941 = vdwg.mxu0
    %v3942 = vlaneseq
    %v3943 = vshrl.u32 %v3942, 7
    %v3944 = vsub.s32 0, %v3943
    %v3945 = vrot.slane %v3721, %v3944
    %v3946 = vlaneseq
    %v3947 = vshrl.u32 %v3946, 7
    %v3948 = vsub.s32 0, %v3947
    %v3949 = vrot.slane %v3723, %v3948
    %v3950 = vlaneseq
    %v3951 = vshrl.u32 %v3950, 7
    %v3952 = vsub.s32 0, %v3951
    %v3953 = vrot.slane %v3792, %v3952
    %v3954 = vlaneseq
    %v3955 = vshrl.u32 %v3954, 7
    %v3956 = vsub.s32 0, %v3955
    %v3957 = vrot.slane %v3794, %v3956
    %v3958 = vmul.f32 %v3470, %v3945
    %v3959 = vmul.f32 %v3471, %v3949
    %v3960 = vmul.f32 %v3472, %v3953
    %v3961 = vmul.f32 %v3473, %v3957
    %v3962 = vlaneseq
    %v3963 = vshrl.u32 %v3962, 7
    %v3964 = vsub.s32 0, %v3963
    %v3965 = vrot.slane %v3867, %v3964
    %v3966 = vlaneseq
    %v3967 = vshrl.u32 %v3966, 7
    %v3968 = vsub.s32 0, %v3967
    %v3969 = vrot.slane %v3869, %v3968
    %v3970 = vlaneseq
    %v3971 = vshrl.u32 %v3970, 7
    %v3972 = vsub.s32 0, %v3971
    %v3973 = vrot.slane %v3938, %v3972
    %v3974 = vlaneseq
    %v3975 = vshrl.u32 %v3974, 7
    %v3976 = vsub.s32 0, %v3975
    %v3977 = vrot.slane %v3940, %v3976
    %v3978 = vadd.f32 %v3958, %v3965
    %v3979 = vadd.f32 %v3959, %v3969
    %v3980 = vadd.f32 %v3960, %v3973
    %v3981 = vadd.f32 %v3961, %v3977
    %v3982 = vpack.c.bf16 %v3978, %v3978
    %v3983 = vpack.c.bf16 %v3979, %v3979
    %v3984 = vpack.c.bf16 %v3980, %v3980
    %v3985 = vpack.c.bf16 %v3981, %v3981
    %v3986 = vld [vmem:[#allocation7] sm:$0xff]
    %v3987 = vld [vmem:[#allocation7 + $0x8] sm:$0xff]
    %v3988 = vld [vmem:[#allocation7 + $0x10] sm:$0xff]
    %v3989 = vld [vmem:[#allocation7 + $0x18] sm:$0xff]
    %v3990 = vld [vmem:[#allocation7 + $0x20] sm:$0xff]
    %v3991 = vld [vmem:[#allocation7 + $0x28] sm:$0xff]
    %v3992 = vld [vmem:[#allocation7 + $0x30] sm:$0xff]
    %v3993 = vld [vmem:[#allocation7 + $0x38] sm:$0xff]
    %v3994 = vld [vmem:[#allocation7 + $0x40] sm:$0xff]
    %v3995 = vld [vmem:[#allocation7 + $0x48] sm:$0xff]
    %v3996 = vld [vmem:[#allocation7 + $0x50] sm:$0xff]
    %v3997 = vld [vmem:[#allocation7 + $0x58] sm:$0xff]
    %v3998 = vld [vmem:[#allocation7 + $0x60] sm:$0xff]
    %v3999 = vld [vmem:[#allocation7 + $0x68] sm:$0xff]
    %v4000 = vld [vmem:[#allocation7 + $0x70] sm:$0xff]
    %v4001 = vld [vmem:[#allocation7 + $0x78] sm:$0xff]
    %v4002 = vld [vmem:[#allocation7 + $0x80] sm:$0xff]
    %v4003 = vld [vmem:[#allocation7 + $0x88] sm:$0xff]
    %v4004 = vld [vmem:[#allocation7 + $0x90] sm:$0xff]
    %v4005 = vld [vmem:[#allocation7 + $0x98] sm:$0xff]
    %v4006 = vld [vmem:[#allocation7 + $0xa0] sm:$0xff]
    %v4007 = vld [vmem:[#allocation7 + $0xa8] sm:$0xff]
    %v4008 = vld [vmem:[#allocation7 + $0xb0] sm:$0xff]
    %v4009 = vld [vmem:[#allocation7 + $0xb8] sm:$0xff]
    %v4010 = vld [vmem:[#allocation7 + $0xc0] sm:$0xff]
    %v4011 = vld [vmem:[#allocation7 + $0xc8] sm:$0xff]
    %v4012 = vld [vmem:[#allocation7 + $0xd0] sm:$0xff]
    %v4013 = vld [vmem:[#allocation7 + $0xd8] sm:$0xff]
    %v4014 = vld [vmem:[#allocation7 + $0xe0] sm:$0xff]
    %v4015 = vld [vmem:[#allocation7 + $0xe8] sm:$0xff]
    %v4016 = vld [vmem:[#allocation7 + $0xf0] sm:$0xff]
    %v4017 = vld [vmem:[#allocation7 + $0xf8] sm:$0xff]
    %v4018 = vld [vmem:[#allocation7 + $0x100] sm:$0xff]
    %v4019 = vld [vmem:[#allocation7 + $0x108] sm:$0xff]
    %v4020 = vld [vmem:[#allocation7 + $0x110] sm:$0xff]
    %v4021 = vld [vmem:[#allocation7 + $0x118] sm:$0xff]
    %v4022 = vld [vmem:[#allocation7 + $0x120] sm:$0xff]
    %v4023 = vld [vmem:[#allocation7 + $0x128] sm:$0xff]
    %v4024 = vld [vmem:[#allocation7 + $0x130] sm:$0xff]
    %v4025 = vld [vmem:[#allocation7 + $0x138] sm:$0xff]
    %v4026 = vld [vmem:[#allocation7 + $0x140] sm:$0xff]
    %v4027 = vld [vmem:[#allocation7 + $0x148] sm:$0xff]
    %v4028 = vld [vmem:[#allocation7 + $0x150] sm:$0xff]
    %v4029 = vld [vmem:[#allocation7 + $0x158] sm:$0xff]
    %v4030 = vld [vmem:[#allocation7 + $0x160] sm:$0xff]
    %v4031 = vld [vmem:[#allocation7 + $0x168] sm:$0xff]
    %v4032 = vld [vmem:[#allocation7 + $0x170] sm:$0xff]
    %v4033 = vld [vmem:[#allocation7 + $0x178] sm:$0xff]
    %v4034 = vld [vmem:[#allocation7 + $0x180] sm:$0xff]
    %v4035 = vld [vmem:[#allocation7 + $0x188] sm:$0xff]
    %v4036 = vld [vmem:[#allocation7 + $0x190] sm:$0xff]
    %v4037 = vld [vmem:[#allocation7 + $0x198] sm:$0xff]
    %v4038 = vld [vmem:[#allocation7 + $0x1a0] sm:$0xff]
    %v4039 = vld [vmem:[#allocation7 + $0x1a8] sm:$0xff]
    %v4040 = vld [vmem:[#allocation7 + $0x1b0] sm:$0xff]
    %v4041 = vld [vmem:[#allocation7 + $0x1b8] sm:$0xff]
    %v4042 = vld [vmem:[#allocation7 + $0x1c0] sm:$0xff]
    %v4043 = vld [vmem:[#allocation7 + $0x1c8] sm:$0xff]
    %v4044 = vld [vmem:[#allocation7 + $0x1d0] sm:$0xff]
    %v4045 = vld [vmem:[#allocation7 + $0x1d8] sm:$0xff]
    %v4046 = vld [vmem:[#allocation7 + $0x1e0] sm:$0xff]
    %v4047 = vld [vmem:[#allocation7 + $0x1e8] sm:$0xff]
    %v4048 = vld [vmem:[#allocation7 + $0x1f0] sm:$0xff]
    %v4049 = vld [vmem:[#allocation7 + $0x1f8] sm:$0xff]
    %v4050 = vld [vmem:[%s10] sm:$0x3]
    %v4052 = vlaneseq
    %v4053 = vshrl.u32 %v4052, 7
    %v4054 = vsub.s32 0, %v4053
    %v4055 = vrot.slane %v4050, %v4054
    %v4056 = vlaneseq
    %v4057 = vshrl.u32 %v4056, 7
    %v4058 = vsub.s32 1, %v4057
    %v4059 = vrot.slane %v4050, %v4058
    %v4126 = vunpack.c.l.b16 %v3986
    %v4127 = vunpack.c.h.b16 %v3986
    %v4128 = vunpack.c.l.b16 %v3987
    %v4129 = vunpack.c.h.b16 %v3987
    %v4130 = vunpack.c.l.b16 %v3988
    %v4131 = vunpack.c.h.b16 %v3988
    %v4132 = vunpack.c.l.b16 %v3989
    %v4133 = vunpack.c.h.b16 %v3989
    %v4134 = vunpack.c.l.b16 %v3990
    %v4135 = vunpack.c.h.b16 %v3990
    %v4136 = vunpack.c.l.b16 %v3991
    %v4137 = vunpack.c.h.b16 %v3991
    %v4138 = vunpack.c.l.b16 %v3992
    %v4139 = vunpack.c.h.b16 %v3992
    %v4140 = vunpack.c.l.b16 %v3993
    %v4141 = vunpack.c.h.b16 %v3993
    %v4142 = vunpack.c.l.b16 %v3994
    %v4143 = vunpack.c.h.b16 %v3994
    %v4144 = vunpack.c.l.b16 %v3995
    %v4145 = vunpack.c.h.b16 %v3995
    %v4146 = vunpack.c.l.b16 %v3996
    %v4147 = vunpack.c.h.b16 %v3996
    %v4148 = vunpack.c.l.b16 %v3997
    %v4149 = vunpack.c.h.b16 %v3997
    %v4150 = vunpack.c.l.b16 %v3998
    %v4151 = vunpack.c.h.b16 %v3998
    %v4152 = vunpack.c.l.b16 %v3999
    %v4153 = vunpack.c.h.b16 %v3999
    %v4154 = vunpack.c.l.b16 %v4000
    %v4155 = vunpack.c.h.b16 %v4000
    %v4156 = vunpack.c.l.b16 %v4001
    %v4157 = vunpack.c.h.b16 %v4001
    %v4158 = vunpack.c.l.b16 %v4002
    %v4159 = vunpack.c.h.b16 %v4002
    %v4160 = vunpack.c.l.b16 %v4003
    %v4161 = vunpack.c.h.b16 %v4003
    %v4162 = vunpack.c.l.b16 %v4004
    %v4163 = vunpack.c.h.b16 %v4004
    %v4164 = vunpack.c.l.b16 %v4005
    %v4165 = vunpack.c.h.b16 %v4005
    %v4166 = vunpack.c.l.b16 %v4006
    %v4167 = vunpack.c.h.b16 %v4006
    %v4168 = vunpack.c.l.b16 %v4007
    %v4169 = vunpack.c.h.b16 %v4007
    %v4170 = vunpack.c.l.b16 %v4008
    %v4171 = vunpack.c.h.b16 %v4008
    %v4172 = vunpack.c.l.b16 %v4009
    %v4173 = vunpack.c.h.b16 %v4009
    %v4174 = vunpack.c.l.b16 %v4010
    %v4175 = vunpack.c.h.b16 %v4010
    %v4176 = vunpack.c.l.b16 %v4011
    %v4177 = vunpack.c.h.b16 %v4011
    %v4178 = vunpack.c.l.b16 %v4012
    %v4179 = vunpack.c.h.b16 %v4012
    %v4180 = vunpack.c.l.b16 %v4013
    %v4181 = vunpack.c.h.b16 %v4013
    %v4182 = vunpack.c.l.b16 %v4014
    %v4183 = vunpack.c.h.b16 %v4014
    %v4184 = vunpack.c.l.b16 %v4015
    %v4185 = vunpack.c.h.b16 %v4015
    %v4186 = vunpack.c.l.b16 %v4016
    %v4187 = vunpack.c.h.b16 %v4016
    %v4188 = vunpack.c.l.b16 %v4017
    %v4189 = vunpack.c.h.b16 %v4017
    %v4190 = vunpack.c.l.b16 %v4018
    %v4191 = vunpack.c.h.b16 %v4018
    %v4192 = vunpack.c.l.b16 %v4019
    %v4193 = vunpack.c.h.b16 %v4019
    %v4194 = vunpack.c.l.b16 %v4020
    %v4195 = vunpack.c.h.b16 %v4020
    %v4196 = vunpack.c.l.b16 %v4021
    %v4197 = vunpack.c.h.b16 %v4021
    %v4198 = vunpack.c.l.b16 %v4022
    %v4199 = vunpack.c.h.b16 %v4022
    %v4200 = vunpack.c.l.b16 %v4023
    %v4201 = vunpack.c.h.b16 %v4023
    %v4202 = vunpack.c.l.b16 %v4024
    %v4203 = vunpack.c.h.b16 %v4024
    %v4204 = vunpack.c.l.b16 %v4025
    %v4205 = vunpack.c.h.b16 %v4025
    %v4206 = vunpack.c.l.b16 %v4026
    %v4207 = vunpack.c.h.b16 %v4026
    %v4208 = vunpack.c.l.b16 %v4027
    %v4209 = vunpack.c.h.b16 %v4027
    %v4210 = vunpack.c.l.b16 %v4028
    %v4211 = vunpack.c.h.b16 %v4028
    %v4212 = vunpack.c.l.b16 %v4029
    %v4213 = vunpack.c.h.b16 %v4029
    %v4214 = vunpack.c.l.b16 %v4030
    %v4215 = vunpack.c.h.b16 %v4030
    %v4216 = vunpack.c.l.b16 %v4031
    %v4217 = vunpack.c.h.b16 %v4031
    %v4218 = vunpack.c.l.b16 %v4032
    %v4219 = vunpack.c.h.b16 %v4032
    %v4220 = vunpack.c.l.b16 %v4033
    %v4221 = vunpack.c.h.b16 %v4033
    %v4222 = vunpack.c.l.b16 %v4034
    %v4223 = vunpack.c.h.b16 %v4034
    %v4224 = vunpack.c.l.b16 %v4035
    %v4225 = vunpack.c.h.b16 %v4035
    %v4226 = vunpack.c.l.b16 %v4036
    %v4227 = vunpack.c.h.b16 %v4036
    %v4228 = vunpack.c.l.b16 %v4037
    %v4229 = vunpack.c.h.b16 %v4037
    %v4230 = vunpack.c.l.b16 %v4038
    %v4231 = vunpack.c.h.b16 %v4038
    %v4232 = vunpack.c.l.b16 %v4039
    %v4233 = vunpack.c.h.b16 %v4039
    %v4234 = vunpack.c.l.b16 %v4040
    %v4235 = vunpack.c.h.b16 %v4040
    %v4236 = vunpack.c.l.b16 %v4041
    %v4237 = vunpack.c.h.b16 %v4041
    %v4238 = vunpack.c.l.b16 %v4042
    %v4239 = vunpack.c.h.b16 %v4042
    %v4240 = vunpack.c.l.b16 %v4043
    %v4241 = vunpack.c.h.b16 %v4043
    %v4242 = vunpack.c.l.b16 %v4044
    %v4243 = vunpack.c.h.b16 %v4044
    %v4244 = vunpack.c.l.b16 %v4045
    %v4245 = vunpack.c.h.b16 %v4045
    %v4246 = vunpack.c.l.b16 %v4046
    %v4247 = vunpack.c.h.b16 %v4046
    %v4248 = vunpack.c.l.b16 %v4047
    %v4249 = vunpack.c.h.b16 %v4047
    %v4250 = vunpack.c.l.b16 %v4048
    %v4251 = vunpack.c.h.b16 %v4048
    %v4252 = vunpack.c.l.b16 %v4049
    %v4253 = vunpack.c.h.b16 %v4049
    %v4254 = vpack.c.b16 %v4128, %v4126
    %v4255 = vpack.c.b16 %v4129, %v4127
    %v4256 = vpack.c.b16 %v4132, %v4130
    %v4257 = vpack.c.b16 %v4133, %v4131
    %v4258 = vpack.c.b16 %v4136, %v4134
    %v4259 = vpack.c.b16 %v4137, %v4135
    %v4260 = vpack.c.b16 %v4140, %v4138
    %v4261 = vpack.c.b16 %v4141, %v4139
    %v4262 = vpack.c.b16 %v4144, %v4142
    %v4263 = vpack.c.b16 %v4145, %v4143
    %v4264 = vpack.c.b16 %v4148, %v4146
    %v4265 = vpack.c.b16 %v4149, %v4147
    %v4266 = vpack.c.b16 %v4152, %v4150
    %v4267 = vpack.c.b16 %v4153, %v4151
    %v4268 = vpack.c.b16 %v4156, %v4154
    %v4269 = vpack.c.b16 %v4157, %v4155
    %v4270 = vpack.c.b16 %v4160, %v4158
    %v4271 = vpack.c.b16 %v4161, %v4159
    %v4272 = vpack.c.b16 %v4164, %v4162
    %v4273 = vpack.c.b16 %v4165, %v4163
    %v4274 = vpack.c.b16 %v4168, %v4166
    %v4275 = vpack.c.b16 %v4169, %v4167
    %v4276 = vpack.c.b16 %v4172, %v4170
    %v4277 = vpack.c.b16 %v4173, %v4171
    %v4278 = vpack.c.b16 %v4176, %v4174
    %v4279 = vpack.c.b16 %v4177, %v4175
    %v4280 = vpack.c.b16 %v4180, %v4178
    %v4281 = vpack.c.b16 %v4181, %v4179
    %v4282 = vpack.c.b16 %v4184, %v4182
    %v4283 = vpack.c.b16 %v4185, %v4183
    %v4284 = vpack.c.b16 %v4188, %v4186
    %v4285 = vpack.c.b16 %v4189, %v4187
    %v4286 = vpack.c.b16 %v4192, %v4190
    %v4287 = vpack.c.b16 %v4193, %v4191
    %v4288 = vpack.c.b16 %v4196, %v4194
    %v4289 = vpack.c.b16 %v4197, %v4195
    %v4290 = vpack.c.b16 %v4200, %v4198
    %v4291 = vpack.c.b16 %v4201, %v4199
    %v4292 = vpack.c.b16 %v4204, %v4202
    %v4293 = vpack.c.b16 %v4205, %v4203
    %v4294 = vpack.c.b16 %v4208, %v4206
    %v4295 = vpack.c.b16 %v4209, %v4207
    %v4296 = vpack.c.b16 %v4212, %v4210
    %v4297 = vpack.c.b16 %v4213, %v4211
    %v4298 = vpack.c.b16 %v4216, %v4214
    %v4299 = vpack.c.b16 %v4217, %v4215
    %v4300 = vpack.c.b16 %v4220, %v4218
    %v4301 = vpack.c.b16 %v4221, %v4219
    %v4302 = vpack.c.b16 %v4224, %v4222
    %v4303 = vpack.c.b16 %v4225, %v4223
    %v4304 = vpack.c.b16 %v4228, %v4226
    %v4305 = vpack.c.b16 %v4229, %v4227
    %v4306 = vpack.c.b16 %v4232, %v4230
    %v4307 = vpack.c.b16 %v4233, %v4231
    %v4308 = vpack.c.b16 %v4236, %v4234
    %v4309 = vpack.c.b16 %v4237, %v4235
    %v4310 = vpack.c.b16 %v4240, %v4238
    %v4311 = vpack.c.b16 %v4241, %v4239
    %v4312 = vpack.c.b16 %v4244, %v4242
    %v4313 = vpack.c.b16 %v4245, %v4243
    %v4314 = vpack.c.b16 %v4248, %v4246
    %v4315 = vpack.c.b16 %v4249, %v4247
    %v4316 = vpack.c.b16 %v4252, %v4250
    %v4317 = vpack.c.b16 %v4253, %v4251
    %4382 = vmatprep.subr.bf16.mxu0 %v4269
    %4383 = vmatpush1.bf16.msra.mxu0 %v4268
    %4384 = vmatprep.subr.bf16.mxu0 %v4267
    %4385 = vmatpush1.bf16.msra.mxu0 %v4266
    %4386 = vmatprep.subr.bf16.mxu0 %v4265
    %4387 = vmatpush1.bf16.msra.mxu0 %v4264
    %4388 = vmatprep.subr.bf16.mxu0 %v4263
    %4389 = vmatpush1.bf16.msra.mxu0 %v4262
    %4390 = vmatprep.subr.bf16.mxu0 %v4261
    %4391 = vmatpush1.bf16.msra.mxu0 %v4260
    %4392 = vmatprep.subr.bf16.mxu0 %v4259
    %4393 = vmatpush1.bf16.msra.mxu0 %v4258
    %4394 = vmatprep.subr.bf16.mxu0 %v4257
    %4395 = vmatpush1.bf16.msra.mxu0 %v4256
    %4396 = vmatprep.subr.bf16.mxu0 %v4255
    %4397 = vmatpush1.bf16.msra.mxu0 %v4254
    %4398 = vmatprep.subr.bf16.mxu0 %v4285
    %4399 = vmatpush2.bf16.msra.mxu0 %v4284
    %4400 = vmatprep.subr.bf16.mxu0 %v4283
    %4401 = vmatpush2.bf16.msra.mxu0 %v4282
    %4402 = vmatprep.subr.bf16.mxu0 %v4281
    %4403 = vmatpush2.bf16.msra.mxu0 %v4280
    %4404 = vmatprep.subr.bf16.mxu0 %v4279
    %4405 = vmatpush2.bf16.msra.mxu0 %v4278
    %4406 = vmatprep.subr.bf16.mxu0 %v4277
    %4407 = vmatpush2.bf16.msra.mxu0 %v4276
    %4408 = vmatprep.subr.bf16.mxu0 %v4275
    %4409 = vmatpush2.bf16.msra.mxu0 %v4274
    %4410 = vmatprep.subr.bf16.mxu0 %v4273
    %4411 = vmatpush2.bf16.msra.mxu0 %v4272
    %4412 = vmatprep.subr.bf16.mxu0 %v4271
    %4413 = vmatpush2.bf16.msra.mxu0 %v4270
    %4414 = vmatprep.mubr.bf16.mxu0 %v3983
    %4415 = vmatmul.mubr.bf16.gmra.mxu0 %v3982
    %v4416 = vpop.f32.mrf.mxu0
    %v4417 = vadd.f32 %v4055, %v4416
    %v4418 = vpop.f32.mrf.mxu0
    %v4419 = vadd.f32 %v4059, %v4418
    %v4420 = vpop.f32.mrf.mxu0
    %v4421 = vpop.f32.mrf.mxu0
    %4422 = vdwg.mxu0
    %4423 = vmatprep.subr.bf16.mxu0 %v4301
    %4424 = vmatpush1.bf16.msra.mxu0 %v4300
    %4425 = vmatprep.subr.bf16.mxu0 %v4299
    %4426 = vmatpush1.bf16.msra.mxu0 %v4298
    %4427 = vmatprep.subr.bf16.mxu0 %v4297
    %4428 = vmatpush1.bf16.msra.mxu0 %v4296
    %4429 = vmatprep.subr.bf16.mxu0 %v4295
    %4430 = vmatpush1.bf16.msra.mxu0 %v4294
    %4431 = vmatprep.subr.bf16.mxu0 %v4293
    %4432 = vmatpush1.bf16.msra.mxu0 %v4292
    %4433 = vmatprep.subr.bf16.mxu0 %v4291
    %4434 = vmatpush1.bf16.msra.mxu0 %v4290
    %4435 = vmatprep.subr.bf16.mxu0 %v4289
    %4436 = vmatpush1.bf16.msra.mxu0 %v4288
    %4437 = vmatprep.subr.bf16.mxu0 %v4287
    %4438 = vmatpush1.bf16.msra.mxu0 %v4286
    %4439 = vmatprep.subr.bf16.mxu0 %v4317
    %4440 = vmatpush2.bf16.msra.mxu0 %v4316
    %4441 = vmatprep.subr.bf16.mxu0 %v4315
    %4442 = vmatpush2.bf16.msra.mxu0 %v4314
    %4443 = vmatprep.subr.bf16.mxu0 %v4313
    %4444 = vmatpush2.bf16.msra.mxu0 %v4312
    %4445 = vmatprep.subr.bf16.mxu0 %v4311
    %4446 = vmatpush2.bf16.msra.mxu0 %v4310
    %4447 = vmatprep.subr.bf16.mxu0 %v4309
    %4448 = vmatpush2.bf16.msra.mxu0 %v4308
    %4449 = vmatprep.subr.bf16.mxu0 %v4307
    %4450 = vmatpush2.bf16.msra.mxu0 %v4306
    %4451 = vmatprep.subr.bf16.mxu0 %v4305
    %4452 = vmatpush2.bf16.msra.mxu0 %v4304
    %4453 = vmatprep.subr.bf16.mxu0 %v4303
    %4454 = vmatpush2.bf16.msra.mxu0 %v4302
    %4455 = vmatprep.mubr.bf16.mxu0 %v3985
    %4456 = vmatmul.mubr.bf16.gmra.mxu0 %v3984
    %v4457 = vpop.f32.mrf.mxu0
    %v4458 = vadd.f32 %v4417, %v4457
    %v4459 = vpop.f32.mrf.mxu0
    %v4460 = vadd.f32 %v4419, %v4459
    %v4461 = vpop.f32.mrf.mxu0
    %v4462 = vpop.f32.mrf.mxu0
    %4463 = vdwg.mxu0
    %vm4464 = vcmp.gt.f32.partialorder %v4458, 0.0
    %vm4465 = vcmp.gt.f32.partialorder %v4460, 0.0
    %v4466 = vmul.f32 %v4458, 0.2
    %v4467 = vmul.f32 %v4460, 0.2
    %v4468 = vsel %vm4464, %v4458, %v4466
    %v4469 = vsel %vm4465, %v4460, %v4467
    %v4470 = vsel %vm3058, %v4468, 0.0
    %v4471 = vrot.slane %v4470, 4
    %v4472 = vadd.f32 %v4470, %v4471
    %v4473 = vrot.slane %v4472, 2
    %v4474 = vadd.f32 %v4472, %v4473
    %v4475 = vrot.slane %v4474, 1
    %v4476 = vadd.f32 %v4474, %v4475
    %v4477 = vsel %vm3058, %v4469, 0.0
    %v4478 = vrot.slane %v4477, 4
    %v4479 = vadd.f32 %v4477, %v4478
    %v4480 = vrot.slane %v4479, 2
    %v4481 = vadd.f32 %v4479, %v4480
    %v4482 = vrot.slane %v4481, 1
    %v4483 = vadd.f32 %v4481, %v4482
    %v4484 = vld [vmem:[%s11] sm:$0xff]
    %v4485 = vld [vmem:[%s11 + $0x8] sm:$0xff]
    %v4486 = vld [vmem:[%s11 + $0x10] sm:$0xff]
    %v4487 = vld [vmem:[%s11 + $0x18] sm:$0xff]
    %v4488 = vld [vmem:[%s11 + $0x20] sm:$0xff]
    %v4489 = vld [vmem:[%s11 + $0x28] sm:$0xff]
    %v4490 = vld [vmem:[%s11 + $0x30] sm:$0xff]
    %v4491 = vld [vmem:[%s11 + $0x38] sm:$0xff]
    %v4492 = vld [vmem:[%s11 + $0x40] sm:$0xff]
    %v4493 = vld [vmem:[%s11 + $0x48] sm:$0xff]
    %v4494 = vld [vmem:[%s11 + $0x50] sm:$0xff]
    %v4495 = vld [vmem:[%s11 + $0x58] sm:$0xff]
    %v4496 = vld [vmem:[%s11 + $0x60] sm:$0xff]
    %v4497 = vld [vmem:[%s11 + $0x68] sm:$0xff]
    %v4498 = vld [vmem:[%s11 + $0x70] sm:$0xff]
    %v4499 = vld [vmem:[%s11 + $0x78] sm:$0xff]
    %v4500 = vld [vmem:[%s11 + $0x80] sm:$0xff]
    %v4501 = vld [vmem:[%s11 + $0x88] sm:$0xff]
    %v4502 = vld [vmem:[%s11 + $0x90] sm:$0xff]
    %v4503 = vld [vmem:[%s11 + $0x98] sm:$0xff]
    %v4504 = vld [vmem:[%s11 + $0xa0] sm:$0xff]
    %v4505 = vld [vmem:[%s11 + $0xa8] sm:$0xff]
    %v4506 = vld [vmem:[%s11 + $0xb0] sm:$0xff]
    %v4507 = vld [vmem:[%s11 + $0xb8] sm:$0xff]
    %v4508 = vld [vmem:[%s11 + $0xc0] sm:$0xff]
    %v4509 = vld [vmem:[%s11 + $0xc8] sm:$0xff]
    %v4510 = vld [vmem:[%s11 + $0xd0] sm:$0xff]
    %v4511 = vld [vmem:[%s11 + $0xd8] sm:$0xff]
    %v4512 = vld [vmem:[%s11 + $0xe0] sm:$0xff]
    %v4513 = vld [vmem:[%s11 + $0xe8] sm:$0xff]
    %v4514 = vld [vmem:[%s11 + $0xf0] sm:$0xff]
    %v4515 = vld [vmem:[%s11 + $0xf8] sm:$0xff]
    %4516 = vmatprep.subr.mxu0 0.0
    %4517 = vmatpush1.msra.mxu0 %v4499
    %4518 = vmatprep.subr.mxu0 0.0
    %4519 = vmatpush1.msra.mxu0 %v4498
    %4520 = vmatprep.subr.mxu0 0.0
    %4521 = vmatpush1.msra.mxu0 %v4497
    %4522 = vmatprep.subr.mxu0 0.0
    %4523 = vmatpush1.msra.mxu0 %v4496
    %4524 = vmatprep.subr.mxu0 0.0
    %4525 = vmatpush1.msra.mxu0 %v4495
    %4526 = vmatprep.subr.mxu0 0.0
    %4527 = vmatpush1.msra.mxu0 %v4494
    %4528 = vmatprep.subr.mxu0 0.0
    %4529 = vmatpush1.msra.mxu0 %v4493
    %4530 = vmatprep.subr.mxu0 0.0
    %4531 = vmatpush1.msra.mxu0 %v4492
    %4532 = vmatprep.subr.mxu0 0.0
    %4533 = vmatpush1.msra.mxu0 %v4491
    %4534 = vmatprep.subr.mxu0 0.0
    %4535 = vmatpush1.msra.mxu0 %v4490
    %4536 = vmatprep.subr.mxu0 0.0
    %4537 = vmatpush1.msra.mxu0 %v4489
    %4538 = vmatprep.subr.mxu0 0.0
    %4539 = vmatpush1.msra.mxu0 %v4488
    %4540 = vmatprep.subr.mxu0 0.0
    %4541 = vmatpush1.msra.mxu0 %v4487
    %4542 = vmatprep.subr.mxu0 0.0
    %4543 = vmatpush1.msra.mxu0 %v4486
    %4544 = vmatprep.subr.mxu0 0.0
    %4545 = vmatpush1.msra.mxu0 %v4485
    %4546 = vmatprep.subr.mxu0 0.0
    %4547 = vmatpush1.msra.mxu0 %v4484
    %4548 = vmatprep.subr.mxu0 0.0
    %4549 = vmatpush2.msra.mxu0 %v4515
    %4550 = vmatprep.subr.mxu0 0.0
    %4551 = vmatpush2.msra.mxu0 %v4514
    %4552 = vmatprep.subr.mxu0 0.0
    %4553 = vmatpush2.msra.mxu0 %v4513
    %4554 = vmatprep.subr.mxu0 0.0
    %4555 = vmatpush2.msra.mxu0 %v4512
    %4556 = vmatprep.subr.mxu0 0.0
    %4557 = vmatpush2.msra.mxu0 %v4511
    %4558 = vmatprep.subr.mxu0 0.0
    %4559 = vmatpush2.msra.mxu0 %v4510
    %4560 = vmatprep.subr.mxu0 0.0
    %4561 = vmatpush2.msra.mxu0 %v4509
    %4562 = vmatprep.subr.mxu0 0.0
    %4563 = vmatpush2.msra.mxu0 %v4508
    %4564 = vmatprep.subr.mxu0 0.0
    %4565 = vmatpush2.msra.mxu0 %v4507
    %4566 = vmatprep.subr.mxu0 0.0
    %4567 = vmatpush2.msra.mxu0 %v4506
    %4568 = vmatprep.subr.mxu0 0.0
    %4569 = vmatpush2.msra.mxu0 %v4505
    %4570 = vmatprep.subr.mxu0 0.0
    %4571 = vmatpush2.msra.mxu0 %v4504
    %4572 = vmatprep.subr.mxu0 0.0
    %4573 = vmatpush2.msra.mxu0 %v4503
    %4574 = vmatprep.subr.mxu0 0.0
    %4575 = vmatpush2.msra.mxu0 %v4502
    %4576 = vmatprep.subr.mxu0 0.0
    %4577 = vmatpush2.msra.mxu0 %v4501
    %4578 = vmatprep.subr.mxu0 0.0
    %4579 = vmatpush2.msra.mxu0 %v4500
    %4580 = vmatprep.mubr.f32.mxu0 %v4483
    %4581 = vmatmul.mubr.f32.gmra.mxu0 %v4476
    %v4582 = vpop.f32.mrf.mxu0
    %v4583 = vadd.f32 0.0, %v4582
    %v4584 = vpop.f32.mrf.mxu0
    %4585 = vdwg.mxu0
    %v4586 = vmul.f32 %v4583, 0.125
    %v4587 = vld [vmem:[#allocation8] sm:$0xff]
    %v4588 = vld [vmem:[#allocation8 + $0x8] sm:$0xff]
    %v4589 = vld [vmem:[#allocation8 + $0x10] sm:$0xff]
    %v4590 = vld [vmem:[#allocation8 + $0x18] sm:$0xff]
    %v4591 = vld [vmem:[#allocation8 + $0x20] sm:$0xff]
    %v4592 = vld [vmem:[#allocation8 + $0x28] sm:$0xff]
    %v4593 = vld [vmem:[#allocation8 + $0x30] sm:$0xff]
    %v4594 = vld [vmem:[#allocation8 + $0x38] sm:$0xff]
    %v4595 = vld [vmem:[#allocation8 + $0x40] sm:$0xff]
    %v4596 = vld [vmem:[#allocation8 + $0x48] sm:$0xff]
    %v4597 = vld [vmem:[#allocation8 + $0x50] sm:$0xff]
    %v4598 = vld [vmem:[#allocation8 + $0x58] sm:$0xff]
    %v4599 = vld [vmem:[#allocation8 + $0x60] sm:$0xff]
    %v4600 = vld [vmem:[#allocation8 + $0x68] sm:$0xff]
    %v4601 = vld [vmem:[#allocation8 + $0x70] sm:$0xff]
    %v4602 = vld [vmem:[#allocation8 + $0x78] sm:$0xff]
    %vm4603 = vcmask 523264
    %v4605 = vsel %vm4603, %v4586, 0
    %4607 = vmatprep.subr.mxu0 0.0
    %4608 = vmatpush1.msra.mxu0 0.0
    %4609 = vmatprep.subr.mxu0 0.0
    %4610 = vmatpush1.msra.mxu0 0.0
    %4611 = vmatprep.subr.mxu0 0.0
    %4612 = vmatpush1.msra.mxu0 0.0
    %4613 = vmatprep.subr.mxu0 0.0
    %4614 = vmatpush1.msra.mxu0 0.0
    %4615 = vmatprep.subr.mxu0 0.0
    %4616 = vmatpush1.msra.mxu0 0.0
    %4617 = vmatprep.subr.mxu0 0.0
    %4618 = vmatpush1.msra.mxu0 0.0
    %4619 = vmatprep.subr.mxu0 0.0
    %4620 = vmatpush1.msra.mxu0 0.0
    %4621 = vmatprep.subr.mxu0 0.0
    %4622 = vmatpush1.msra.mxu0 0.0
    %4623 = vmatprep.subr.mxu0 %v4602
    %4624 = vmatpush1.msra.mxu0 %v4601
    %4625 = vmatprep.subr.mxu0 %v4600
    %4626 = vmatpush1.msra.mxu0 %v4599
    %4627 = vmatprep.subr.mxu0 %v4598
    %4628 = vmatpush1.msra.mxu0 %v4597
    %4629 = vmatprep.subr.mxu0 %v4596
    %4630 = vmatpush1.msra.mxu0 %v4595
    %4631 = vmatprep.subr.mxu0 %v4594
    %4632 = vmatpush1.msra.mxu0 %v4593
    %4633 = vmatprep.subr.mxu0 %v4592
    %4634 = vmatpush1.msra.mxu0 %v4591
    %4635 = vmatprep.subr.mxu0 %v4590
    %4636 = vmatpush1.msra.mxu0 %v4589
    %4637 = vmatprep.subr.mxu0 %v4588
    %4638 = vmatpush1.msra.mxu0 %v4587
    %4639 = vmatprep.subr.mxu0 0.0
    %4640 = vmatpush2.msra.mxu0 0.0
    %4641 = vmatprep.subr.mxu0 0.0
    %4642 = vmatpush2.msra.mxu0 0.0
    %4643 = vmatprep.subr.mxu0 0.0
    %4644 = vmatpush2.msra.mxu0 0.0
    %4645 = vmatprep.subr.mxu0 0.0
    %4646 = vmatpush2.msra.mxu0 0.0
    %4647 = vmatprep.subr.mxu0 0.0
    %4648 = vmatpush2.msra.mxu0 0.0
    %4649 = vmatprep.subr.mxu0 0.0
    %4650 = vmatpush2.msra.mxu0 0.0
    %4651 = vmatprep.subr.mxu0 0.0
    %4652 = vmatpush2.msra.mxu0 0.0
    %4653 = vmatprep.subr.mxu0 0.0
    %4654 = vmatpush2.msra.mxu0 0.0
    %4655 = vmatprep.subr.mxu0 0.0
    %4656 = vmatpush2.msra.mxu0 0.0
    %4657 = vmatprep.subr.mxu0 0.0
    %4658 = vmatpush2.msra.mxu0 0.0
    %4659 = vmatprep.subr.mxu0 0.0
    %4660 = vmatpush2.msra.mxu0 0.0
    %4661 = vmatprep.subr.mxu0 0.0
    %4662 = vmatpush2.msra.mxu0 0.0
    %4663 = vmatprep.subr.mxu0 0.0
    %4664 = vmatpush2.msra.mxu0 0.0
    %4665 = vmatprep.subr.mxu0 0.0
    %4666 = vmatpush2.msra.mxu0 0.0
    %4667 = vmatprep.subr.mxu0 0.0
    %4668 = vmatpush2.msra.mxu0 0.0
    %4669 = vmatprep.subr.mxu0 0.0
    %4670 = vmatpush2.msra.mxu0 0.0
    %4671 = vmatprep.mubr.f32.mxu0 0.0
    %4672 = vmatmul.mubr.f32.gmra.mxu0 %v4605
    %v4673 = vpop.f32.mrf.mxu0
    %v4674 = vadd.f32 0.0, %v4673
    %v4675 = vpop.f32.mrf.mxu0
    %v4676 = vadd.f32 0.0, %v4675
    %4677 = vdwg.mxu0
    %v4678 = vlaneseq
    %v4679 = vshrl.u32 %v4678, 7
    %v4680 = vsub.s32 0, %v4679
    %v4681 = vrot.slane %v4674, %v4680
    %v4682 = vlaneseq
    %v4683 = vshrl.u32 %v4682, 7
    %v4684 = vsub.s32 0, %v4683
    %v4685 = vrot.slane %v4676, %v4684
    %v4686 = vsub.f32 %v4468, %v4681
    %v4687 = vsub.f32 %v4469, %v4685
    %v4688 = vmul.f32 %v4686, %v4686
    %v4689 = vmul.f32 %v4687, %v4687
    %v4690 = vsel %vm3058, %v4688, 0.0
    %v4691 = vrot.slane %v4690, 4
    %v4692 = vadd.f32 %v4690, %v4691
    %v4693 = vrot.slane %v4692, 2
    %v4694 = vadd.f32 %v4692, %v4693
    %v4695 = vrot.slane %v4694, 1
    %v4696 = vadd.f32 %v4694, %v4695
    %v4697 = vsel %vm3058, %v4689, 0.0
    %v4698 = vrot.slane %v4697, 4
    %v4699 = vadd.f32 %v4697, %v4698
    %v4700 = vrot.slane %v4699, 2
    %v4701 = vadd.f32 %v4699, %v4700
    %v4702 = vrot.slane %v4701, 1
    %v4703 = vadd.f32 %v4701, %v4702
    %4704 = vmatprep.subr.mxu0 0.0
    %4705 = vmatpush1.msra.mxu0 %v4499
    %4706 = vmatprep.subr.mxu0 0.0
    %4707 = vmatpush1.msra.mxu0 %v4498
    %4708 = vmatprep.subr.mxu0 0.0
    %4709 = vmatpush1.msra.mxu0 %v4497
    %4710 = vmatprep.subr.mxu0 0.0
    %4711 = vmatpush1.msra.mxu0 %v4496
    %4712 = vmatprep.subr.mxu0 0.0
    %4713 = vmatpush1.msra.mxu0 %v4495
    %4714 = vmatprep.subr.mxu0 0.0
    %4715 = vmatpush1.msra.mxu0 %v4494
    %4716 = vmatprep.subr.mxu0 0.0
    %4717 = vmatpush1.msra.mxu0 %v4493
    %4718 = vmatprep.subr.mxu0 0.0
    %4719 = vmatpush1.msra.mxu0 %v4492
    %4720 = vmatprep.subr.mxu0 0.0
    %4721 = vmatpush1.msra.mxu0 %v4491
    %4722 = vmatprep.subr.mxu0 0.0
    %4723 = vmatpush1.msra.mxu0 %v4490
    %4724 = vmatprep.subr.mxu0 0.0
    %4725 = vmatpush1.msra.mxu0 %v4489
    %4726 = vmatprep.subr.mxu0 0.0
    %4727 = vmatpush1.msra.mxu0 %v4488
    %4728 = vmatprep.subr.mxu0 0.0
    %4729 = vmatpush1.msra.mxu0 %v4487
    %4730 = vmatprep.subr.mxu0 0.0
    %4731 = vmatpush1.msra.mxu0 %v4486
    %4732 = vmatprep.subr.mxu0 0.0
    %4733 = vmatpush1.msra.mxu0 %v4485
    %4734 = vmatprep.subr.mxu0 0.0
    %4735 = vmatpush1.msra.mxu0 %v4484
    %4736 = vmatprep.subr.mxu0 0.0
    %4737 = vmatpush2.msra.mxu0 %v4515
    %4738 = vmatprep.subr.mxu0 0.0
    %4739 = vmatpush2.msra.mxu0 %v4514
    %4740 = vmatprep.subr.mxu0 0.0
    %4741 = vmatpush2.msra.mxu0 %v4513
    %4742 = vmatprep.subr.mxu0 0.0
    %4743 = vmatpush2.msra.mxu0 %v4512
    %4744 = vmatprep.subr.mxu0 0.0
    %4745 = vmatpush2.msra.mxu0 %v4511
    %4746 = vmatprep.subr.mxu0 0.0
    %4747 = vmatpush2.msra.mxu0 %v4510
    %4748 = vmatprep.subr.mxu0 0.0
    %4749 = vmatpush2.msra.mxu0 %v4509
    %4750 = vmatprep.subr.mxu0 0.0
    %4751 = vmatpush2.msra.mxu0 %v4508
    %4752 = vmatprep.subr.mxu0 0.0
    %4753 = vmatpush2.msra.mxu0 %v4507
    %4754 = vmatprep.subr.mxu0 0.0
    %4755 = vmatpush2.msra.mxu0 %v4506
    %4756 = vmatprep.subr.mxu0 0.0
    %4757 = vmatpush2.msra.mxu0 %v4505
    %4758 = vmatprep.subr.mxu0 0.0
    %4759 = vmatpush2.msra.mxu0 %v4504
    %4760 = vmatprep.subr.mxu0 0.0
    %4761 = vmatpush2.msra.mxu0 %v4503
    %4762 = vmatprep.subr.mxu0 0.0
    %4763 = vmatpush2.msra.mxu0 %v4502
    %4764 = vmatprep.subr.mxu0 0.0
    %4765 = vmatpush2.msra.mxu0 %v4501
    %4766 = vmatprep.subr.mxu0 0.0
    %4767 = vmatpush2.msra.mxu0 %v4500
    %4768 = vmatprep.mubr.f32.mxu0 %v4703
    %4769 = vmatmul.mubr.f32.gmra.mxu0 %v4696
    %v4770 = vpop.f32.mrf.mxu0
    %v4771 = vadd.f32 0.0, %v4770
    %v4772 = vpop.f32.mrf.mxu0
    %4773 = vdwg.mxu0
    %v4774 = vmul.f32 %v4771, 0.125
    %v4775 = vld [vmem:[%s13] sm:$0x1]
    %v4776 = vadd.f32 %v4774, 0.8
    %v4777 = vrsqrt.pop %v4776
    %v4778 = vmul.f32 %v4775, %v4777
    %v4780 = vsel %vm4603, %v4778, 0
    %4782 = vmatprep.subr.mxu0 0.0
    %4783 = vmatpush1.msra.mxu0 0.0
    %4784 = vmatprep.subr.mxu0 0.0
    %4785 = vmatpush1.msra.mxu0 0.0
    %4786 = vmatprep.subr.mxu0 0.0
    %4787 = vmatpush1.msra.mxu0 0.0
    %4788 = vmatprep.subr.mxu0 0.0
    %4789 = vmatpush1.msra.mxu0 0.0
    %4790 = vmatprep.subr.mxu0 0.0
    %4791 = vmatpush1.msra.mxu0 0.0
    %4792 = vmatprep.subr.mxu0 0.0
    %4793 = vmatpush1.msra.mxu0 0.0
    %4794 = vmatprep.subr.mxu0 0.0
    %4795 = vmatpush1.msra.mxu0 0.0
    %4796 = vmatprep.subr.mxu0 0.0
    %4797 = vmatpush1.msra.mxu0 0.0
    %4798 = vmatprep.subr.mxu0 %v4602
    %4799 = vmatpush1.msra.mxu0 %v4601
    %4800 = vmatprep.subr.mxu0 %v4600
    %4801 = vmatpush1.msra.mxu0 %v4599
    %4802 = vmatprep.subr.mxu0 %v4598
    %4803 = vmatpush1.msra.mxu0 %v4597
    %4804 = vmatprep.subr.mxu0 %v4596
    %4805 = vmatpush1.msra.mxu0 %v4595
    %4806 = vmatprep.subr.mxu0 %v4594
    %4807 = vmatpush1.msra.mxu0 %v4593
    %4808 = vmatprep.subr.mxu0 %v4592
    %4809 = vmatpush1.msra.mxu0 %v4591
    %4810 = vmatprep.subr.mxu0 %v4590
    %4811 = vmatpush1.msra.mxu0 %v4589
    %4812 = vmatprep.subr.mxu0 %v4588
    %4813 = vmatpush1.msra.mxu0 %v4587
    %4814 = vmatprep.subr.mxu0 0.0
    %4815 = vmatpush2.msra.mxu0 0.0
    %4816 = vmatprep.subr.mxu0 0.0
    %4817 = vmatpush2.msra.mxu0 0.0
    %4818 = vmatprep.subr.mxu0 0.0
    %4819 = vmatpush2.msra.mxu0 0.0
    %4820 = vmatprep.subr.mxu0 0.0
    %4821 = vmatpush2.msra.mxu0 0.0
    %4822 = vmatprep.subr.mxu0 0.0
    %4823 = vmatpush2.msra.mxu0 0.0
    %4824 = vmatprep.subr.mxu0 0.0
    %4825 = vmatpush2.msra.mxu0 0.0
    %4826 = vmatprep.subr.mxu0 0.0
    %4827 = vmatpush2.msra.mxu0 0.0
    %4828 = vmatprep.subr.mxu0 0.0
    %4829 = vmatpush2.msra.mxu0 0.0
    %4830 = vmatprep.subr.mxu0 0.0
    %4831 = vmatpush2.msra.mxu0 0.0
    %4832 = vmatprep.subr.mxu0 0.0
    %4833 = vmatpush2.msra.mxu0 0.0
    %4834 = vmatprep.subr.mxu0 0.0
    %4835 = vmatpush2.msra.mxu0 0.0
    %4836 = vmatprep.subr.mxu0 0.0
    %4837 = vmatpush2.msra.mxu0 0.0
    %4838 = vmatprep.subr.mxu0 0.0
    %4839 = vmatpush2.msra.mxu0 0.0
    %4840 = vmatprep.subr.mxu0 0.0
    %4841 = vmatpush2.msra.mxu0 0.0
    %4842 = vmatprep.subr.mxu0 0.0
    %4843 = vmatpush2.msra.mxu0 0.0
    %4844 = vmatprep.subr.mxu0 0.0
    %4845 = vmatpush2.msra.mxu0 0.0
    %4846 = vmatprep.mubr.f32.mxu0 0.0
    %4847 = vmatmul.mubr.f32.gmra.mxu0 %v4780
    %v4848 = vpop.f32.mrf.mxu0
    %v4849 = vadd.f32 0.0, %v4848
    %v4850 = vpop.f32.mrf.mxu0
    %v4851 = vadd.f32 0.0, %v4850
    %4852 = vdwg.mxu0
    %v4853 = vld [vmem:[%s14] sm:$0x1]
    %v4855 = vsel %vm4603, %v4853, 0
    %4857 = vmatprep.subr.mxu0 0.0
    %4858 = vmatpush1.msra.mxu0 0.0
    %4859 = vmatprep.subr.mxu0 0.0
    %4860 = vmatpush1.msra.mxu0 0.0
    %4861 = vmatprep.subr.mxu0 0.0
    %4862 = vmatpush1.msra.mxu0 0.0
    %4863 = vmatprep.subr.mxu0 0.0
    %4864 = vmatpush1.msra.mxu0 0.0
    %4865 = vmatprep.subr.mxu0 0.0
    %4866 = vmatpush1.msra.mxu0 0.0
    %4867 = vmatprep.subr.mxu0 0.0
    %4868 = vmatpush1.msra.mxu0 0.0
    %4869 = vmatprep.subr.mxu0 0.0
    %4870 = vmatpush1.msra.mxu0 0.0
    %4871 = vmatprep.subr.mxu0 0.0
    %4872 = vmatpush1.msra.mxu0 0.0
    %4873 = vmatprep.subr.mxu0 %v4602
    %4874 = vmatpush1.msra.mxu0 %v4601
    %4875 = vmatprep.subr.mxu0 %v4600
    %4876 = vmatpush1.msra.mxu0 %v4599
    %4877 = vmatprep.subr.mxu0 %v4598
    %4878 = vmatpush1.msra.mxu0 %v4597
    %4879 = vmatprep.subr.mxu0 %v4596
    %4880 = vmatpush1.msra.mxu0 %v4595
    %4881 = vmatprep.subr.mxu0 %v4594
    %4882 = vmatpush1.msra.mxu0 %v4593
    %4883 = vmatprep.subr.mxu0 %v4592
    %4884 = vmatpush1.msra.mxu0 %v4591
    %4885 = vmatprep.subr.mxu0 %v4590
    %4886 = vmatpush1.msra.mxu0 %v4589
    %4887 = vmatprep.subr.mxu0 %v4588
    %4888 = vmatpush1.msra.mxu0 %v4587
    %4889 = vmatprep.subr.mxu0 0.0
    %4890 = vmatpush2.msra.mxu0 0.0
    %4891 = vmatprep.subr.mxu0 0.0
    %4892 = vmatpush2.msra.mxu0 0.0
    %4893 = vmatprep.subr.mxu0 0.0
    %4894 = vmatpush2.msra.mxu0 0.0
    %4895 = vmatprep.subr.mxu0 0.0
    %4896 = vmatpush2.msra.mxu0 0.0
    %4897 = vmatprep.subr.mxu0 0.0
    %4898 = vmatpush2.msra.mxu0 0.0
    %4899 = vmatprep.subr.mxu0 0.0
    %4900 = vmatpush2.msra.mxu0 0.0
    %4901 = vmatprep.subr.mxu0 0.0
    %4902 = vmatpush2.msra.mxu0 0.0
    %4903 = vmatprep.subr.mxu0 0.0
    %4904 = vmatpush2.msra.mxu0 0.0
    %4905 = vmatprep.subr.mxu0 0.0
    %4906 = vmatpush2.msra.mxu0 0.0
    %4907 = vmatprep.subr.mxu0 0.0
    %4908 = vmatpush2.msra.mxu0 0.0
    %4909 = vmatprep.subr.mxu0 0.0
    %4910 = vmatpush2.msra.mxu0 0.0
    %4911 = vmatprep.subr.mxu0 0.0
    %4912 = vmatpush2.msra.mxu0 0.0
    %4913 = vmatprep.subr.mxu0 0.0
    %4914 = vmatpush2.msra.mxu0 0.0
    %4915 = vmatprep.subr.mxu0 0.0
    %4916 = vmatpush2.msra.mxu0 0.0
    %4917 = vmatprep.subr.mxu0 0.0
    %4918 = vmatpush2.msra.mxu0 0.0
    %4919 = vmatprep.subr.mxu0 0.0
    %4920 = vmatpush2.msra.mxu0 0.0
    %4921 = vmatprep.mubr.f32.mxu0 0.0
    %4922 = vmatmul.mubr.f32.gmra.mxu0 %v4855
    %v4923 = vpop.f32.mrf.mxu0
    %v4924 = vadd.f32 0.0, %v4923
    %v4925 = vpop.f32.mrf.mxu0
    %v4926 = vadd.f32 0.0, %v4925
    %4927 = vdwg.mxu0
    %v4928 = vlaneseq
    %v4929 = vshrl.u32 %v4928, 7
    %v4930 = vsub.s32 0, %v4929
    %v4931 = vrot.slane %v4849, %v4930
    %v4932 = vlaneseq
    %v4933 = vshrl.u32 %v4932, 7
    %v4934 = vsub.s32 0, %v4933
    %v4935 = vrot.slane %v4851, %v4934
    %v4936 = vmul.f32 %v4686, %v4931
    %v4937 = vmul.f32 %v4687, %v4935
    %v4938 = vlaneseq
    %v4939 = vshrl.u32 %v4938, 7
    %v4940 = vsub.s32 0, %v4939
    %v4941 = vrot.slane %v4924, %v4940
    %v4942 = vlaneseq
    %v4943 = vshrl.u32 %v4942, 7
    %v4944 = vsub.s32 0, %v4943
    %v4945 = vrot.slane %v4926, %v4944
    %v4946 = vadd.f32 %v4936, %v4941
    %v4947 = vadd.f32 %v4937, %v4945
    %v4948 = vpack.c.bf16 %v4946, %v4946
    %v4949 = vpack.c.bf16 %v4947, %v4947
    %v4950 = vld [vmem:[#allocation10] sm:$0xf]
    %v4951 = vld [vmem:[#allocation10 + $0x4] sm:$0xf]
    %v4952 = vld [vmem:[#allocation10 + $0x8] sm:$0xf]
    %v4953 = vld [vmem:[#allocation10 + $0xc] sm:$0xf]
    %v4954 = vld [vmem:[#allocation10 + $0x10] sm:$0xf]
    %v4955 = vld [vmem:[#allocation10 + $0x14] sm:$0xf]
    %v4956 = vld [vmem:[#allocation10 + $0x18] sm:$0xf]
    %v4957 = vld [vmem:[#allocation10 + $0x1c] sm:$0xf]
    %v4958 = vld [vmem:[#allocation10 + $0x20] sm:$0xf]
    %v4959 = vld [vmem:[#allocation10 + $0x24] sm:$0xf]
    %v4960 = vld [vmem:[#allocation10 + $0x28] sm:$0xf]
    %v4961 = vld [vmem:[#allocation10 + $0x2c] sm:$0xf]
    %v4962 = vld [vmem:[#allocation10 + $0x30] sm:$0xf]
    %v4963 = vld [vmem:[#allocation10 + $0x34] sm:$0xf]
    %v4964 = vld [vmem:[#allocation10 + $0x38] sm:$0xf]
    %v4965 = vld [vmem:[#allocation10 + $0x3c] sm:$0xf]
    %v4966 = vld [vmem:[#allocation10 + $0x40] sm:$0xf]
    %v4967 = vld [vmem:[#allocation10 + $0x44] sm:$0xf]
    %v4968 = vld [vmem:[#allocation10 + $0x48] sm:$0xf]
    %v4969 = vld [vmem:[#allocation10 + $0x4c] sm:$0xf]
    %v4970 = vld [vmem:[#allocation10 + $0x50] sm:$0xf]
    %v4971 = vld [vmem:[#allocation10 + $0x54] sm:$0xf]
    %v4972 = vld [vmem:[#allocation10 + $0x58] sm:$0xf]
    %v4973 = vld [vmem:[#allocation10 + $0x5c] sm:$0xf]
    %v4974 = vld [vmem:[#allocation10 + $0x60] sm:$0xf]
    %v4975 = vld [vmem:[#allocation10 + $0x64] sm:$0xf]
    %v4976 = vld [vmem:[#allocation10 + $0x68] sm:$0xf]
    %v4977 = vld [vmem:[#allocation10 + $0x6c] sm:$0xf]
    %v4978 = vld [vmem:[#allocation10 + $0x70] sm:$0xf]
    %v4979 = vld [vmem:[#allocation10 + $0x74] sm:$0xf]
    %v4980 = vld [vmem:[#allocation10 + $0x78] sm:$0xf]
    %v4981 = vld [vmem:[#allocation10 + $0x7c] sm:$0xf]
    %v4982 = vld [vmem:[%s16] sm:$0x1]
    %v4984 = vlaneseq
    %v4985 = vshrl.u32 %v4984, 7
    %v4986 = vsub.s32 0, %v4985
    %v4987 = vrot.slane %v4982, %v4986
    %v5021 = vunpack.c.l.b16 %v4950
    %v5022 = vunpack.c.l.b16 %v4951
    %v5023 = vunpack.c.l.b16 %v4952
    %v5024 = vunpack.c.l.b16 %v4953
    %v5025 = vunpack.c.l.b16 %v4954
    %v5026 = vunpack.c.l.b16 %v4955
    %v5027 = vunpack.c.l.b16 %v4956
    %v5028 = vunpack.c.l.b16 %v4957
    %v5029 = vunpack.c.l.b16 %v4958
    %v5030 = vunpack.c.l.b16 %v4959
    %v5031 = vunpack.c.l.b16 %v4960
    %v5032 = vunpack.c.l.b16 %v4961
    %v5033 = vunpack.c.l.b16 %v4962
    %v5034 = vunpack.c.l.b16 %v4963
    %v5035 = vunpack.c.l.b16 %v4964
    %v5036 = vunpack.c.l.b16 %v4965
    %v5037 = vunpack.c.l.b16 %v4966
    %v5038 = vunpack.c.l.b16 %v4967
    %v5039 = vunpack.c.l.b16 %v4968
    %v5040 = vunpack.c.l.b16 %v4969
    %v5041 = vunpack.c.l.b16 %v4970
    %v5042 = vunpack.c.l.b16 %v4971
    %v5043 = vunpack.c.l.b16 %v4972
    %v5044 = vunpack.c.l.b16 %v4973
    %v5045 = vunpack.c.l.b16 %v4974
    %v5046 = vunpack.c.l.b16 %v4975
    %v5047 = vunpack.c.l.b16 %v4976
    %v5048 = vunpack.c.l.b16 %v4977
    %v5049 = vunpack.c.l.b16 %v4978
    %v5050 = vunpack.c.l.b16 %v4979
    %v5051 = vunpack.c.l.b16 %v4980
    %v5052 = vunpack.c.l.b16 %v4981
    %v5053 = vpack.c.b16 %v5022, %v5021
    %v5054 = vpack.c.b16 %v5024, %v5023
    %v5055 = vpack.c.b16 %v5026, %v5025
    %v5056 = vpack.c.b16 %v5028, %v5027
    %v5057 = vpack.c.b16 %v5030, %v5029
    %v5058 = vpack.c.b16 %v5032, %v5031
    %v5059 = vpack.c.b16 %v5034, %v5033
    %v5060 = vpack.c.b16 %v5036, %v5035
    %v5061 = vpack.c.b16 %v5038, %v5037
    %v5062 = vpack.c.b16 %v5040, %v5039
    %v5063 = vpack.c.b16 %v5042, %v5041
    %v5064 = vpack.c.b16 %v5044, %v5043
    %v5065 = vpack.c.b16 %v5046, %v5045
    %v5066 = vpack.c.b16 %v5048, %v5047
    %v5067 = vpack.c.b16 %v5050, %v5049
    %v5068 = vpack.c.b16 %v5052, %v5051
    %5085 = vmatprep.subr.bf16.mxu0 0
    %5086 = vmatpush1.bf16.msra.mxu0 %v5060
    %5087 = vmatprep.subr.bf16.mxu0 0
    %5088 = vmatpush1.bf16.msra.mxu0 %v5059
    %5089 = vmatprep.subr.bf16.mxu0 0
    %5090 = vmatpush1.bf16.msra.mxu0 %v5058
    %5091 = vmatprep.subr.bf16.mxu0 0
    %5092 = vmatpush1.bf16.msra.mxu0 %v5057
    %5093 = vmatprep.subr.bf16.mxu0 0
    %5094 = vmatpush1.bf16.msra.mxu0 %v5056
    %5095 = vmatprep.subr.bf16.mxu0 0
    %5096 = vmatpush1.bf16.msra.mxu0 %v5055
    %5097 = vmatprep.subr.bf16.mxu0 0
    %5098 = vmatpush1.bf16.msra.mxu0 %v5054
    %5099 = vmatprep.subr.bf16.mxu0 0
    %5100 = vmatpush1.bf16.msra.mxu0 %v5053
    %5101 = vmatprep.subr.bf16.mxu0 0
    %5102 = vmatpush2.bf16.msra.mxu0 %v5068
    %5103 = vmatprep.subr.bf16.mxu0 0
    %5104 = vmatpush2.bf16.msra.mxu0 %v5067
    %5105 = vmatprep.subr.bf16.mxu0 0
    %5106 = vmatpush2.bf16.msra.mxu0 %v5066
    %5107 = vmatprep.subr.bf16.mxu0 0
    %5108 = vmatpush2.bf16.msra.mxu0 %v5065
    %5109 = vmatprep.subr.bf16.mxu0 0
    %5110 = vmatpush2.bf16.msra.mxu0 %v5064
    %5111 = vmatprep.subr.bf16.mxu0 0
    %5112 = vmatpush2.bf16.msra.mxu0 %v5063
    %5113 = vmatprep.subr.bf16.mxu0 0
    %5114 = vmatpush2.bf16.msra.mxu0 %v5062
    %5115 = vmatprep.subr.bf16.mxu0 0
    %5116 = vmatpush2.bf16.msra.mxu0 %v5061
    %5117 = vmatprep.mubr.bf16.mxu0 %v4949
    %5118 = vmatmul.mubr.bf16.gmra.mxu0 %v4948
    %v5119 = vpop.f32.mrf.mxu0
    %v5120 = vadd.f32 %v4987, %v5119
    %v5121 = vpop.f32.mrf.mxu0
    %v5122 = vpop.f32.mrf.mxu0
    %v5123 = vpop.f32.mrf.mxu0
    %5124 = vdwg.mxu0
    %vm5125 = vcmp.gt.f32.partialorder %v5120, 0.0
    %v5126 = vmul.f32 %v5120, 0.2
    %v5127 = vsel %vm5125, %v5120, %v5126
    %v5128 = vsel %vm3058, %v5127, 0.0
    %v5129 = vrot.slane %v5128, 4
    %v5130 = vadd.f32 %v5128, %v5129
    %v5131 = vrot.slane %v5130, 2
    %v5132 = vadd.f32 %v5130, %v5131
    %v5133 = vrot.slane %v5132, 1
    %v5134 = vadd.f32 %v5132, %v5133
    %v5135 = vrcp.pop 2.0
    %v5136 = vmul.f32 %v5134, %v5135
    %v5137 = vsub.f32 %v5127, %v5136
    %v5138 = vmul.f32 %v5137, %v5137
    %v5139 = vsel %vm3058, %v5138, 0.0
    %v5140 = vrot.slane %v5139, 4
    %v5141 = vadd.f32 %v5139, %v5140
    %v5142 = vrot.slane %v5141, 2
    %v5143 = vadd.f32 %v5141, %v5142
    %v5144 = vrot.slane %v5143, 1
    %v5145 = vadd.f32 %v5143, %v5144
    %v5146 = vmul.f32 %v5145, %v5135
    %v5147 = vld [vmem:[%s17] sm:$0x1]
    %v5148 = vadd.f32 %v5146, 0.8
    %v5149 = vrsqrt.pop %v5148
    %v5150 = vmul.f32 %v5147, %v5149
    %v5152 = vlaneseq
    %v5153 = vshrl.u32 %v5152, 7
    %v5154 = vsub.s32 0, %v5153
    %v5155 = vrot.slane %v5150, %v5154
    %v5157 = vmul.f32 %v5137, %v5155
    %v5158 = vld [vmem:[%s18] sm:$0x1]
    %v5160 = vlaneseq
    %v5161 = vshrl.u32 %v5160, 7
    %v5162 = vsub.s32 0, %v5161
    %v5163 = vrot.slane %v5158, %v5162
    %v5165 = vadd.f32 %v5157, %v5163
    %v5166 = vld [vmem:[%s19] sm:$0xff]
    %v5167 = vld [vmem:[%s19 + $0x8] sm:$0xff]
    %v5168 = vld [vmem:[%s19 + $0x10] sm:$0xff]
    %v5169 = vld [vmem:[%s19 + $0x18] sm:$0xff]
    %v5170 = vld [vmem:[%s19 + $0x20] sm:$0xff]
    %v5171 = vld [vmem:[%s19 + $0x28] sm:$0xff]
    %v5172 = vld [vmem:[%s19 + $0x30] sm:$0xff]
    %v5173 = vld [vmem:[%s19 + $0x38] sm:$0xff]
    %v5174 = vld [vmem:[%s19 + $0x40] sm:$0xff]
    %v5175 = vld [vmem:[%s19 + $0x48] sm:$0xff]
    %v5176 = vld [vmem:[%s19 + $0x50] sm:$0xff]
    %v5177 = vld [vmem:[%s19 + $0x58] sm:$0xff]
    %v5178 = vld [vmem:[%s19 + $0x60] sm:$0xff]
    %v5179 = vld [vmem:[%s19 + $0x68] sm:$0xff]
    %v5180 = vld [vmem:[%s19 + $0x70] sm:$0xff]
    %v5181 = vld [vmem:[%s19 + $0x78] sm:$0xff]
    %v5182 = vld [vmem:[%s20] sm:$0x1]
    %v5184 = vlaneseq
    %v5185 = vshrl.u32 %v5184, 7
    %v5186 = vsub.s32 0, %v5185
    %v5187 = vrot.slane %v5182, %v5186
    %5189 = vmatprep.subr.mxu0 0.0
    %5190 = vmatpush1.msra.mxu0 %v5181
    %5191 = vmatprep.subr.mxu0 0.0
    %5192 = vmatpush1.msra.mxu0 %v5180
    %5193 = vmatprep.subr.mxu0 0.0
    %5194 = vmatpush1.msra.mxu0 %v5179
    %5195 = vmatprep.subr.mxu0 0.0
    %5196 = vmatpush1.msra.mxu0 %v5178
    %5197 = vmatprep.subr.mxu0 0.0
    %5198 = vmatpush1.msra.mxu0 %v5177
    %5199 = vmatprep.subr.mxu0 0.0
    %5200 = vmatpush1.msra.mxu0 %v5176
    %5201 = vmatprep.subr.mxu0 0.0
    %5202 = vmatpush1.msra.mxu0 %v5175
    %5203 = vmatprep.subr.mxu0 0.0
    %5204 = vmatpush1.msra.mxu0 %v5174
    %5205 = vmatprep.subr.mxu0 0.0
    %5206 = vmatpush1.msra.mxu0 %v5173
    %5207 = vmatprep.subr.mxu0 0.0
    %5208 = vmatpush1.msra.mxu0 %v5172
    %5209 = vmatprep.subr.mxu0 0.0
    %5210 = vmatpush1.msra.mxu0 %v5171
    %5211 = vmatprep.subr.mxu0 0.0
    %5212 = vmatpush1.msra.mxu0 %v5170
    %5213 = vmatprep.subr.mxu0 0.0
    %5214 = vmatpush1.msra.mxu0 %v5169
    %5215 = vmatprep.subr.mxu0 0.0
    %5216 = vmatpush1.msra.mxu0 %v5168
    %5217 = vmatprep.subr.mxu0 0.0
    %5218 = vmatpush1.msra.mxu0 %v5167
    %5219 = vmatprep.subr.mxu0 0.0
    %5220 = vmatpush1.msra.mxu0 %v5166
    %5221 = vmatprep.subr.mxu0 0.0
    %5222 = vmatpush2.msra.mxu0 0.0
    %5223 = vmatprep.subr.mxu0 0.0
    %5224 = vmatpush2.msra.mxu0 0.0
    %5225 = vmatprep.subr.mxu0 0.0
    %5226 = vmatpush2.msra.mxu0 0.0
    %5227 = vmatprep.subr.mxu0 0.0
    %5228 = vmatpush2.msra.mxu0 0.0
    %5229 = vmatprep.subr.mxu0 0.0
    %5230 = vmatpush2.msra.mxu0 0.0
    %5231 = vmatprep.subr.mxu0 0.0
    %5232 = vmatpush2.msra.mxu0 0.0
    %5233 = vmatprep.subr.mxu0 0.0
    %5234 = vmatpush2.msra.mxu0 0.0
    %5235 = vmatprep.subr.mxu0 0.0
    %5236 = vmatpush2.msra.mxu0 0.0
    %5237 = vmatprep.subr.mxu0 0.0
    %5238 = vmatpush2.msra.mxu0 0.0
    %5239 = vmatprep.subr.mxu0 0.0
    %5240 = vmatpush2.msra.mxu0 0.0
    %5241 = vmatprep.subr.mxu0 0.0
    %5242 = vmatpush2.msra.mxu0 0.0
    %5243 = vmatprep.subr.mxu0 0.0
    %5244 = vmatpush2.msra.mxu0 0.0
    %5245 = vmatprep.subr.mxu0 0.0
    %5246 = vmatpush2.msra.mxu0 0.0
    %5247 = vmatprep.subr.mxu0 0.0
    %5248 = vmatpush2.msra.mxu0 0.0
    %5249 = vmatprep.subr.mxu0 0.0
    %5250 = vmatpush2.msra.mxu0 0.0
    %5251 = vmatprep.subr.mxu0 0.0
    %5252 = vmatpush2.msra.mxu0 0.0
    %5253 = vmatprep.mubr.f32.mxu0 0.0
    %5254 = vmatmul.mubr.f32.gmra.mxu0 %v5165
    %v5255 = vpop.f32.mrf.mxu0
    %v5256 = vadd.f32 %v5187, %v5255
    %v5257 = vpop.f32.mrf.mxu0
    %5258 = vdwg.mxu0
    %v5259 = vsub.f32 0.0, %v5256
    %v5260 = vmul.f32 %v5259, 1.442695
    %v5261 = vpow.pop %v5260
    %v5262 = vadd.f32 %v5261, 1.0
    %v5263 = vrcp.pop %v5262
    %vm5264 = vcmask 1024
    %5265 = vst.msk [vmem:[%s21] sm:$0x3] %vm5264, %v5263
    %vm5266 = vcmask 33800
    %v5267 = vsel %vm5266, %v5256, -inf
    %5268 = vmax.xlane.f32.xlu0 %v5267
    %v5269 = vpop.xlane.xlu0 %5268
    %v5270 = vsub.f32 %v5256, %v5269
    %v5271 = vmul.f32 %v5270, 1.442695
    %v5272 = vpow.pop %v5271
    %5274 = vrot.lane.b32.xlu0 %v5272, 127
    %v5275 = vpop.permute.xlu0 %5274
    %vm5277 = vcmask 25600
    %v5278 = vsel %vm5277, %v5275, 0.0
    %5279 = vadd.xlane.f32.xlu0 %v5278
    %v5280 = vpop.xlane.xlu0 %5279
    %v5281 = vrcp.pop %v5280
    %v5282 = vmul.f32 %v5272, %v5281
    %5284 = vrot.lane.b32.xlu0 %v5282, 127
    %v5285 = vpop.permute.xlu0 %5284
    %5287 = vst.msk [vmem:[#allocation11] sm:$0x3] %vm5277, %v5285
    // Predicated region
    $region106: #{discriminator_forward.1} parent=1 // pred_check
      _
    $region107: #{discriminator_forward.1} parent=1 // pred_check_branch
      %5289 = sbr.rel (0) target = $region109
    $region108: #{discriminator_forward.1} parent=1 // pred_region
      _
    $region109: #{discriminator_forward.1} parent=1 // pred_fallthru
      _
    // Predicated region
    $region110: #{discriminator_forward.1} parent=1 // pred_check
      _
    $region111: #{discriminator_forward.1} parent=1 // pred_check_branch
      %5291 = sbr.rel (0) target = $region113
    $region112: #{discriminator_forward.1} parent=1 // pred_region
      %s5293 = ssub.s32 32, 32
      %5294 = vsyncadd [#allocation4], %s5293
      %s5296 = sshll.u32 [#allocation11], 4
      %s5297 = int_to_ptr.vmem [resolvable:$true] %s5296
      %5299 = dma.vmem_to_hbm [thread:$0]  %s5297, 32, %s22, [#allocation4]
    $region113: #{discriminator_forward.1} parent=1 // pred_fallthru
      _
    // Predicated region
    $region114: #{discriminator_forward.1} parent=1 // pred_check
      _
    $region115: #{discriminator_forward.1} parent=1 // pred_check_branch
      %5301 = sbr.rel (0) target = $region117
    $region116: #{discriminator_forward.1} parent=1 // pred_region
      _
    $region117: #{discriminator_forward.1} parent=1 // pred_fallthru
      _
    // Predicated region
    $region118: #{discriminator_forward.1} parent=1 // pred_check
      _
    $region119: #{discriminator_forward.1} parent=1 // pred_check_branch
      %5303 = sbr.rel (0) target = $region121
    $region120: #{discriminator_forward.1} parent=1 // pred_region
      %5304 = dma.done [#allocation4], 32
    $region121: #{discriminator_forward.1} parent=1 // pred_fallthru
      _
    %5305 = vsyncpa [#allocation3], 1
    %5306 = vsyncpa [#allocation6], 1
    %5307 = vsyncpa [#allocation9], 1
    %5308 = vsyncpa [#allocation4], 1

</llo_original>
